<compile_context>
chip_gen: v5e
topology: v5e:2x2
jax: 0.10.0
libtpu: 0.0.40
codegen_flags: <defaults>
</compile_context>

<pallas_src>
import functools

import jax
import jax.numpy as jnp
from jax.experimental import pallas as pl
from jax.experimental.pallas import tpu as pltpu


def _round_up(x, m):
    return (x + m - 1) // m * m


# -----------------------------------------------------------------------------
# Fused kernel
#   xph:  (stride*stride*N, HT, WT, Cpi) f32  phase-decomposed padded input
#   xs:   (M, Cpi) f32                        shortcut input (strided subsample)
#   w1:   (9, Cpi, Cpo) bf16   g1,b1: (1,Cpo) f32
#   w2:   (9, Cpo, Cpo) bf16   g2,b2: (1,Cpo) f32
#   wd:   (Cpi, Cpo) bf16      gd,bd: (1,Cpo) f32   (unused if no downsample)
#   out:  (M, Cpo) f32
#   scratch h_pad: (N, Ho+2, Wo+2, Cpo) f32
# -----------------------------------------------------------------------------
def _basic_block_kernel(xph_ref, xs_ref, w1_ref, g1_ref, b1_ref,
                        w2_ref, g2_ref, b2_ref, wd_ref, gd_ref, bd_ref,
                        o_ref, h_pad_ref, *,
                        n, ho, wo, stride, eps, has_downsample):
    m = n * ho * wo
    cpo = o_ref.shape[1]

    def batchnorm(acc, g, b):
        # Training-mode BN: batch stats over the M = N*Ho*Wo rows (biased var),
        # one pass (sum / sum-of-squares); rsqrt rides the EUP.
        mean = jnp.mean(acc, axis=0, keepdims=True)
        var = jnp.mean(acc * acc, axis=0, keepdims=True) - mean * mean
        var = jnp.maximum(var, 0.0)
        return (acc - mean) * (g * jax.lax.rsqrt(var + eps)) + b

    # ---- conv1 (3x3, stride) as 9 shifted matmuls ----------------------------
    acc1 = jnp.zeros((m, cpo), jnp.float32)
    for ky in range(3):
        for kx in range(3):
            phase = (ky % stride) * stride + (kx % stride)
            oy, ox = ky // stride, kx // stride
            tap = xph_ref[phase * n:(phase + 1) * n, oy:oy + ho, ox:ox + wo, :]
            tap = tap.reshape(m, tap.shape[-1]).astype(jnp.bfloat16)
            acc1 += jnp.dot(tap, w1_ref[ky * 3 + kx],
                            preferred_element_type=jnp.float32)
    h = jnp.maximum(batchnorm(acc1, g1_ref[...], b1_ref[...]), 0.0)

    # ---- stage h (spatially zero-padded) in VMEM scratch for conv2 -----------
    h_pad_ref[...] = jnp.zeros_like(h_pad_ref)
    h_pad_ref[:, 1:1 + ho, 1:1 + wo, :] = h.reshape(n, ho, wo, cpo)

    # ---- conv2 (3x3, stride 1) as 9 shifted matmuls ---------------------------
    acc2 = jnp.zeros((m, cpo), jnp.float32)
    for ky in range(3):
        for kx in range(3):
            tap = h_pad_ref[:, ky:ky + ho, kx:kx + wo, :]
            tap = tap.reshape(m, cpo).astype(jnp.bfloat16)
            acc2 += jnp.dot(tap, w2_ref[ky * 3 + kx],
                            preferred_element_type=jnp.float32)
    out = batchnorm(acc2, g2_ref[...], b2_ref[...])

    # ---- shortcut --------------------------------------------------------------
    if has_downsample:
        accd = jnp.dot(xs_ref[...].astype(jnp.bfloat16), wd_ref[...],
                       preferred_element_type=jnp.float32)
        identity = batchnorm(accd, gd_ref[...], bd_ref[...])
    else:
        identity = xs_ref[...]

    o_ref[...] = jnp.maximum(out + identity, 0.0)


# -----------------------------------------------------------------------------
# Wrapper: layout prep (NCHW -> NHWC, channel padding to 128, spatial pad,
# stride-phase split) + one pallas_call.
# -----------------------------------------------------------------------------
def basic_block_forward(x_nchw, params, stride, eps=1e-5):
    n, cin, h, w = x_nchw.shape
    cout = params["w1"].shape[0]
    ho = (h + 2 - 3) // stride + 1
    wo = (w + 2 - 3) // stride + 1
    m = n * ho * wo
    cpi = _round_up(cin, 128)
    cpo = _round_up(cout, 128)
    has_downsample = (stride != 1) or (cin != cout)

    # NHWC, channel-padded (lane-dense).
    # TODO(synk): if the surrounding model were NHWC end-to-end these transposes
    # would disappear; with a NCHW PyTorch interface they stay as cheap XLA ops.
    x = jnp.transpose(x_nchw, (0, 2, 3, 1)).astype(jnp.float32)
    x = jnp.pad(x, ((0, 0), (0, 0), (0, 0), (0, cpi - cin)))

    # Spatial pad=1 and stride-phase decomposition so every conv1 tap is a
    # contiguous slice inside the kernel (no im2col, no strided in-kernel reads).
    xp = jnp.pad(x, ((0, 0), (1, 1), (1, 1), (0, 0)))
    ht = ho + (2 // stride)
    wt = wo + (2 // stride)
    phases = []
    for py in range(stride):
        for px in range(stride):
            ph = xp[:, py::stride, px::stride, :][:, :ht, :wt, :]
            ph = jnp.pad(ph, ((0, 0), (0, ht - ph.shape[1]),
                              (0, wt - ph.shape[2]), (0, 0)))
            phases.append(ph)
    x_phases = jnp.concatenate(phases, axis=0)   # (stride*stride*N, HT, WT, Cpi)

    # Shortcut input: strided spatial subsample (tiny; also the residual when
    # there is no downsample path -- cin == cout so cpi == cpo in that case).
    xs = x[:, 0:(ho - 1) * stride + 1:stride, 0:(wo - 1) * stride + 1:stride, :]
    xs = xs.reshape(m, cpi)

    def prep_w(w_oihw, k_in_pad, k_out_pad):
        co, ci, kh, kw = w_oihw.shape
        wr = jnp.transpose(w_oihw, (2, 3, 1, 0)).reshape(kh * kw, ci, co)
        wr = jnp.pad(wr, ((0, 0), (0, k_in_pad - ci), (0, k_out_pad - co)))
        return wr.astype(jnp.bfloat16)

    def prep_gb(g, b):
        gp = jnp.pad(g.astype(jnp.float32), (0, cpo - cout),
                     constant_values=1.0).reshape(1, cpo)
        bp = jnp.pad(b.astype(jnp.float32), (0, cpo - cout)).reshape(1, cpo)
        return gp, bp

    w1 = prep_w(params["w1"], cpi, cpo)           # (9, Cpi, Cpo)
    w2 = prep_w(params["w2"], cpo, cpo)           # (9, Cpo, Cpo)
    g1, b1 = prep_gb(params["g1"], params["b1"])
    g2, b2 = prep_gb(params["g2"], params["b2"])
    if has_downsample:
        wd = prep_w(params["wd"], cpi, cpo)[0]    # (Cpi, Cpo)
        gd, bd = prep_gb(params["gd"], params["bd"])
    else:
        wd = jnp.zeros((cpi, cpo), jnp.bfloat16)  # unused in this variant
        gd = jnp.ones((1, cpo), jnp.float32)
        bd = jnp.zeros((1, cpo), jnp.float32)

    kernel = functools.partial(
        _basic_block_kernel, n=n, ho=ho, wo=wo, stride=stride, eps=eps,
        has_downsample=has_downsample)

    vmem = pl.BlockSpec(memory_space=pltpu.MemorySpace.VMEM)
    out_flat = pl.pallas_call(
        kernel,
        out_shape=jax.ShapeDtypeStruct((m, cpo), jnp.float32),
        in_specs=[vmem] * 11,
        out_specs=vmem,
        scratch_shapes=[pltpu.VMEM((n, ho + 2, wo + 2, cpo), jnp.float32)],
        # TODO(synk): for production ResNet sizes add a grid over Cout tiles
        # ('parallel'; BN stats are per-channel) plus a two-pass BN over row
        # tiles; at these small shapes a single resident block is correct and
        # avoids redundant conv1 recompute.
    )(x_phases, xs, w1, g1, b1, w2, g2, b2, wd, gd, bd)

    out = out_flat.reshape(n, ho, wo, cpo)[:, :, :, :cout]
    return jnp.transpose(out, (0, 3, 1, 2))       # back to NCHW


# -----------------------------------------------------------------------------
# Pure-JAX reference (lax.conv) with the same bf16-matmul-input policy.
# -----------------------------------------------------------------------------
def ref_forward(x, params, stride, eps=1e-5):
    def conv(xx, ww, s, pad):
        xb = xx.astype(jnp.bfloat16).astype(jnp.float32)
        wb = ww.astype(jnp.bfloat16).astype(jnp.float32)
        return jax.lax.conv_general_dilated(
            xb, wb, (s, s), [(pad, pad), (pad, pad)],
            dimension_numbers=("NCHW", "OIHW", "NCHW"))

    def bn(xx, g, b):
        mean = xx.mean(axis=(0, 2, 3), keepdims=True)
        var = ((xx - mean) ** 2).mean(axis=(0, 2, 3), keepdims=True)
        return ((xx - mean) * jax.lax.rsqrt(var + eps) * g.reshape(1, -1, 1, 1)
                + b.reshape(1, -1, 1, 1))

    cin = x.shape[1]
    cout = params["w1"].shape[0]
    out = jax.nn.relu(bn(conv(x, params["w1"], stride, 1),
                         params["g1"], params["b1"]))
    out = bn(conv(out, params["w2"], 1, 1), params["g2"], params["b2"])
    identity = x
    if stride != 1 or cin != cout:
        identity = bn(conv(x, params["wd"], stride, 0),
                      params["gd"], params["bd"])
    return jax.nn.relu(out + identity)


if __name__ == "__main__":
    key = jax.random.PRNGKey(0)

    def make_params(k, cin, cout, with_down):
        ks = jax.random.split(k, 9)
        p = {
            "w1": 0.1 * jax.random.normal(ks[0], (cout, cin, 3, 3), jnp.float32),
            "g1": 1.0 + 0.1 * jax.random.normal(ks[1], (cout,), jnp.float32),
            "b1": 0.1 * jax.random.normal(ks[2], (cout,), jnp.float32),
            "w2": 0.1 * jax.random.normal(ks[3], (cout, cout, 3, 3), jnp.float32),
            "g2": 1.0 + 0.1 * jax.random.normal(ks[4], (cout,), jnp.float32),
            "b2": 0.1 * jax.random.normal(ks[5], (cout,), jnp.float32),
        }
        if with_down:
            p["wd"] = 0.1 * jax.random.normal(ks[6], (cout, cin, 1, 1), jnp.float32)
            p["gd"] = 1.0 + 0.1 * jax.random.normal(ks[7], (cout,), jnp.float32)
            p["bd"] = 0.1 * jax.random.normal(ks[8], (cout,), jnp.float32)
        return p

    k1, k2, k3, k4 = jax.random.split(key, 4)

    # Tolerance accounts for bf16 MXU operands (vs. f32 torch math the only
    # difference is bf16 rounding of the matmul inputs, mirrored in ref_forward).
    TOL = 2e-2

    # --- Config 1: downsample path (stride 2, channel expansion) ---------------
    N, CIN, H, W, COUT, STRIDE = 2, 4, 16, 16, 8, 2
    params = make_params(k1, CIN, COUT, True)
    x = jax.random.normal(k2, (N, CIN, H, W), jnp.float32)
    out = jax.block_until_ready(basic_block_forward(x, params, STRIDE))
    ref = jax.block_until_ready(ref_forward(x, params, STRIDE))
    assert out.shape == (N, COUT, H // STRIDE, W // STRIDE), out.shape
    assert jnp.allclose(out, ref, atol=TOL, rtol=TOL), (
        float(jnp.max(jnp.abs(out - ref))))

    # --- Config 2: identity shortcut (stride 1, cin == cout) -------------------
    N2, C2, H2, W2, STRIDE2 = 2, 8, 16, 16, 1
    params2 = make_params(k3, C2, C2, False)
    x2 = jax.random.normal(k4, (N2, C2, H2, W2), jnp.float32)
    out2 = jax.block_until_ready(basic_block_forward(x2, params2, STRIDE2))
    ref2 = jax.block_until_ready(ref_forward(x2, params2, STRIDE2))
    assert out2.shape == (N2, C2, H2, W2), out2.shape
    assert jnp.allclose(out2, ref2, atol=TOL, rtol=TOL), (
        float(jnp.max(jnp.abs(out2 - ref2))))

    print("KERNEL_OK")
</pallas_src>

<mosaic_0001>
module attributes {stable_mosaic.version = 11 : i64} {
  func.func @_basic_block_kernel(%arg0: memref<8x9x9x128xf32, #tpu.memory_space<vmem>>, %arg1: memref<128x128xf32, #tpu.memory_space<vmem>>, %arg2: memref<9x128x128xbf16, #tpu.memory_space<vmem>>, %arg3: memref<1x128xf32, #tpu.memory_space<vmem>>, %arg4: memref<1x128xf32, #tpu.memory_space<vmem>>, %arg5: memref<9x128x128xbf16, #tpu.memory_space<vmem>>, %arg6: memref<1x128xf32, #tpu.memory_space<vmem>>, %arg7: memref<1x128xf32, #tpu.memory_space<vmem>>, %arg8: memref<128x128xbf16, #tpu.memory_space<vmem>>, %arg9: memref<1x128xf32, #tpu.memory_space<vmem>>, %arg10: memref<1x128xf32, #tpu.memory_space<vmem>>, %arg11: memref<128x128xf32, #tpu.memory_space<vmem>>, %arg12: memref<2x10x10x128xf32, #tpu.memory_space<vmem>>) attributes {dimension_semantics = [], scalar_prefetch = 0 : i64, scratch_operands = 1 : i64, tpu.core_type = #tpu.core_type<tc>} {
    %cst = arith.constant 0.000000e+00 : f32
    %0 = vector.broadcast %cst : f32 to vector<128x128xf32>
    %c0 = arith.constant 0 : index
    %c0_0 = arith.constant 0 : index
    %c0_1 = arith.constant 0 : index
    %c0_2 = arith.constant 0 : index
    %1 = vector.load %arg0[%c0, %c0_0, %c0_1, %c0_2] : memref<8x9x9x128xf32, #tpu.memory_space<vmem>>, vector<2x8x8x128xf32>
    %2 = vector.shape_cast %1 : vector<2x8x8x128xf32> to vector<128x128xf32>
    %3 = arith.truncf %2 : vector<128x128xf32> to vector<128x128xbf16>
    %c0_3 = arith.constant 0 : index
    %c0_4 = arith.constant 0 : index
    %c0_5 = arith.constant 0 : index
    %4 = vector.load %arg2[%c0_3, %c0_4, %c0_5] : memref<9x128x128xbf16, #tpu.memory_space<vmem>>, vector<1x128x128xbf16>
    %5 = vector.shape_cast %4 : vector<1x128x128xbf16> to vector<128x128xbf16>
    %cst_6 = arith.constant dense<0.000000e+00> : vector<128x128xf32>
    %6 = tpu.matmul %3, %5, %cst_6 {dimension_numbers = #tpu.dot_dimension_numbers<[1], [0], [0], [1], [0, 0, 1, 1], [], []>} : vector<128x128xbf16>, vector<128x128xbf16>, vector<128x128xf32> -> vector<128x128xf32>
    %7 = arith.addf %0, %6 : vector<128x128xf32>
    %c2 = arith.constant 2 : index
    %c0_7 = arith.constant 0 : index
    %c0_8 = arith.constant 0 : index
    %c0_9 = arith.constant 0 : index
    %8 = vector.load %arg0[%c2, %c0_7, %c0_8, %c0_9] : memref<8x9x9x128xf32, #tpu.memory_space<vmem>>, vector<2x8x8x128xf32>
    %9 = vector.shape_cast %8 : vector<2x8x8x128xf32> to vector<128x128xf32>
    %10 = arith.truncf %9 : vector<128x128xf32> to vector<128x128xbf16>
    %c1 = arith.constant 1 : index
    %c0_10 = arith.constant 0 : index
    %c0_11 = arith.constant 0 : index
    %11 = vector.load %arg2[%c1, %c0_10, %c0_11] : memref<9x128x128xbf16, #tpu.memory_space<vmem>>, vector<1x128x128xbf16>
    %12 = vector.shape_cast %11 : vector<1x128x128xbf16> to vector<128x128xbf16>
    %cst_12 = arith.constant dense<0.000000e+00> : vector<128x128xf32>
    %13 = tpu.matmul %10, %12, %cst_12 {dimension_numbers = #tpu.dot_dimension_numbers<[1], [0], [0], [1], [0, 0, 1, 1], [], []>} : vector<128x128xbf16>, vector<128x128xbf16>, vector<128x128xf32> -> vector<128x128xf32>
    %14 = arith.addf %7, %13 : vector<128x128xf32>
    %c0_13 = arith.constant 0 : index
    %c0_14 = arith.constant 0 : index
    %c1_15 = arith.constant 1 : index
    %c0_16 = arith.constant 0 : index
    %15 = vector.load %arg0[%c0_13, %c0_14, %c1_15, %c0_16] : memref<8x9x9x128xf32, #tpu.memory_space<vmem>>, vector<2x8x8x128xf32>
    %16 = vector.shape_cast %15 : vector<2x8x8x128xf32> to vector<128x128xf32>
    %17 = arith.truncf %16 : vector<128x128xf32> to vector<128x128xbf16>
    %c2_17 = arith.constant 2 : index
    %c0_18 = arith.constant 0 : index
    %c0_19 = arith.constant 0 : index
    %18 = vector.load %arg2[%c2_17, %c0_18, %c0_19] : memref<9x128x128xbf16, #tpu.memory_space<vmem>>, vector<1x128x128xbf16>
    %19 = vector.shape_cast %18 : vector<1x128x128xbf16> to vector<128x128xbf16>
    %cst_20 = arith.constant dense<0.000000e+00> : vector<128x128xf32>
    %20 = tpu.matmul %17, %19, %cst_20 {dimension_numbers = #tpu.dot_dimension_numbers<[1], [0], [0], [1], [0, 0, 1, 1], [], []>} : vector<128x128xbf16>, vector<128x128xbf16>, vector<128x128xf32> -> vector<128x128xf32>
    %21 = arith.addf %14, %20 : vector<128x128xf32>
    %c4 = arith.constant 4 : index
    %c0_21 = arith.constant 0 : index
    %c0_22 = arith.constant 0 : index
    %c0_23 = arith.constant 0 : index
    %22 = vector.load %arg0[%c4, %c0_21, %c0_22, %c0_23] : memref<8x9x9x128xf32, #tpu.memory_space<vmem>>, vector<2x8x8x128xf32>
    %23 = vector.shape_cast %22 : vector<2x8x8x128xf32> to vector<128x128xf32>
    %24 = arith.truncf %23 : vector<128x128xf32> to vector<128x128xbf16>
    %c3 = arith.constant 3 : index
    %c0_24 = arith.constant 0 : index
    %c0_25 = arith.constant 0 : index
    %25 = vector.load %arg2[%c3, %c0_24, %c0_25] : memref<9x128x128xbf16, #tpu.memory_space<vmem>>, vector<1x128x128xbf16>
    %26 = vector.shape_cast %25 : vector<1x128x128xbf16> to vector<128x128xbf16>
    %cst_26 = arith.constant dense<0.000000e+00> : vector<128x128xf32>
    %27 = tpu.matmul %24, %26, %cst_26 {dimension_numbers = #tpu.dot_dimension_numbers<[1], [0], [0], [1], [0, 0, 1, 1], [], []>} : vector<128x128xbf16>, vector<128x128xbf16>, vector<128x128xf32> -> vector<128x128xf32>
    %28 = arith.addf %21, %27 : vector<128x128xf32>
    %c6 = arith.constant 6 : index
    %c0_27 = arith.constant 0 : index
    %c0_28 = arith.constant 0 : index
    %c0_29 = arith.constant 0 : index
    %29 = vector.load %arg0[%c6, %c0_27, %c0_28, %c0_29] : memref<8x9x9x128xf32, #tpu.memory_space<vmem>>, vector<2x8x8x128xf32>
    %30 = vector.shape_cast %29 : vector<2x8x8x128xf32> to vector<128x128xf32>
    %31 = arith.truncf %30 : vector<128x128xf32> to vector<128x128xbf16>
    %c4_30 = arith.constant 4 : index
    %c0_31 = arith.constant 0 : index
    %c0_32 = arith.constant 0 : index
    %32 = vector.load %arg2[%c4_30, %c0_31, %c0_32] : memref<9x128x128xbf16, #tpu.memory_space<vmem>>, vector<1x128x128xbf16>
    %33 = vector.shape_cast %32 : vector<1x128x128xbf16> to vector<128x128xbf16>
    %cst_33 = arith.constant dense<0.000000e+00> : vector<128x128xf32>
    %34 = tpu.matmul %31, %33, %cst_33 {dimension_numbers = #tpu.dot_dimension_numbers<[1], [0], [0], [1], [0, 0, 1, 1], [], []>} : vector<128x128xbf16>, vector<128x128xbf16>, vector<128x128xf32> -> vector<128x128xf32>
    %35 = arith.addf %28, %34 : vector<128x128xf32>
    %c4_34 = arith.constant 4 : index
    %c0_35 = arith.constant 0 : index
    %c1_36 = arith.constant 1 : index
    %c0_37 = arith.constant 0 : index
    %36 = vector.load %arg0[%c4_34, %c0_35, %c1_36, %c0_37] : memref<8x9x9x128xf32, #tpu.memory_space<vmem>>, vector<2x8x8x128xf32>
    %37 = vector.shape_cast %36 : vector<2x8x8x128xf32> to vector<128x128xf32>
    %38 = arith.truncf %37 : vector<128x128xf32> to vector<128x128xbf16>
    %c5 = arith.constant 5 : index
    %c0_38 = arith.constant 0 : index
    %c0_39 = arith.constant 0 : index
    %39 = vector.load %arg2[%c5, %c0_38, %c0_39] : memref<9x128x128xbf16, #tpu.memory_space<vmem>>, vector<1x128x128xbf16>
    %40 = vector.shape_cast %39 : vector<1x128x128xbf16> to vector<128x128xbf16>
    %cst_40 = arith.constant dense<0.000000e+00> : vector<128x128xf32>
    %41 = tpu.matmul %38, %40, %cst_40 {dimension_numbers = #tpu.dot_dimension_numbers<[1], [0], [0], [1], [0, 0, 1, 1], [], []>} : vector<128x128xbf16>, vector<128x128xbf16>, vector<128x128xf32> -> vector<128x128xf32>
    %42 = arith.addf %35, %41 : vector<128x128xf32>
    %c0_41 = arith.constant 0 : index
    %c1_42 = arith.constant 1 : index
    %c0_43 = arith.constant 0 : index
    %c0_44 = arith.constant 0 : index
    %43 = vector.load %arg0[%c0_41, %c1_42, %c0_43, %c0_44] : memref<8x9x9x128xf32, #tpu.memory_space<vmem>>, vector<2x8x8x128xf32>
    %44 = vector.shape_cast %43 : vector<2x8x8x128xf32> to vector<128x128xf32>
    %45 = arith.truncf %44 : vector<128x128xf32> to vector<128x128xbf16>
    %c6_45 = arith.constant 6 : index
    %c0_46 = arith.constant 0 : index
    %c0_47 = arith.constant 0 : index
    %46 = vector.load %arg2[%c6_45, %c0_46, %c0_47] : memref<9x128x128xbf16, #tpu.memory_space<vmem>>, vector<1x128x128xbf16>
    %47 = vector.shape_cast %46 : vector<1x128x128xbf16> to vector<128x128xbf16>
    %cst_48 = arith.constant dense<0.000000e+00> : vector<128x128xf32>
    %48 = tpu.matmul %45, %47, %cst_48 {dimension_numbers = #tpu.dot_dimension_numbers<[1], [0], [0], [1], [0, 0, 1, 1], [], []>} : vector<128x128xbf16>, vector<128x128xbf16>, vector<128x128xf32> -> vector<128x128xf32>
    %49 = arith.addf %42, %48 : vector<128x128xf32>
    %c2_49 = arith.constant 2 : index
    %c1_50 = arith.constant 1 : index
    %c0_51 = arith.constant 0 : index
    %c0_52 = arith.constant 0 : index
    %50 = vector.load %arg0[%c2_49, %c1_50, %c0_51, %c0_52] : memref<8x9x9x128xf32, #tpu.memory_space<vmem>>, vector<2x8x8x128xf32>
    %51 = vector.shape_cast %50 : vector<2x8x8x128xf32> to vector<128x128xf32>
    %52 = arith.truncf %51 : vector<128x128xf32> to vector<128x128xbf16>
    %c7 = arith.constant 7 : index
    %c0_53 = arith.constant 0 : index
    %c0_54 = arith.constant 0 : index
    %53 = vector.load %arg2[%c7, %c0_53, %c0_54] : memref<9x128x128xbf16, #tpu.memory_space<vmem>>, vector<1x128x128xbf16>
    %54 = vector.shape_cast %53 : vector<1x128x128xbf16> to vector<128x128xbf16>
    %cst_55 = arith.constant dense<0.000000e+00> : vector<128x128xf32>
    %55 = tpu.matmul %52, %54, %cst_55 {dimension_numbers = #tpu.dot_dimension_numbers<[1], [0], [0], [1], [0, 0, 1, 1], [], []>} : vector<128x128xbf16>, vector<128x128xbf16>, vector<128x128xf32> -> vector<128x128xf32>
    %56 = arith.addf %49, %55 : vector<128x128xf32>
    %c0_56 = arith.constant 0 : index
    %c1_57 = arith.constant 1 : index
    %c1_58 = arith.constant 1 : index
    %c0_59 = arith.constant 0 : index
    %57 = vector.load %arg0[%c0_56, %c1_57, %c1_58, %c0_59] : memref<8x9x9x128xf32, #tpu.memory_space<vmem>>, vector<2x8x8x128xf32>
    %58 = vector.shape_cast %57 : vector<2x8x8x128xf32> to vector<128x128xf32>
    %59 = arith.truncf %58 : vector<128x128xf32> to vector<128x128xbf16>
    %c8 = arith.constant 8 : index
    %c0_60 = arith.constant 0 : index
    %c0_61 = arith.constant 0 : index
    %60 = vector.load %arg2[%c8, %c0_60, %c0_61] : memref<9x128x128xbf16, #tpu.memory_space<vmem>>, vector<1x128x128xbf16>
    %61 = vector.shape_cast %60 : vector<1x128x128xbf16> to vector<128x128xbf16>
    %cst_62 = arith.constant dense<0.000000e+00> : vector<128x128xf32>
    %62 = tpu.matmul %59, %61, %cst_62 {dimension_numbers = #tpu.dot_dimension_numbers<[1], [0], [0], [1], [0, 0, 1, 1], [], []>} : vector<128x128xbf16>, vector<128x128xbf16>, vector<128x128xf32> -> vector<128x128xf32>
    %63 = arith.addf %56, %62 : vector<128x128xf32>
    %c0_63 = arith.constant 0 : index
    %c0_64 = arith.constant 0 : index
    %64 = vector.load %arg3[%c0_63, %c0_64] : memref<1x128xf32, #tpu.memory_space<vmem>>, vector<1x128xf32>
    %c0_65 = arith.constant 0 : index
    %c0_66 = arith.constant 0 : index
    %65 = vector.load %arg4[%c0_65, %c0_66] : memref<1x128xf32, #tpu.memory_space<vmem>>, vector<1x128xf32>
    %cst_67 = arith.constant dense<0.000000e+00> : vector<128xf32>
    %66 = vector.multi_reduction <add>, %63, %cst_67 [0] : vector<128x128xf32> to vector<128xf32>
    %67 = vector.shape_cast %66 : vector<128xf32> to vector<1x128xf32>
    %cst_68 = arith.constant 1.280000e+02 : f32
    %68 = vector.broadcast %cst_68 : f32 to vector<1x128xf32>
    %69 = arith.divf %67, %68 : vector<1x128xf32>
    %70 = arith.mulf %63, %63 : vector<128x128xf32>
    %cst_69 = arith.constant dense<0.000000e+00> : vector<128xf32>
    %71 = vector.multi_reduction <add>, %70, %cst_69 [0] : vector<128x128xf32> to vector<128xf32>
    %72 = vector.shape_cast %71 : vector<128xf32> to vector<1x128xf32>
    %cst_70 = arith.constant 1.280000e+02 : f32
    %73 = vector.broadcast %cst_70 : f32 to vector<1x128xf32>
    %74 = arith.divf %72, %73 : vector<1x128xf32>
    %75 = arith.mulf %69, %69 : vector<1x128xf32>
    %76 = arith.subf %74, %75 : vector<1x128xf32>
    %cst_71 = arith.constant 0.000000e+00 : f32
    %77 = vector.broadcast %cst_71 : f32 to vector<1x128xf32>
    %78 = arith.maximumf %76, %77 : vector<1x128xf32>
    %79 = vector.broadcast %69 : vector<1x128xf32> to vector<128x128xf32>
    %80 = arith.subf %63, %79 : vector<128x128xf32>
    %cst_72 = arith.constant 9.99999974E-6 : f32
    %81 = vector.broadcast %cst_72 : f32 to vector<1x128xf32>
    %82 = arith.addf %78, %81 : vector<1x128xf32>
    %83 = math.rsqrt %82 : vector<1x128xf32>
    %84 = arith.mulf %64, %83 : vector<1x128xf32>
    %85 = vector.broadcast %84 : vector<1x128xf32> to vector<128x128xf32>
    %86 = arith.mulf %80, %85 : vector<128x128xf32>
    %87 = vector.broadcast %65 : vector<1x128xf32> to vector<128x128xf32>
    %88 = arith.addf %86, %87 : vector<128x128xf32>
    %cst_73 = arith.constant 0.000000e+00 : f32
    %89 = vector.broadcast %cst_73 : f32 to vector<128x128xf32>
    %90 = arith.maximumf %88, %89 : vector<128x128xf32>
    %cst_74 = arith.constant 0.000000e+00 : f32
    %91 = vector.broadcast %cst_74 : f32 to vector<2x10x10x128xf32>
    %c0_75 = arith.constant 0 : index
    %c0_76 = arith.constant 0 : index
    %c0_77 = arith.constant 0 : index
    %c0_78 = arith.constant 0 : index
    %92 = vector.load %arg12[%c0_75, %c0_76, %c0_77, %c0_78] : memref<2x10x10x128xf32, #tpu.memory_space<vmem>>, vector<2x10x10x128xf32>
    tpu.vector_store %arg12[%c0_75, %c0_76, %c0_77, %c0_78], %91 {strides = array<i32>} : memref<2x10x10x128xf32, #tpu.memory_space<vmem>>, vector<2x10x10x128xf32>,
    %93 = vector.shape_cast %90 : vector<128x128xf32> to vector<2x8x8x128xf32>
    %c0_79 = arith.constant 0 : index
    %c1_80 = arith.constant 1 : index
    %c1_81 = arith.constant 1 : index
    %c0_82 = arith.constant 0 : index
    %94 = vector.load %arg12[%c0_79, %c1_80, %c1_81, %c0_82] : memref<2x10x10x128xf32, #tpu.memory_space<vmem>>, vector<2x8x8x128xf32>
    tpu.vector_store %arg12[%c0_79, %c1_80, %c1_81, %c0_82], %93 {strides = array<i32>} : memref<2x10x10x128xf32, #tpu.memory_space<vmem>>, vector<2x8x8x128xf32>,
    %cst_83 = arith.constant 0.000000e+00 : f32
    %95 = vector.broadcast %cst_83 : f32 to vector<128x128xf32>
    %c0_84 = arith.constant 0 : index
    %c0_85 = arith.constant 0 : index
    %c0_86 = arith.constant 0 : index
    %c0_87 = arith.constant 0 : index
    %96 = vector.load %arg12[%c0_84, %c0_85, %c0_86, %c0_87] : memref<2x10x10x128xf32, #tpu.memory_space<vmem>>, vector<2x8x8x128xf32>
    %97 = vector.shape_cast %96 : vector<2x8x8x128xf32> to vector<128x128xf32>
    %98 = arith.truncf %97 : vector<128x128xf32> to vector<128x128xbf16>
    %c0_88 = arith.constant 0 : index
    %c0_89 = arith.constant 0 : index
    %c0_90 = arith.constant 0 : index
    %99 = vector.load %arg5[%c0_88, %c0_89, %c0_90] : memref<9x128x128xbf16, #tpu.memory_space<vmem>>, vector<1x128x128xbf16>
    %100 = vector.shape_cast %99 : vector<1x128x128xbf16> to vector<128x128xbf16>
    %cst_91 = arith.constant dense<0.000000e+00> : vector<128x128xf32>
    %101 = tpu.matmul %98, %100, %cst_91 {dimension_numbers = #tpu.dot_dimension_numbers<[1], [0], [0], [1], [0, 0, 1, 1], [], []>} : vector<128x128xbf16>, vector<128x128xbf16>, vector<128x128xf32> -> vector<128x128xf32>
    %102 = arith.addf %95, %101 : vector<128x128xf32>
    %c0_92 = arith.constant 0 : index
    %c0_93 = arith.constant 0 : index
    %c1_94 = arith.constant 1 : index
    %c0_95 = arith.constant 0 : index
    %103 = vector.load %arg12[%c0_92, %c0_93, %c1_94, %c0_95] : memref<2x10x10x128xf32, #tpu.memory_space<vmem>>, vector<2x8x8x128xf32>
    %104 = vector.shape_cast %103 : vector<2x8x8x128xf32> to vector<128x128xf32>
    %105 = arith.truncf %104 : vector<128x128xf32> to vector<128x128xbf16>
    %c1_96 = arith.constant 1 : index
    %c0_97 = arith.constant 0 : index
    %c0_98 = arith.constant 0 : index
    %106 = vector.load %arg5[%c1_96, %c0_97, %c0_98] : memref<9x128x128xbf16, #tpu.memory_space<vmem>>, vector<1x128x128xbf16>
    %107 = vector.shape_cast %106 : vector<1x128x128xbf16> to vector<128x128xbf16>
    %cst_99 = arith.constant dense<0.000000e+00> : vector<128x128xf32>
    %108 = tpu.matmul %105, %107, %cst_99 {dimension_numbers = #tpu.dot_dimension_numbers<[1], [0], [0], [1], [0, 0, 1, 1], [], []>} : vector<128x128xbf16>, vector<128x128xbf16>, vector<128x128xf32> -> vector<128x128xf32>
    %109 = arith.addf %102, %108 : vector<128x128xf32>
    %c0_100 = arith.constant 0 : index
    %c0_101 = arith.constant 0 : index
    %c2_102 = arith.constant 2 : index
    %c0_103 = arith.constant 0 : index
    %110 = vector.load %arg12[%c0_100, %c0_101, %c2_102, %c0_103] : memref<2x10x10x128xf32, #tpu.memory_space<vmem>>, vector<2x8x8x128xf32>
    %111 = vector.shape_cast %110 : vector<2x8x8x128xf32> to vector<128x128xf32>
    %112 = arith.truncf %111 : vector<128x128xf32> to vector<128x128xbf16>
    %c2_104 = arith.constant 2 : index
    %c0_105 = arith.constant 0 : index
    %c0_106 = arith.constant 0 : index
    %113 = vector.load %arg5[%c2_104, %c0_105, %c0_106] : memref<9x128x128xbf16, #tpu.memory_space<vmem>>, vector<1x128x128xbf16>
    %114 = vector.shape_cast %113 : vector<1x128x128xbf16> to vector<128x128xbf16>
    %cst_107 = arith.constant dense<0.000000e+00> : vector<128x128xf32>
    %115 = tpu.matmul %112, %114, %cst_107 {dimension_numbers = #tpu.dot_dimension_numbers<[1], [0], [0], [1], [0, 0, 1, 1], [], []>} : vector<128x128xbf16>, vector<128x128xbf16>, vector<128x128xf32> -> vector<128x128xf32>
    %116 = arith.addf %109, %115 : vector<128x128xf32>
    %c0_108 = arith.constant 0 : index
    %c1_109 = arith.constant 1 : index
    %c0_110 = arith.constant 0 : index
    %c0_111 = arith.constant 0 : index
    %117 = vector.load %arg12[%c0_108, %c1_109, %c0_110, %c0_111] : memref<2x10x10x128xf32, #tpu.memory_space<vmem>>, vector<2x8x8x128xf32>
    %118 = vector.shape_cast %117 : vector<2x8x8x128xf32> to vector<128x128xf32>
    %119 = arith.truncf %118 : vector<128x128xf32> to vector<128x128xbf16>
    %c3_112 = arith.constant 3 : index
    %c0_113 = arith.constant 0 : index
    %c0_114 = arith.constant 0 : index
    %120 = vector.load %arg5[%c3_112, %c0_113, %c0_114] : memref<9x128x128xbf16, #tpu.memory_space<vmem>>, vector<1x128x128xbf16>
    %121 = vector.shape_cast %120 : vector<1x128x128xbf16> to vector<128x128xbf16>
    %cst_115 = arith.constant dense<0.000000e+00> : vector<128x128xf32>
    %122 = tpu.matmul %119, %121, %cst_115 {dimension_numbers = #tpu.dot_dimension_numbers<[1], [0], [0], [1], [0, 0, 1, 1], [], []>} : vector<128x128xbf16>, vector<128x128xbf16>, vector<128x128xf32> -> vector<128x128xf32>
    %123 = arith.addf %116, %122 : vector<128x128xf32>
    %c0_116 = arith.constant 0 : index
    %c1_117 = arith.constant 1 : index
    %c1_118 = arith.constant 1 : index
    %c0_119 = arith.constant 0 : index
    %124 = vector.load %arg12[%c0_116, %c1_117, %c1_118, %c0_119] : memref<2x10x10x128xf32, #tpu.memory_space<vmem>>, vector<2x8x8x128xf32>
    %125 = vector.shape_cast %124 : vector<2x8x8x128xf32> to vector<128x128xf32>
    %126 = arith.truncf %125 : vector<128x128xf32> to vector<128x128xbf16>
    %c4_120 = arith.constant 4 : index
    %c0_121 = arith.constant 0 : index
    %c0_122 = arith.constant 0 : index
    %127 = vector.load %arg5[%c4_120, %c0_121, %c0_122] : memref<9x128x128xbf16, #tpu.memory_space<vmem>>, vector<1x128x128xbf16>
    %128 = vector.shape_cast %127 : vector<1x128x128xbf16> to vector<128x128xbf16>
    %cst_123 = arith.constant dense<0.000000e+00> : vector<128x128xf32>
    %129 = tpu.matmul %126, %128, %cst_123 {dimension_numbers = #tpu.dot_dimension_numbers<[1], [0], [0], [1], [0, 0, 1, 1], [], []>} : vector<128x128xbf16>, vector<128x128xbf16>, vector<128x128xf32> -> vector<128x128xf32>
    %130 = arith.addf %123, %129 : vector<128x128xf32>
    %c0_124 = arith.constant 0 : index
    %c1_125 = arith.constant 1 : index
    %c2_126 = arith.constant 2 : index
    %c0_127 = arith.constant 0 : index
    %131 = vector.load %arg12[%c0_124, %c1_125, %c2_126, %c0_127] : memref<2x10x10x128xf32, #tpu.memory_space<vmem>>, vector<2x8x8x128xf32>
    %132 = vector.shape_cast %131 : vector<2x8x8x128xf32> to vector<128x128xf32>
    %133 = arith.truncf %132 : vector<128x128xf32> to vector<128x128xbf16>
    %c5_128 = arith.constant 5 : index
    %c0_129 = arith.constant 0 : index
    %c0_130 = arith.constant 0 : index
    %134 = vector.load %arg5[%c5_128, %c0_129, %c0_130] : memref<9x128x128xbf16, #tpu.memory_space<vmem>>, vector<1x128x128xbf16>
    %135 = vector.shape_cast %134 : vector<1x128x128xbf16> to vector<128x128xbf16>
    %cst_131 = arith.constant dense<0.000000e+00> : vector<128x128xf32>
    %136 = tpu.matmul %133, %135, %cst_131 {dimension_numbers = #tpu.dot_dimension_numbers<[1], [0], [0], [1], [0, 0, 1, 1], [], []>} : vector<128x128xbf16>, vector<128x128xbf16>, vector<128x128xf32> -> vector<128x128xf32>
    %137 = arith.addf %130, %136 : vector<128x128xf32>
    %c0_132 = arith.constant 0 : index
    %c2_133 = arith.constant 2 : index
    %c0_134 = arith.constant 0 : index
    %c0_135 = arith.constant 0 : index
    %138 = vector.load %arg12[%c0_132, %c2_133, %c0_134, %c0_135] : memref<2x10x10x128xf32, #tpu.memory_space<vmem>>, vector<2x8x8x128xf32>
    %139 = vector.shape_cast %138 : vector<2x8x8x128xf32> to vector<128x128xf32>
    %140 = arith.truncf %139 : vector<128x128xf32> to vector<128x128xbf16>
    %c6_136 = arith.constant 6 : index
    %c0_137 = arith.constant 0 : index
    %c0_138 = arith.constant 0 : index
    %141 = vector.load %arg5[%c6_136, %c0_137, %c0_138] : memref<9x128x128xbf16, #tpu.memory_space<vmem>>, vector<1x128x128xbf16>
    %142 = vector.shape_cast %141 : vector<1x128x128xbf16> to vector<128x128xbf16>
    %cst_139 = arith.constant dense<0.000000e+00> : vector<128x128xf32>
    %143 = tpu.matmul %140, %142, %cst_139 {dimension_numbers = #tpu.dot_dimension_numbers<[1], [0], [0], [1], [0, 0, 1, 1], [], []>} : vector<128x128xbf16>, vector<128x128xbf16>, vector<128x128xf32> -> vector<128x128xf32>
    %144 = arith.addf %137, %143 : vector<128x128xf32>
    %c0_140 = arith.constant 0 : index
    %c2_141 = arith.constant 2 : index
    %c1_142 = arith.constant 1 : index
    %c0_143 = arith.constant 0 : index
    %145 = vector.load %arg12[%c0_140, %c2_141, %c1_142, %c0_143] : memref<2x10x10x128xf32, #tpu.memory_space<vmem>>, vector<2x8x8x128xf32>
    %146 = vector.shape_cast %145 : vector<2x8x8x128xf32> to vector<128x128xf32>
    %147 = arith.truncf %146 : vector<128x128xf32> to vector<128x128xbf16>
    %c7_144 = arith.constant 7 : index
    %c0_145 = arith.constant 0 : index
    %c0_146 = arith.constant 0 : index
    %148 = vector.load %arg5[%c7_144, %c0_145, %c0_146] : memref<9x128x128xbf16, #tpu.memory_space<vmem>>, vector<1x128x128xbf16>
    %149 = vector.shape_cast %148 : vector<1x128x128xbf16> to vector<128x128xbf16>
    %cst_147 = arith.constant dense<0.000000e+00> : vector<128x128xf32>
    %150 = tpu.matmul %147, %149, %cst_147 {dimension_numbers = #tpu.dot_dimension_numbers<[1], [0], [0], [1], [0, 0, 1, 1], [], []>} : vector<128x128xbf16>, vector<128x128xbf16>, vector<128x128xf32> -> vector<128x128xf32>
    %151 = arith.addf %144, %150 : vector<128x128xf32>
    %c0_148 = arith.constant 0 : index
    %c2_149 = arith.constant 2 : index
    %c2_150 = arith.constant 2 : index
    %c0_151 = arith.constant 0 : index
    %152 = vector.load %arg12[%c0_148, %c2_149, %c2_150, %c0_151] : memref<2x10x10x128xf32, #tpu.memory_space<vmem>>, vector<2x8x8x128xf32>
    %153 = vector.shape_cast %152 : vector<2x8x8x128xf32> to vector<128x128xf32>
    %154 = arith.truncf %153 : vector<128x128xf32> to vector<128x128xbf16>
    %c8_152 = arith.constant 8 : index
    %c0_153 = arith.constant 0 : index
    %c0_154 = arith.constant 0 : index
    %155 = vector.load %arg5[%c8_152, %c0_153, %c0_154] : memref<9x128x128xbf16, #tpu.memory_space<vmem>>, vector<1x128x128xbf16>
    %156 = vector.shape_cast %155 : vector<1x128x128xbf16> to vector<128x128xbf16>
    %cst_155 = arith.constant dense<0.000000e+00> : vector<128x128xf32>
    %157 = tpu.matmul %154, %156, %cst_155 {dimension_numbers = #tpu.dot_dimension_numbers<[1], [0], [0], [1], [0, 0, 1, 1], [], []>} : vector<128x128xbf16>, vector<128x128xbf16>, vector<128x128xf32> -> vector<128x128xf32>
    %158 = arith.addf %151, %157 : vector<128x128xf32>
    %c0_156 = arith.constant 0 : index
    %c0_157 = arith.constant 0 : index
    %159 = vector.load %arg6[%c0_156, %c0_157] : memref<1x128xf32, #tpu.memory_space<vmem>>, vector<1x128xf32>
    %c0_158 = arith.constant 0 : index
    %c0_159 = arith.constant 0 : index
    %160 = vector.load %arg7[%c0_158, %c0_159] : memref<1x128xf32, #tpu.memory_space<vmem>>, vector<1x128xf32>
    %cst_160 = arith.constant dense<0.000000e+00> : vector<128xf32>
    %161 = vector.multi_reduction <add>, %158, %cst_160 [0] : vector<128x128xf32> to vector<128xf32>
    %162 = vector.shape_cast %161 : vector<128xf32> to vector<1x128xf32>
    %cst_161 = arith.constant 1.280000e+02 : f32
    %163 = vector.broadcast %cst_161 : f32 to vector<1x128xf32>
    %164 = arith.divf %162, %163 : vector<1x128xf32>
    %165 = arith.mulf %158, %158 : vector<128x128xf32>
    %cst_162 = arith.constant dense<0.000000e+00> : vector<128xf32>
    %166 = vector.multi_reduction <add>, %165, %cst_162 [0] : vector<128x128xf32> to vector<128xf32>
    %167 = vector.shape_cast %166 : vector<128xf32> to vector<1x128xf32>
    %cst_163 = arith.constant 1.280000e+02 : f32
    %168 = vector.broadcast %cst_163 : f32 to vector<1x128xf32>
    %169 = arith.divf %167, %168 : vector<1x128xf32>
    %170 = arith.mulf %164, %164 : vector<1x128xf32>
    %171 = arith.subf %169, %170 : vector<1x128xf32>
    %cst_164 = arith.constant 0.000000e+00 : f32
    %172 = vector.broadcast %cst_164 : f32 to vector<1x128xf32>
    %173 = arith.maximumf %171, %172 : vector<1x128xf32>
    %174 = vector.broadcast %164 : vector<1x128xf32> to vector<128x128xf32>
    %175 = arith.subf %158, %174 : vector<128x128xf32>
    %cst_165 = arith.constant 9.99999974E-6 : f32
    %176 = vector.broadcast %cst_165 : f32 to vector<1x128xf32>
    %177 = arith.addf %173, %176 : vector<1x128xf32>
    %178 = math.rsqrt %177 : vector<1x128xf32>
    %179 = arith.mulf %159, %178 : vector<1x128xf32>
    %180 = vector.broadcast %179 : vector<1x128xf32> to vector<128x128xf32>
    %181 = arith.mulf %175, %180 : vector<128x128xf32>
    %182 = vector.broadcast %160 : vector<1x128xf32> to vector<128x128xf32>
    %183 = arith.addf %181, %182 : vector<128x128xf32>
    %c0_166 = arith.constant 0 : index
    %c0_167 = arith.constant 0 : index
    %184 = vector.load %arg1[%c0_166, %c0_167] : memref<128x128xf32, #tpu.memory_space<vmem>>, vector<128x128xf32>
    %185 = arith.truncf %184 : vector<128x128xf32> to vector<128x128xbf16>
    %c0_168 = arith.constant 0 : index
    %c0_169 = arith.constant 0 : index
    %186 = vector.load %arg8[%c0_168, %c0_169] : memref<128x128xbf16, #tpu.memory_space<vmem>>, vector<128x128xbf16>
    %cst_170 = arith.constant dense<0.000000e+00> : vector<128x128xf32>
    %187 = tpu.matmul %185, %186, %cst_170 {dimension_numbers = #tpu.dot_dimension_numbers<[1], [0], [0], [1], [0, 0, 1, 1], [], []>} : vector<128x128xbf16>, vector<128x128xbf16>, vector<128x128xf32> -> vector<128x128xf32>
    %c0_171 = arith.constant 0 : index
    %c0_172 = arith.constant 0 : index
    %188 = vector.load %arg9[%c0_171, %c0_172] : memref<1x128xf32, #tpu.memory_space<vmem>>, vector<1x128xf32>
    %c0_173 = arith.constant 0 : index
    %c0_174 = arith.constant 0 : index
    %189 = vector.load %arg10[%c0_173, %c0_174] : memref<1x128xf32, #tpu.memory_space<vmem>>, vector<1x128xf32>
    %cst_175 = arith.constant dense<0.000000e+00> : vector<128xf32>
    %190 = vector.multi_reduction <add>, %187, %cst_175 [0] : vector<128x128xf32> to vector<128xf32>
    %191 = vector.shape_cast %190 : vector<128xf32> to vector<1x128xf32>
    %cst_176 = arith.constant 1.280000e+02 : f32
    %192 = vector.broadcast %cst_176 : f32 to vector<1x128xf32>
    %193 = arith.divf %191, %192 : vector<1x128xf32>
    %194 = arith.mulf %187, %187 : vector<128x128xf32>
    %cst_177 = arith.constant dense<0.000000e+00> : vector<128xf32>
    %195 = vector.multi_reduction <add>, %194, %cst_177 [0] : vector<128x128xf32> to vector<128xf32>
    %196 = vector.shape_cast %195 : vector<128xf32> to vector<1x128xf32>
    %cst_178 = arith.constant 1.280000e+02 : f32
    %197 = vector.broadcast %cst_178 : f32 to vector<1x128xf32>
    %198 = arith.divf %196, %197 : vector<1x128xf32>
    %199 = arith.mulf %193, %193 : vector<1x128xf32>
    %200 = arith.subf %198, %199 : vector<1x128xf32>
    %cst_179 = arith.constant 0.000000e+00 : f32
    %201 = vector.broadcast %cst_179 : f32 to vector<1x128xf32>
    %202 = arith.maximumf %200, %201 : vector<1x128xf32>
    %203 = vector.broadcast %193 : vector<1x128xf32> to vector<128x128xf32>
    %204 = arith.subf %187, %203 : vector<128x128xf32>
    %cst_180 = arith.constant 9.99999974E-6 : f32
    %205 = vector.broadcast %cst_180 : f32 to vector<1x128xf32>
    %206 = arith.addf %202, %205 : vector<1x128xf32>
    %207 = math.rsqrt %206 : vector<1x128xf32>
    %208 = arith.mulf %188, %207 : vector<1x128xf32>
    %209 = vector.broadcast %208 : vector<1x128xf32> to vector<128x128xf32>
    %210 = arith.mulf %204, %209 : vector<128x128xf32>
    %211 = vector.broadcast %189 : vector<1x128xf32> to vector<128x128xf32>
    %212 = arith.addf %210, %211 : vector<128x128xf32>
    %213 = arith.addf %183, %212 : vector<128x128xf32>
    %cst_181 = arith.constant 0.000000e+00 : f32
    %214 = vector.broadcast %cst_181 : f32 to vector<128x128xf32>
    %215 = arith.maximumf %213, %214 : vector<128x128xf32>
    %c0_182 = arith.constant 0 : index
    %c0_183 = arith.constant 0 : index
    %216 = vector.load %arg11[%c0_182, %c0_183] : memref<128x128xf32, #tpu.memory_space<vmem>>, vector<128x128xf32>
    tpu.vector_store %arg11[%c0_182, %c0_183], %215 {strides = array<i32>} : memref<128x128xf32, #tpu.memory_space<vmem>>, vector<128x128xf32>,
    return
  }
}

</mosaic_0001>

<llo_original>
// kernel: tpu_custom_call.1
$region0: #{tpu_custom_call.1}
  #allocation0 [shape = 'u32[]', space=smem, size = 0x4, offset = 0x4, fixed_abs, tag = 'smem constant byte address 0x4 - core index']
  #allocation1 [shape = 'u32[72,128]{1,0:T(1,128)}', space=vmem, size = 0x9000, scoped, tag = 'internal scratch']
  #allocation2 [shape = 'f32[2,10,10,128]{3,2,1,0:T(8,128)}', space=vmem, size = 0x28000, scoped, tag = 'scratch operand']
  %s0 = inlined_call_operand.vmem [shape: f32[8,9,9,128], index: 0, kind: input, shape index: {}]
  %s1 = inlined_call_operand.vmem [shape: f32[128,128], index: 1, kind: input, shape index: {}]
  %s2 = inlined_call_operand.vmem [shape: bf16[9,128,128], index: 2, kind: input, shape index: {}]
  %s3 = inlined_call_operand.vmem [shape: f32[1,128], index: 3, kind: input, shape index: {}]
  %s4 = inlined_call_operand.vmem [shape: f32[1,128], index: 4, kind: input, shape index: {}]
  %s5 = inlined_call_operand.vmem [shape: bf16[9,128,128], index: 5, kind: input, shape index: {}]
  %s6 = inlined_call_operand.vmem [shape: f32[1,128], index: 6, kind: input, shape index: {}]
  %s7 = inlined_call_operand.vmem [shape: f32[1,128], index: 7, kind: input, shape index: {}]
  %s8 = inlined_call_operand.vmem [shape: bf16[128,128], index: 8, kind: input, shape index: {}]
  %s9 = inlined_call_operand.vmem [shape: f32[1,128], index: 9, kind: input, shape index: {}]
  %s10 = inlined_call_operand.vmem [shape: f32[1,128], index: 10, kind: input, shape index: {}]
  %s11 = inlined_call_operand.hbm [shape: f32[128,128], index: 11, kind: output, shape index: {}]
  %s12 = sld [smem:[#allocation0]]
  $region54: #{tpu_custom_call.1} parent=0
    _
  %s14 = ssub.s32 1, %s12
  %s15 = scalar_select 0, %s14, %s12
  $region1: #{tpu_custom_call.1} parent=0
    #allocation3 [shape = 'u8[65536]{0}', space=vmem, size = 0x10000, scoped, tag = 'output window, operand 0, single buffered']
    #allocation4 [shape = 's32[1]{0}', space=sflag, size = 0x4, scoped, tag = 'scoped memory for tpu_custom_call.1']
    %16 = vsyncpa [#allocation4], 0
    // Predicated region
    $region2: #{tpu_custom_call.1} parent=1 // pred_check
      _
    $region3: #{tpu_custom_call.1} parent=1 // pred_check_branch
      %18 = sbr.rel (0) target = $region5
    $region4: #{tpu_custom_call.1} parent=1 // pred_region
      _
    $region5: #{tpu_custom_call.1} parent=1 // pred_fallthru
      _
    // Predicated region
    $region6: #{tpu_custom_call.1} parent=1 // pred_check
      _
    $region7: #{tpu_custom_call.1} parent=1 // pred_check_branch
      %20 = sbr.rel (0) target = $region9
    $region8: #{tpu_custom_call.1} parent=1 // pred_region
      _
    $region9: #{tpu_custom_call.1} parent=1 // pred_fallthru
      _
    // Predicated region
    $region10: #{tpu_custom_call.1} parent=1 // pred_check
      _
    $region11: #{tpu_custom_call.1} parent=1 // pred_check_branch
      %22 = sbr.rel (0) target = $region13
    $region12: #{tpu_custom_call.1} parent=1 // pred_region
      _
    $region13: #{tpu_custom_call.1} parent=1 // pred_fallthru
      _
    // Predicated region
    $region14: #{tpu_custom_call.1} parent=1 // pred_check
      _
    $region15: #{tpu_custom_call.1} parent=1 // pred_check_branch
      %24 = sbr.rel (0) target = $region17
    $region16: #{tpu_custom_call.1} parent=1 // pred_region
      _
    $region17: #{tpu_custom_call.1} parent=1 // pred_fallthru
      _
    // Predicated region
    $region18: #{tpu_custom_call.1} parent=1 // pred_check
      _
    $region19: #{tpu_custom_call.1} parent=1 // pred_check_branch
      %26 = sbr.rel (0) target = $region21
    $region20: #{tpu_custom_call.1} parent=1 // pred_region
      _
    $region21: #{tpu_custom_call.1} parent=1 // pred_fallthru
      _
    // Predicated region
    $region22: #{tpu_custom_call.1} parent=1 // pred_check
      _
    $region23: #{tpu_custom_call.1} parent=1 // pred_check_branch
      %28 = sbr.rel (0) target = $region25
    $region24: #{tpu_custom_call.1} parent=1 // pred_region
      _
    $region25: #{tpu_custom_call.1} parent=1 // pred_fallthru
      _
    // Predicated region
    $region26: #{tpu_custom_call.1} parent=1 // pred_check
      _
    $region27: #{tpu_custom_call.1} parent=1 // pred_check_branch
      %30 = sbr.rel (0) target = $region29
    $region28: #{tpu_custom_call.1} parent=1 // pred_region
      _
    $region29: #{tpu_custom_call.1} parent=1 // pred_fallthru
      _
    // Predicated region
    $region30: #{tpu_custom_call.1} parent=1 // pred_check
      _
    $region31: #{tpu_custom_call.1} parent=1 // pred_check_branch
      %32 = sbr.rel (0) target = $region33
    $region32: #{tpu_custom_call.1} parent=1 // pred_region
      _
    $region33: #{tpu_custom_call.1} parent=1 // pred_fallthru
      _
    // Predicated region
    $region34: #{tpu_custom_call.1} parent=1 // pred_check
      _
    $region35: #{tpu_custom_call.1} parent=1 // pred_check_branch
      %34 = sbr.rel (0) target = $region37
    $region36: #{tpu_custom_call.1} parent=1 // pred_region
      _
    $region37: #{tpu_custom_call.1} parent=1 // pred_fallthru
      _
    // Predicated region
    $region38: #{tpu_custom_call.1} parent=1 // pred_check
      _
    $region39: #{tpu_custom_call.1} parent=1 // pred_check_branch
      %36 = sbr.rel (0) target = $region41
    $region40: #{tpu_custom_call.1} parent=1 // pred_region
      _
    $region41: #{tpu_custom_call.1} parent=1 // pred_fallthru
      _
    // Predicated region
    $region42: #{tpu_custom_call.1} parent=1 // pred_check
      _
    $region43: #{tpu_custom_call.1} parent=1 // pred_check_branch
      %38 = sbr.rel (0) target = $region45
    $region44: #{tpu_custom_call.1} parent=1 // pred_region
      _
    $region45: #{tpu_custom_call.1} parent=1 // pred_fallthru
      _
    %v39 = vld [vmem:[%s0] sm:$0xff]
    %v40 = vld [vmem:[%s0 + $0x10] sm:$0xff]
    %v41 = vld [vmem:[%s0 + $0x20] sm:$0xff]
    %v42 = vld [vmem:[%s0 + $0x30] sm:$0xff]
    %v43 = vld [vmem:[%s0 + $0x40] sm:$0xff]
    %v44 = vld [vmem:[%s0 + $0x50] sm:$0xff]
    %v45 = vld [vmem:[%s0 + $0x60] sm:$0xff]
    %v46 = vld [vmem:[%s0 + $0x70] sm:$0xff]
    %v47 = vld [vmem:[%s0 + $0x90] sm:$0xff]
    %v48 = vld [vmem:[%s0 + $0xa0] sm:$0xff]
    %v49 = vld [vmem:[%s0 + $0xb0] sm:$0xff]
    %v50 = vld [vmem:[%s0 + $0xc0] sm:$0xff]
    %v51 = vld [vmem:[%s0 + $0xd0] sm:$0xff]
    %v52 = vld [vmem:[%s0 + $0xe0] sm:$0xff]
    %v53 = vld [vmem:[%s0 + $0xf0] sm:$0xff]
    %v54 = vld [vmem:[%s0 + $0x100] sm:$0xff]
    %v55 = vpack.c.bf16 %v40, %v39
    %v56 = vpack.c.bf16 %v42, %v41
    %v57 = vpack.c.bf16 %v44, %v43
    %v58 = vpack.c.bf16 %v46, %v45
    %v59 = vpack.c.bf16 %v48, %v47
    %v60 = vpack.c.bf16 %v50, %v49
    %v61 = vpack.c.bf16 %v52, %v51
    %v62 = vpack.c.bf16 %v54, %v53
    %v63 = vld [vmem:[%s2] sm:$0xf]
    %v64 = vld [vmem:[%s2 + $0x4] sm:$0xf]
    %v65 = vld [vmem:[%s2 + $0x8] sm:$0xf]
    %v66 = vld [vmem:[%s2 + $0xc] sm:$0xf]
    %v67 = vld [vmem:[%s2 + $0x10] sm:$0xf]
    %v68 = vld [vmem:[%s2 + $0x14] sm:$0xf]
    %v69 = vld [vmem:[%s2 + $0x18] sm:$0xf]
    %v70 = vld [vmem:[%s2 + $0x1c] sm:$0xf]
    %v71 = vld [vmem:[%s2 + $0x20] sm:$0xf]
    %v72 = vld [vmem:[%s2 + $0x24] sm:$0xf]
    %v73 = vld [vmem:[%s2 + $0x28] sm:$0xf]
    %v74 = vld [vmem:[%s2 + $0x2c] sm:$0xf]
    %v75 = vld [vmem:[%s2 + $0x30] sm:$0xf]
    %v76 = vld [vmem:[%s2 + $0x34] sm:$0xf]
    %v77 = vld [vmem:[%s2 + $0x38] sm:$0xf]
    %v78 = vld [vmem:[%s2 + $0x3c] sm:$0xf]
    %s79 = scalar_lea.vmem %s0, 288
    %v80 = vld [vmem:[%s79] sm:$0xff]
    %v81 = vld [vmem:[%s79 + $0x10] sm:$0xff]
    %v82 = vld [vmem:[%s79 + $0x20] sm:$0xff]
    %v83 = vld [vmem:[%s79 + $0x30] sm:$0xff]
    %v84 = vld [vmem:[%s79 + $0x40] sm:$0xff]
    %v85 = vld [vmem:[%s79 + $0x50] sm:$0xff]
    %v86 = vld [vmem:[%s79 + $0x60] sm:$0xff]
    %v87 = vld [vmem:[%s79 + $0x70] sm:$0xff]
    %v88 = vld [vmem:[%s79 + $0x90] sm:$0xff]
    %v89 = vld [vmem:[%s79 + $0xa0] sm:$0xff]
    %v90 = vld [vmem:[%s79 + $0xb0] sm:$0xff]
    %v91 = vld [vmem:[%s79 + $0xc0] sm:$0xff]
    %v92 = vld [vmem:[%s79 + $0xd0] sm:$0xff]
    %v93 = vld [vmem:[%s79 + $0xe0] sm:$0xff]
    %v94 = vld [vmem:[%s79 + $0xf0] sm:$0xff]
    %v95 = vld [vmem:[%s79 + $0x100] sm:$0xff]
    %v96 = vpack.c.bf16 %v81, %v80
    %v97 = vpack.c.bf16 %v83, %v82
    %v98 = vpack.c.bf16 %v85, %v84
    %v99 = vpack.c.bf16 %v87, %v86
    %v100 = vpack.c.bf16 %v89, %v88
    %v101 = vpack.c.bf16 %v91, %v90
    %v102 = vpack.c.bf16 %v93, %v92
    %v103 = vpack.c.bf16 %v95, %v94
    %s104 = scalar_lea.vmem %s2, 64
    %v105 = vld [vmem:[%s104] sm:$0xf]
    %v106 = vld [vmem:[%s104 + $0x4] sm:$0xf]
    %v107 = vld [vmem:[%s104 + $0x8] sm:$0xf]
    %v108 = vld [vmem:[%s104 + $0xc] sm:$0xf]
    %v109 = vld [vmem:[%s104 + $0x10] sm:$0xf]
    %v110 = vld [vmem:[%s104 + $0x14] sm:$0xf]
    %v111 = vld [vmem:[%s104 + $0x18] sm:$0xf]
    %v112 = vld [vmem:[%s104 + $0x1c] sm:$0xf]
    %v113 = vld [vmem:[%s104 + $0x20] sm:$0xf]
    %v114 = vld [vmem:[%s104 + $0x24] sm:$0xf]
    %v115 = vld [vmem:[%s104 + $0x28] sm:$0xf]
    %v116 = vld [vmem:[%s104 + $0x2c] sm:$0xf]
    %v117 = vld [vmem:[%s104 + $0x30] sm:$0xf]
    %v118 = vld [vmem:[%s104 + $0x34] sm:$0xf]
    %v119 = vld [vmem:[%s104 + $0x38] sm:$0xf]
    %v120 = vld [vmem:[%s104 + $0x3c] sm:$0xf]
    %v137 = vunpack.c.l.b16 %v105
    %v138 = vunpack.c.l.b16 %v106
    %v139 = vunpack.c.l.b16 %v107
    %v140 = vunpack.c.l.b16 %v108
    %v141 = vunpack.c.l.b16 %v109
    %v142 = vunpack.c.l.b16 %v110
    %v143 = vunpack.c.l.b16 %v111
    %v144 = vunpack.c.l.b16 %v112
    %v145 = vunpack.c.l.b16 %v113
    %v146 = vunpack.c.l.b16 %v114
    %v147 = vunpack.c.l.b16 %v115
    %v148 = vunpack.c.l.b16 %v116
    %v149 = vunpack.c.l.b16 %v117
    %v150 = vunpack.c.l.b16 %v118
    %v151 = vunpack.c.l.b16 %v119
    %v152 = vunpack.c.l.b16 %v120
    %v153 = vpack.c.b16 %v138, %v137
    %v154 = vpack.c.b16 %v140, %v139
    %v155 = vpack.c.b16 %v142, %v141
    %v156 = vpack.c.b16 %v144, %v143
    %v157 = vpack.c.b16 %v146, %v145
    %v158 = vpack.c.b16 %v148, %v147
    %v159 = vpack.c.b16 %v150, %v149
    %v160 = vpack.c.b16 %v152, %v151
    %169 = vmatpush.bf16.msra.mxu0 %v160
    %170 = vmatpush.bf16.msra.mxu0 %v159
    %171 = vmatpush.bf16.msra.mxu0 %v158
    %172 = vmatpush.bf16.msra.mxu0 %v157
    %173 = vmatpush.bf16.msra.mxu0 %v156
    %174 = vmatpush.bf16.msra.mxu0 %v155
    %175 = vmatpush.bf16.msra.mxu0 %v154
    %176 = vmatpush.bf16.msra.mxu0 %v153
    %177 = vmatmul.bf16.gmra.mxu0 %v96
    %v178 = vpop.f32.mrf.mxu0
    %v179 = vadd.f32 0.0, %v178
    %v180 = vpop.f32.mrf.mxu0
    %v181 = vadd.f32 0.0, %v180
    %182 = vmatmul.bf16.gmra.mxu0 %v97
    %v183 = vpop.f32.mrf.mxu0
    %v184 = vadd.f32 0.0, %v183
    %v185 = vpop.f32.mrf.mxu0
    %v186 = vadd.f32 0.0, %v185
    %187 = vmatmul.bf16.gmra.mxu0 %v98
    %v188 = vpop.f32.mrf.mxu0
    %v189 = vadd.f32 0.0, %v188
    %v190 = vpop.f32.mrf.mxu0
    %v191 = vadd.f32 0.0, %v190
    %192 = vmatmul.bf16.gmra.mxu0 %v99
    %v193 = vpop.f32.mrf.mxu0
    %v194 = vadd.f32 0.0, %v193
    %v195 = vpop.f32.mrf.mxu0
    %v196 = vadd.f32 0.0, %v195
    %197 = vmatmul.bf16.gmra.mxu0 %v100
    %v198 = vpop.f32.mrf.mxu0
    %v199 = vadd.f32 0.0, %v198
    %v200 = vpop.f32.mrf.mxu0
    %v201 = vadd.f32 0.0, %v200
    %202 = vmatmul.bf16.gmra.mxu0 %v101
    %v203 = vpop.f32.mrf.mxu0
    %v204 = vadd.f32 0.0, %v203
    %v205 = vpop.f32.mrf.mxu0
    %v206 = vadd.f32 0.0, %v205
    %207 = vmatmul.bf16.gmra.mxu0 %v102
    %v208 = vpop.f32.mrf.mxu0
    %v209 = vadd.f32 0.0, %v208
    %v210 = vpop.f32.mrf.mxu0
    %v211 = vadd.f32 0.0, %v210
    %212 = vmatmul.bf16.gmra.mxu0 %v103
    %v213 = vpop.f32.mrf.mxu0
    %v214 = vadd.f32 0.0, %v213
    %v215 = vpop.f32.mrf.mxu0
    %v216 = vadd.f32 0.0, %v215
    %217 = vdwg.mxu0
    %v234 = vunpack.c.l.b16 %v63
    %v235 = vunpack.c.l.b16 %v64
    %v236 = vunpack.c.l.b16 %v65
    %v237 = vunpack.c.l.b16 %v66
    %v238 = vunpack.c.l.b16 %v67
    %v239 = vunpack.c.l.b16 %v68
    %v240 = vunpack.c.l.b16 %v69
    %v241 = vunpack.c.l.b16 %v70
    %v242 = vunpack.c.l.b16 %v71
    %v243 = vunpack.c.l.b16 %v72
    %v244 = vunpack.c.l.b16 %v73
    %v245 = vunpack.c.l.b16 %v74
    %v246 = vunpack.c.l.b16 %v75
    %v247 = vunpack.c.l.b16 %v76
    %v248 = vunpack.c.l.b16 %v77
    %v249 = vunpack.c.l.b16 %v78
    %v250 = vpack.c.b16 %v235, %v234
    %v251 = vpack.c.b16 %v237, %v236
    %v252 = vpack.c.b16 %v239, %v238
    %v253 = vpack.c.b16 %v241, %v240
    %v254 = vpack.c.b16 %v243, %v242
    %v255 = vpack.c.b16 %v245, %v244
    %v256 = vpack.c.b16 %v247, %v246
    %v257 = vpack.c.b16 %v249, %v248
    %266 = vmatpush.bf16.msra.mxu0 %v257
    %267 = vmatpush.bf16.msra.mxu0 %v256
    %268 = vmatpush.bf16.msra.mxu0 %v255
    %269 = vmatpush.bf16.msra.mxu0 %v254
    %270 = vmatpush.bf16.msra.mxu0 %v253
    %271 = vmatpush.bf16.msra.mxu0 %v252
    %272 = vmatpush.bf16.msra.mxu0 %v251
    %273 = vmatpush.bf16.msra.mxu0 %v250
    %274 = vmatmul.bf16.gmra.mxu0 %v55
    %v275 = vpop.f32.mrf.mxu0
    %v276 = vadd.f32 %v179, %v275
    %v277 = vpop.f32.mrf.mxu0
    %v278 = vadd.f32 %v181, %v277
    %279 = vmatmul.bf16.gmra.mxu0 %v56
    %v280 = vpop.f32.mrf.mxu0
    %v281 = vadd.f32 %v184, %v280
    %v282 = vpop.f32.mrf.mxu0
    %v283 = vadd.f32 %v186, %v282
    %284 = vmatmul.bf16.gmra.mxu0 %v57
    %v285 = vpop.f32.mrf.mxu0
    %v286 = vadd.f32 %v189, %v285
    %v287 = vpop.f32.mrf.mxu0
    %v288 = vadd.f32 %v191, %v287
    %289 = vmatmul.bf16.gmra.mxu0 %v58
    %v290 = vpop.f32.mrf.mxu0
    %v291 = vadd.f32 %v194, %v290
    %v292 = vpop.f32.mrf.mxu0
    %v293 = vadd.f32 %v196, %v292
    %294 = vmatmul.bf16.gmra.mxu0 %v59
    %v295 = vpop.f32.mrf.mxu0
    %v296 = vadd.f32 %v199, %v295
    %v297 = vpop.f32.mrf.mxu0
    %v298 = vadd.f32 %v201, %v297
    %299 = vmatmul.bf16.gmra.mxu0 %v60
    %v300 = vpop.f32.mrf.mxu0
    %v301 = vadd.f32 %v204, %v300
    %v302 = vpop.f32.mrf.mxu0
    %v303 = vadd.f32 %v206, %v302
    %304 = vmatmul.bf16.gmra.mxu0 %v61
    %v305 = vpop.f32.mrf.mxu0
    %v306 = vadd.f32 %v209, %v305
    %v307 = vpop.f32.mrf.mxu0
    %v308 = vadd.f32 %v211, %v307
    %309 = vmatmul.bf16.gmra.mxu0 %v62
    %v310 = vpop.f32.mrf.mxu0
    %v311 = vadd.f32 %v214, %v310
    %v312 = vpop.f32.mrf.mxu0
    %v313 = vadd.f32 %v216, %v312
    %314 = vdwg.mxu0
    %v315 = vld [vmem:[%s0 + $0x1] sm:$0xff]
    %v316 = vld [vmem:[%s0 + $0x11] sm:$0xff]
    %v317 = vld [vmem:[%s0 + $0x21] sm:$0xff]
    %v318 = vld [vmem:[%s0 + $0x31] sm:$0xff]
    %v319 = vld [vmem:[%s0 + $0x41] sm:$0xff]
    %v320 = vld [vmem:[%s0 + $0x51] sm:$0xff]
    %v321 = vld [vmem:[%s0 + $0x61] sm:$0xff]
    %v322 = vld [vmem:[%s0 + $0x71] sm:$0xff]
    %v323 = vld [vmem:[%s0 + $0x91] sm:$0xff]
    %v324 = vld [vmem:[%s0 + $0xa1] sm:$0xff]
    %v325 = vld [vmem:[%s0 + $0xb1] sm:$0xff]
    %v326 = vld [vmem:[%s0 + $0xc1] sm:$0xff]
    %v327 = vld [vmem:[%s0 + $0xd1] sm:$0xff]
    %v328 = vld [vmem:[%s0 + $0xe1] sm:$0xff]
    %v329 = vld [vmem:[%s0 + $0xf1] sm:$0xff]
    %v330 = vld [vmem:[%s0 + $0x101] sm:$0xff]
    %v331 = vpack.c.bf16 %v316, %v315
    %v332 = vpack.c.bf16 %v318, %v317
    %v333 = vpack.c.bf16 %v320, %v319
    %v334 = vpack.c.bf16 %v322, %v321
    %v335 = vpack.c.bf16 %v324, %v323
    %v336 = vpack.c.bf16 %v326, %v325
    %v337 = vpack.c.bf16 %v328, %v327
    %v338 = vpack.c.bf16 %v330, %v329
    %s339 = scalar_lea.vmem %s2, 128
    %v340 = vld [vmem:[%s339] sm:$0xf]
    %v341 = vld [vmem:[%s339 + $0x4] sm:$0xf]
    %v342 = vld [vmem:[%s339 + $0x8] sm:$0xf]
    %v343 = vld [vmem:[%s339 + $0xc] sm:$0xf]
    %v344 = vld [vmem:[%s339 + $0x10] sm:$0xf]
    %v345 = vld [vmem:[%s339 + $0x14] sm:$0xf]
    %v346 = vld [vmem:[%s339 + $0x18] sm:$0xf]
    %v347 = vld [vmem:[%s339 + $0x1c] sm:$0xf]
    %v348 = vld [vmem:[%s339 + $0x20] sm:$0xf]
    %v349 = vld [vmem:[%s339 + $0x24] sm:$0xf]
    %v350 = vld [vmem:[%s339 + $0x28] sm:$0xf]
    %v351 = vld [vmem:[%s339 + $0x2c] sm:$0xf]
    %v352 = vld [vmem:[%s339 + $0x30] sm:$0xf]
    %v353 = vld [vmem:[%s339 + $0x34] sm:$0xf]
    %v354 = vld [vmem:[%s339 + $0x38] sm:$0xf]
    %v355 = vld [vmem:[%s339 + $0x3c] sm:$0xf]
    %v372 = vunpack.c.l.b16 %v340
    %v373 = vunpack.c.l.b16 %v341
    %v374 = vunpack.c.l.b16 %v342
    %v375 = vunpack.c.l.b16 %v343
    %v376 = vunpack.c.l.b16 %v344
    %v377 = vunpack.c.l.b16 %v345
    %v378 = vunpack.c.l.b16 %v346
    %v379 = vunpack.c.l.b16 %v347
    %v380 = vunpack.c.l.b16 %v348
    %v381 = vunpack.c.l.b16 %v349
    %v382 = vunpack.c.l.b16 %v350
    %v383 = vunpack.c.l.b16 %v351
    %v384 = vunpack.c.l.b16 %v352
    %v385 = vunpack.c.l.b16 %v353
    %v386 = vunpack.c.l.b16 %v354
    %v387 = vunpack.c.l.b16 %v355
    %v388 = vpack.c.b16 %v373, %v372
    %v389 = vpack.c.b16 %v375, %v374
    %v390 = vpack.c.b16 %v377, %v376
    %v391 = vpack.c.b16 %v379, %v378
    %v392 = vpack.c.b16 %v381, %v380
    %v393 = vpack.c.b16 %v383, %v382
    %v394 = vpack.c.b16 %v385, %v384
    %v395 = vpack.c.b16 %v387, %v386
    %404 = vmatpush.bf16.msra.mxu0 %v395
    %405 = vmatpush.bf16.msra.mxu0 %v394
    %406 = vmatpush.bf16.msra.mxu0 %v393
    %407 = vmatpush.bf16.msra.mxu0 %v392
    %408 = vmatpush.bf16.msra.mxu0 %v391
    %409 = vmatpush.bf16.msra.mxu0 %v390
    %410 = vmatpush.bf16.msra.mxu0 %v389
    %411 = vmatpush.bf16.msra.mxu0 %v388
    %412 = vmatmul.bf16.gmra.mxu0 %v331
    %v413 = vpop.f32.mrf.mxu0
    %v414 = vadd.f32 0.0, %v413
    %v415 = vpop.f32.mrf.mxu0
    %v416 = vadd.f32 0.0, %v415
    %417 = vmatmul.bf16.gmra.mxu0 %v332
    %v418 = vpop.f32.mrf.mxu0
    %v419 = vadd.f32 0.0, %v418
    %v420 = vpop.f32.mrf.mxu0
    %v421 = vadd.f32 0.0, %v420
    %422 = vmatmul.bf16.gmra.mxu0 %v333
    %v423 = vpop.f32.mrf.mxu0
    %v424 = vadd.f32 0.0, %v423
    %v425 = vpop.f32.mrf.mxu0
    %v426 = vadd.f32 0.0, %v425
    %427 = vmatmul.bf16.gmra.mxu0 %v334
    %v428 = vpop.f32.mrf.mxu0
    %v429 = vadd.f32 0.0, %v428
    %v430 = vpop.f32.mrf.mxu0
    %v431 = vadd.f32 0.0, %v430
    %432 = vmatmul.bf16.gmra.mxu0 %v335
    %v433 = vpop.f32.mrf.mxu0
    %v434 = vadd.f32 0.0, %v433
    %v435 = vpop.f32.mrf.mxu0
    %v436 = vadd.f32 0.0, %v435
    %437 = vmatmul.bf16.gmra.mxu0 %v336
    %v438 = vpop.f32.mrf.mxu0
    %v439 = vadd.f32 0.0, %v438
    %v440 = vpop.f32.mrf.mxu0
    %v441 = vadd.f32 0.0, %v440
    %442 = vmatmul.bf16.gmra.mxu0 %v337
    %v443 = vpop.f32.mrf.mxu0
    %v444 = vadd.f32 0.0, %v443
    %v445 = vpop.f32.mrf.mxu0
    %v446 = vadd.f32 0.0, %v445
    %447 = vmatmul.bf16.gmra.mxu0 %v338
    %v448 = vpop.f32.mrf.mxu0
    %v449 = vadd.f32 0.0, %v448
    %v450 = vpop.f32.mrf.mxu0
    %v451 = vadd.f32 0.0, %v450
    %452 = vdwg.mxu0
    %v453 = vadd.f32 %v276, %v414
    %v454 = vadd.f32 %v278, %v416
    %v455 = vadd.f32 %v281, %v419
    %v456 = vadd.f32 %v283, %v421
    %v457 = vadd.f32 %v286, %v424
    %v458 = vadd.f32 %v288, %v426
    %v459 = vadd.f32 %v291, %v429
    %v460 = vadd.f32 %v293, %v431
    %v461 = vadd.f32 %v296, %v434
    %v462 = vadd.f32 %v298, %v436
    %v463 = vadd.f32 %v301, %v439
    %v464 = vadd.f32 %v303, %v441
    %v465 = vadd.f32 %v306, %v444
    %v466 = vadd.f32 %v308, %v446
    %v467 = vadd.f32 %v311, %v449
    %v468 = vadd.f32 %v313, %v451
    %s469 = scalar_lea.vmem %s0, 576
    %v470 = vld [vmem:[%s469] sm:$0xff]
    %v471 = vld [vmem:[%s469 + $0x10] sm:$0xff]
    %v472 = vld [vmem:[%s469 + $0x20] sm:$0xff]
    %v473 = vld [vmem:[%s469 + $0x30] sm:$0xff]
    %v474 = vld [vmem:[%s469 + $0x40] sm:$0xff]
    %v475 = vld [vmem:[%s469 + $0x50] sm:$0xff]
    %v476 = vld [vmem:[%s469 + $0x60] sm:$0xff]
    %v477 = vld [vmem:[%s469 + $0x70] sm:$0xff]
    %v478 = vld [vmem:[%s469 + $0x90] sm:$0xff]
    %v479 = vld [vmem:[%s469 + $0xa0] sm:$0xff]
    %v480 = vld [vmem:[%s469 + $0xb0] sm:$0xff]
    %v481 = vld [vmem:[%s469 + $0xc0] sm:$0xff]
    %v482 = vld [vmem:[%s469 + $0xd0] sm:$0xff]
    %v483 = vld [vmem:[%s469 + $0xe0] sm:$0xff]
    %v484 = vld [vmem:[%s469 + $0xf0] sm:$0xff]
    %v485 = vld [vmem:[%s469 + $0x100] sm:$0xff]
    %v486 = vpack.c.bf16 %v471, %v470
    %v487 = vpack.c.bf16 %v473, %v472
    %v488 = vpack.c.bf16 %v475, %v474
    %v489 = vpack.c.bf16 %v477, %v476
    %v490 = vpack.c.bf16 %v479, %v478
    %v491 = vpack.c.bf16 %v481, %v480
    %v492 = vpack.c.bf16 %v483, %v482
    %v493 = vpack.c.bf16 %v485, %v484
    %s494 = scalar_lea.vmem %s2, 192
    %v495 = vld [vmem:[%s494] sm:$0xf]
    %v496 = vld [vmem:[%s494 + $0x4] sm:$0xf]
    %v497 = vld [vmem:[%s494 + $0x8] sm:$0xf]
    %v498 = vld [vmem:[%s494 + $0xc] sm:$0xf]
    %v499 = vld [vmem:[%s494 + $0x10] sm:$0xf]
    %v500 = vld [vmem:[%s494 + $0x14] sm:$0xf]
    %v501 = vld [vmem:[%s494 + $0x18] sm:$0xf]
    %v502 = vld [vmem:[%s494 + $0x1c] sm:$0xf]
    %v503 = vld [vmem:[%s494 + $0x20] sm:$0xf]
    %v504 = vld [vmem:[%s494 + $0x24] sm:$0xf]
    %v505 = vld [vmem:[%s494 + $0x28] sm:$0xf]
    %v506 = vld [vmem:[%s494 + $0x2c] sm:$0xf]
    %v507 = vld [vmem:[%s494 + $0x30] sm:$0xf]
    %v508 = vld [vmem:[%s494 + $0x34] sm:$0xf]
    %v509 = vld [vmem:[%s494 + $0x38] sm:$0xf]
    %v510 = vld [vmem:[%s494 + $0x3c] sm:$0xf]
    %v527 = vunpack.c.l.b16 %v495
    %v528 = vunpack.c.l.b16 %v496
    %v529 = vunpack.c.l.b16 %v497
    %v530 = vunpack.c.l.b16 %v498
    %v531 = vunpack.c.l.b16 %v499
    %v532 = vunpack.c.l.b16 %v500
    %v533 = vunpack.c.l.b16 %v501
    %v534 = vunpack.c.l.b16 %v502
    %v535 = vunpack.c.l.b16 %v503
    %v536 = vunpack.c.l.b16 %v504
    %v537 = vunpack.c.l.b16 %v505
    %v538 = vunpack.c.l.b16 %v506
    %v539 = vunpack.c.l.b16 %v507
    %v540 = vunpack.c.l.b16 %v508
    %v541 = vunpack.c.l.b16 %v509
    %v542 = vunpack.c.l.b16 %v510
    %v543 = vpack.c.b16 %v528, %v527
    %v544 = vpack.c.b16 %v530, %v529
    %v545 = vpack.c.b16 %v532, %v531
    %v546 = vpack.c.b16 %v534, %v533
    %v547 = vpack.c.b16 %v536, %v535
    %v548 = vpack.c.b16 %v538, %v537
    %v549 = vpack.c.b16 %v540, %v539
    %v550 = vpack.c.b16 %v542, %v541
    %559 = vmatpush.bf16.msra.mxu0 %v550
    %560 = vmatpush.bf16.msra.mxu0 %v549
    %561 = vmatpush.bf16.msra.mxu0 %v548
    %562 = vmatpush.bf16.msra.mxu0 %v547
    %563 = vmatpush.bf16.msra.mxu0 %v546
    %564 = vmatpush.bf16.msra.mxu0 %v545
    %565 = vmatpush.bf16.msra.mxu0 %v544
    %566 = vmatpush.bf16.msra.mxu0 %v543
    %567 = vmatmul.bf16.gmra.mxu0 %v486
    %v568 = vpop.f32.mrf.mxu0
    %v569 = vadd.f32 0.0, %v568
    %v570 = vpop.f32.mrf.mxu0
    %v571 = vadd.f32 0.0, %v570
    %572 = vmatmul.bf16.gmra.mxu0 %v487
    %v573 = vpop.f32.mrf.mxu0
    %v574 = vadd.f32 0.0, %v573
    %v575 = vpop.f32.mrf.mxu0
    %v576 = vadd.f32 0.0, %v575
    %577 = vmatmul.bf16.gmra.mxu0 %v488
    %v578 = vpop.f32.mrf.mxu0
    %v579 = vadd.f32 0.0, %v578
    %v580 = vpop.f32.mrf.mxu0
    %v581 = vadd.f32 0.0, %v580
    %582 = vmatmul.bf16.gmra.mxu0 %v489
    %v583 = vpop.f32.mrf.mxu0
    %v584 = vadd.f32 0.0, %v583
    %v585 = vpop.f32.mrf.mxu0
    %v586 = vadd.f32 0.0, %v585
    %587 = vmatmul.bf16.gmra.mxu0 %v490
    %v588 = vpop.f32.mrf.mxu0
    %v589 = vadd.f32 0.0, %v588
    %v590 = vpop.f32.mrf.mxu0
    %v591 = vadd.f32 0.0, %v590
    %592 = vmatmul.bf16.gmra.mxu0 %v491
    %v593 = vpop.f32.mrf.mxu0
    %v594 = vadd.f32 0.0, %v593
    %v595 = vpop.f32.mrf.mxu0
    %v596 = vadd.f32 0.0, %v595
    %597 = vmatmul.bf16.gmra.mxu0 %v492
    %v598 = vpop.f32.mrf.mxu0
    %v599 = vadd.f32 0.0, %v598
    %v600 = vpop.f32.mrf.mxu0
    %v601 = vadd.f32 0.0, %v600
    %602 = vmatmul.bf16.gmra.mxu0 %v493
    %v603 = vpop.f32.mrf.mxu0
    %v604 = vadd.f32 0.0, %v603
    %v605 = vpop.f32.mrf.mxu0
    %v606 = vadd.f32 0.0, %v605
    %607 = vdwg.mxu0
    %v608 = vadd.f32 %v453, %v569
    %v609 = vadd.f32 %v454, %v571
    %v610 = vadd.f32 %v455, %v574
    %v611 = vadd.f32 %v456, %v576
    %v612 = vadd.f32 %v457, %v579
    %v613 = vadd.f32 %v458, %v581
    %v614 = vadd.f32 %v459, %v584
    %v615 = vadd.f32 %v460, %v586
    %v616 = vadd.f32 %v461, %v589
    %v617 = vadd.f32 %v462, %v591
    %v618 = vadd.f32 %v463, %v594
    %v619 = vadd.f32 %v464, %v596
    %v620 = vadd.f32 %v465, %v599
    %v621 = vadd.f32 %v466, %v601
    %v622 = vadd.f32 %v467, %v604
    %v623 = vadd.f32 %v468, %v606
    %s624 = scalar_lea.vmem %s0, 864
    %v625 = vld [vmem:[%s624] sm:$0xff]
    %v626 = vld [vmem:[%s624 + $0x10] sm:$0xff]
    %v627 = vld [vmem:[%s624 + $0x20] sm:$0xff]
    %v628 = vld [vmem:[%s624 + $0x30] sm:$0xff]
    %v629 = vld [vmem:[%s624 + $0x40] sm:$0xff]
    %v630 = vld [vmem:[%s624 + $0x50] sm:$0xff]
    %v631 = vld [vmem:[%s624 + $0x60] sm:$0xff]
    %v632 = vld [vmem:[%s624 + $0x70] sm:$0xff]
    %v633 = vld [vmem:[%s624 + $0x90] sm:$0xff]
    %v634 = vld [vmem:[%s624 + $0xa0] sm:$0xff]
    %v635 = vld [vmem:[%s624 + $0xb0] sm:$0xff]
    %v636 = vld [vmem:[%s624 + $0xc0] sm:$0xff]
    %v637 = vld [vmem:[%s624 + $0xd0] sm:$0xff]
    %v638 = vld [vmem:[%s624 + $0xe0] sm:$0xff]
    %v639 = vld [vmem:[%s624 + $0xf0] sm:$0xff]
    %v640 = vld [vmem:[%s624 + $0x100] sm:$0xff]
    %v641 = vpack.c.bf16 %v626, %v625
    %v642 = vpack.c.bf16 %v628, %v627
    %v643 = vpack.c.bf16 %v630, %v629
    %v644 = vpack.c.bf16 %v632, %v631
    %v645 = vpack.c.bf16 %v634, %v633
    %v646 = vpack.c.bf16 %v636, %v635
    %v647 = vpack.c.bf16 %v638, %v637
    %v648 = vpack.c.bf16 %v640, %v639
    %s649 = scalar_lea.vmem %s2, 256
    %v650 = vld [vmem:[%s649] sm:$0xf]
    %v651 = vld [vmem:[%s649 + $0x4] sm:$0xf]
    %v652 = vld [vmem:[%s649 + $0x8] sm:$0xf]
    %v653 = vld [vmem:[%s649 + $0xc] sm:$0xf]
    %v654 = vld [vmem:[%s649 + $0x10] sm:$0xf]
    %v655 = vld [vmem:[%s649 + $0x14] sm:$0xf]
    %v656 = vld [vmem:[%s649 + $0x18] sm:$0xf]
    %v657 = vld [vmem:[%s649 + $0x1c] sm:$0xf]
    %v658 = vld [vmem:[%s649 + $0x20] sm:$0xf]
    %v659 = vld [vmem:[%s649 + $0x24] sm:$0xf]
    %v660 = vld [vmem:[%s649 + $0x28] sm:$0xf]
    %v661 = vld [vmem:[%s649 + $0x2c] sm:$0xf]
    %v662 = vld [vmem:[%s649 + $0x30] sm:$0xf]
    %v663 = vld [vmem:[%s649 + $0x34] sm:$0xf]
    %v664 = vld [vmem:[%s649 + $0x38] sm:$0xf]
    %v665 = vld [vmem:[%s649 + $0x3c] sm:$0xf]
    %v682 = vunpack.c.l.b16 %v650
    %v683 = vunpack.c.l.b16 %v651
    %v684 = vunpack.c.l.b16 %v652
    %v685 = vunpack.c.l.b16 %v653
    %v686 = vunpack.c.l.b16 %v654
    %v687 = vunpack.c.l.b16 %v655
    %v688 = vunpack.c.l.b16 %v656
    %v689 = vunpack.c.l.b16 %v657
    %v690 = vunpack.c.l.b16 %v658
    %v691 = vunpack.c.l.b16 %v659
    %v692 = vunpack.c.l.b16 %v660
    %v693 = vunpack.c.l.b16 %v661
    %v694 = vunpack.c.l.b16 %v662
    %v695 = vunpack.c.l.b16 %v663
    %v696 = vunpack.c.l.b16 %v664
    %v697 = vunpack.c.l.b16 %v665
    %v698 = vpack.c.b16 %v683, %v682
    %v699 = vpack.c.b16 %v685, %v684
    %v700 = vpack.c.b16 %v687, %v686
    %v701 = vpack.c.b16 %v689, %v688
    %v702 = vpack.c.b16 %v691, %v690
    %v703 = vpack.c.b16 %v693, %v692
    %v704 = vpack.c.b16 %v695, %v694
    %v705 = vpack.c.b16 %v697, %v696
    %714 = vmatpush.bf16.msra.mxu0 %v705
    %715 = vmatpush.bf16.msra.mxu0 %v704
    %716 = vmatpush.bf16.msra.mxu0 %v703
    %717 = vmatpush.bf16.msra.mxu0 %v702
    %718 = vmatpush.bf16.msra.mxu0 %v701
    %719 = vmatpush.bf16.msra.mxu0 %v700
    %720 = vmatpush.bf16.msra.mxu0 %v699
    %721 = vmatpush.bf16.msra.mxu0 %v698
    %722 = vmatmul.bf16.gmra.mxu0 %v641
    %v723 = vpop.f32.mrf.mxu0
    %v724 = vadd.f32 0.0, %v723
    %v725 = vpop.f32.mrf.mxu0
    %v726 = vadd.f32 0.0, %v725
    %727 = vmatmul.bf16.gmra.mxu0 %v642
    %v728 = vpop.f32.mrf.mxu0
    %v729 = vadd.f32 0.0, %v728
    %v730 = vpop.f32.mrf.mxu0
    %v731 = vadd.f32 0.0, %v730
    %732 = vmatmul.bf16.gmra.mxu0 %v643
    %v733 = vpop.f32.mrf.mxu0
    %v734 = vadd.f32 0.0, %v733
    %v735 = vpop.f32.mrf.mxu0
    %v736 = vadd.f32 0.0, %v735
    %737 = vmatmul.bf16.gmra.mxu0 %v644
    %v738 = vpop.f32.mrf.mxu0
    %v739 = vadd.f32 0.0, %v738
    %v740 = vpop.f32.mrf.mxu0
    %v741 = vadd.f32 0.0, %v740
    %742 = vmatmul.bf16.gmra.mxu0 %v645
    %v743 = vpop.f32.mrf.mxu0
    %v744 = vadd.f32 0.0, %v743
    %v745 = vpop.f32.mrf.mxu0
    %v746 = vadd.f32 0.0, %v745
    %747 = vmatmul.bf16.gmra.mxu0 %v646
    %v748 = vpop.f32.mrf.mxu0
    %v749 = vadd.f32 0.0, %v748
    %v750 = vpop.f32.mrf.mxu0
    %v751 = vadd.f32 0.0, %v750
    %752 = vmatmul.bf16.gmra.mxu0 %v647
    %v753 = vpop.f32.mrf.mxu0
    %v754 = vadd.f32 0.0, %v753
    %v755 = vpop.f32.mrf.mxu0
    %v756 = vadd.f32 0.0, %v755
    %757 = vmatmul.bf16.gmra.mxu0 %v648
    %v758 = vpop.f32.mrf.mxu0
    %v759 = vadd.f32 0.0, %v758
    %v760 = vpop.f32.mrf.mxu0
    %v761 = vadd.f32 0.0, %v760
    %762 = vdwg.mxu0
    %v763 = vadd.f32 %v608, %v724
    %v764 = vadd.f32 %v609, %v726
    %v765 = vadd.f32 %v610, %v729
    %v766 = vadd.f32 %v611, %v731
    %v767 = vadd.f32 %v612, %v734
    %v768 = vadd.f32 %v613, %v736
    %v769 = vadd.f32 %v614, %v739
    %v770 = vadd.f32 %v615, %v741
    %v771 = vadd.f32 %v616, %v744
    %v772 = vadd.f32 %v617, %v746
    %v773 = vadd.f32 %v618, %v749
    %v774 = vadd.f32 %v619, %v751
    %v775 = vadd.f32 %v620, %v754
    %v776 = vadd.f32 %v621, %v756
    %v777 = vadd.f32 %v622, %v759
    %v778 = vadd.f32 %v623, %v761
    %v779 = vld [vmem:[%s469 + $0x1] sm:$0xff]
    %v780 = vld [vmem:[%s469 + $0x11] sm:$0xff]
    %v781 = vld [vmem:[%s469 + $0x21] sm:$0xff]
    %v782 = vld [vmem:[%s469 + $0x31] sm:$0xff]
    %v783 = vld [vmem:[%s469 + $0x41] sm:$0xff]
    %v784 = vld [vmem:[%s469 + $0x51] sm:$0xff]
    %v785 = vld [vmem:[%s469 + $0x61] sm:$0xff]
    %v786 = vld [vmem:[%s469 + $0x71] sm:$0xff]
    %v787 = vld [vmem:[%s469 + $0x91] sm:$0xff]
    %v788 = vld [vmem:[%s469 + $0xa1] sm:$0xff]
    %v789 = vld [vmem:[%s469 + $0xb1] sm:$0xff]
    %v790 = vld [vmem:[%s469 + $0xc1] sm:$0xff]
    %v791 = vld [vmem:[%s469 + $0xd1] sm:$0xff]
    %v792 = vld [vmem:[%s469 + $0xe1] sm:$0xff]
    %v793 = vld [vmem:[%s469 + $0xf1] sm:$0xff]
    %v794 = vld [vmem:[%s469 + $0x101] sm:$0xff]
    %v795 = vpack.c.bf16 %v780, %v779
    %v796 = vpack.c.bf16 %v782, %v781
    %v797 = vpack.c.bf16 %v784, %v783
    %v798 = vpack.c.bf16 %v786, %v785
    %v799 = vpack.c.bf16 %v788, %v787
    %v800 = vpack.c.bf16 %v790, %v789
    %v801 = vpack.c.bf16 %v792, %v791
    %v802 = vpack.c.bf16 %v794, %v793
    %s803 = scalar_lea.vmem %s2, 320
    %v804 = vld [vmem:[%s803] sm:$0xf]
    %v805 = vld [vmem:[%s803 + $0x4] sm:$0xf]
    %v806 = vld [vmem:[%s803 + $0x8] sm:$0xf]
    %v807 = vld [vmem:[%s803 + $0xc] sm:$0xf]
    %v808 = vld [vmem:[%s803 + $0x10] sm:$0xf]
    %v809 = vld [vmem:[%s803 + $0x14] sm:$0xf]
    %v810 = vld [vmem:[%s803 + $0x18] sm:$0xf]
    %v811 = vld [vmem:[%s803 + $0x1c] sm:$0xf]
    %v812 = vld [vmem:[%s803 + $0x20] sm:$0xf]
    %v813 = vld [vmem:[%s803 + $0x24] sm:$0xf]
    %v814 = vld [vmem:[%s803 + $0x28] sm:$0xf]
    %v815 = vld [vmem:[%s803 + $0x2c] sm:$0xf]
    %v816 = vld [vmem:[%s803 + $0x30] sm:$0xf]
    %v817 = vld [vmem:[%s803 + $0x34] sm:$0xf]
    %v818 = vld [vmem:[%s803 + $0x38] sm:$0xf]
    %v819 = vld [vmem:[%s803 + $0x3c] sm:$0xf]
    %v836 = vunpack.c.l.b16 %v804
    %v837 = vunpack.c.l.b16 %v805
    %v838 = vunpack.c.l.b16 %v806
    %v839 = vunpack.c.l.b16 %v807
    %v840 = vunpack.c.l.b16 %v808
    %v841 = vunpack.c.l.b16 %v809
    %v842 = vunpack.c.l.b16 %v810
    %v843 = vunpack.c.l.b16 %v811
    %v844 = vunpack.c.l.b16 %v812
    %v845 = vunpack.c.l.b16 %v813
    %v846 = vunpack.c.l.b16 %v814
    %v847 = vunpack.c.l.b16 %v815
    %v848 = vunpack.c.l.b16 %v816
    %v849 = vunpack.c.l.b16 %v817
    %v850 = vunpack.c.l.b16 %v818
    %v851 = vunpack.c.l.b16 %v819
    %v852 = vpack.c.b16 %v837, %v836
    %v853 = vpack.c.b16 %v839, %v838
    %v854 = vpack.c.b16 %v841, %v840
    %v855 = vpack.c.b16 %v843, %v842
    %v856 = vpack.c.b16 %v845, %v844
    %v857 = vpack.c.b16 %v847, %v846
    %v858 = vpack.c.b16 %v849, %v848
    %v859 = vpack.c.b16 %v851, %v850
    %868 = vmatpush.bf16.msra.mxu0 %v859
    %869 = vmatpush.bf16.msra.mxu0 %v858
    %870 = vmatpush.bf16.msra.mxu0 %v857
    %871 = vmatpush.bf16.msra.mxu0 %v856
    %872 = vmatpush.bf16.msra.mxu0 %v855
    %873 = vmatpush.bf16.msra.mxu0 %v854
    %874 = vmatpush.bf16.msra.mxu0 %v853
    %875 = vmatpush.bf16.msra.mxu0 %v852
    %876 = vmatmul.bf16.gmra.mxu0 %v795
    %v877 = vpop.f32.mrf.mxu0
    %v878 = vadd.f32 0.0, %v877
    %v879 = vpop.f32.mrf.mxu0
    %v880 = vadd.f32 0.0, %v879
    %881 = vmatmul.bf16.gmra.mxu0 %v796
    %v882 = vpop.f32.mrf.mxu0
    %v883 = vadd.f32 0.0, %v882
    %v884 = vpop.f32.mrf.mxu0
    %v885 = vadd.f32 0.0, %v884
    %886 = vmatmul.bf16.gmra.mxu0 %v797
    %v887 = vpop.f32.mrf.mxu0
    %v888 = vadd.f32 0.0, %v887
    %v889 = vpop.f32.mrf.mxu0
    %v890 = vadd.f32 0.0, %v889
    %891 = vmatmul.bf16.gmra.mxu0 %v798
    %v892 = vpop.f32.mrf.mxu0
    %v893 = vadd.f32 0.0, %v892
    %v894 = vpop.f32.mrf.mxu0
    %v895 = vadd.f32 0.0, %v894
    %896 = vmatmul.bf16.gmra.mxu0 %v799
    %v897 = vpop.f32.mrf.mxu0
    %v898 = vadd.f32 0.0, %v897
    %v899 = vpop.f32.mrf.mxu0
    %v900 = vadd.f32 0.0, %v899
    %901 = vmatmul.bf16.gmra.mxu0 %v800
    %v902 = vpop.f32.mrf.mxu0
    %v903 = vadd.f32 0.0, %v902
    %v904 = vpop.f32.mrf.mxu0
    %v905 = vadd.f32 0.0, %v904
    %906 = vmatmul.bf16.gmra.mxu0 %v801
    %v907 = vpop.f32.mrf.mxu0
    %v908 = vadd.f32 0.0, %v907
    %v909 = vpop.f32.mrf.mxu0
    %v910 = vadd.f32 0.0, %v909
    %911 = vmatmul.bf16.gmra.mxu0 %v802
    %v912 = vpop.f32.mrf.mxu0
    %v913 = vadd.f32 0.0, %v912
    %v914 = vpop.f32.mrf.mxu0
    %v915 = vadd.f32 0.0, %v914
    %916 = vdwg.mxu0
    %v917 = vadd.f32 %v763, %v878
    %v918 = vadd.f32 %v764, %v880
    %v919 = vadd.f32 %v765, %v883
    %v920 = vadd.f32 %v766, %v885
    %v921 = vadd.f32 %v767, %v888
    %v922 = vadd.f32 %v768, %v890
    %v923 = vadd.f32 %v769, %v893
    %v924 = vadd.f32 %v770, %v895
    %v925 = vadd.f32 %v771, %v898
    %v926 = vadd.f32 %v772, %v900
    %v927 = vadd.f32 %v773, %v903
    %v928 = vadd.f32 %v774, %v905
    %v929 = vadd.f32 %v775, %v908
    %v930 = vadd.f32 %v776, %v910
    %v931 = vadd.f32 %v777, %v913
    %v932 = vadd.f32 %v778, %v915
    %s933 = scalar_lea.vmem %s0, 16
    %v934 = vld [vmem:[%s933] sm:$0xff]
    %v935 = vld [vmem:[%s933 + $0x10] sm:$0xff]
    %v936 = vld [vmem:[%s933 + $0x20] sm:$0xff]
    %v937 = vld [vmem:[%s933 + $0x30] sm:$0xff]
    %v938 = vld [vmem:[%s933 + $0x40] sm:$0xff]
    %v939 = vld [vmem:[%s933 + $0x50] sm:$0xff]
    %v940 = vld [vmem:[%s933 + $0x60] sm:$0xff]
    %v941 = vld [vmem:[%s933 + $0x70] sm:$0xff]
    %v942 = vld [vmem:[%s933 + $0x90] sm:$0xff]
    %v943 = vld [vmem:[%s933 + $0xa0] sm:$0xff]
    %v944 = vld [vmem:[%s933 + $0xb0] sm:$0xff]
    %v945 = vld [vmem:[%s933 + $0xc0] sm:$0xff]
    %v946 = vld [vmem:[%s933 + $0xd0] sm:$0xff]
    %v947 = vld [vmem:[%s933 + $0xe0] sm:$0xff]
    %v948 = vld [vmem:[%s933 + $0xf0] sm:$0xff]
    %v949 = vld [vmem:[%s933 + $0x100] sm:$0xff]
    %v950 = vpack.c.bf16 %v935, %v934
    %v951 = vpack.c.bf16 %v937, %v936
    %v952 = vpack.c.bf16 %v939, %v938
    %v953 = vpack.c.bf16 %v941, %v940
    %v954 = vpack.c.bf16 %v943, %v942
    %v955 = vpack.c.bf16 %v945, %v944
    %v956 = vpack.c.bf16 %v947, %v946
    %v957 = vpack.c.bf16 %v949, %v948
    %s958 = scalar_lea.vmem %s2, 384
    %v959 = vld [vmem:[%s958] sm:$0xf]
    %v960 = vld [vmem:[%s958 + $0x4] sm:$0xf]
    %v961 = vld [vmem:[%s958 + $0x8] sm:$0xf]
    %v962 = vld [vmem:[%s958 + $0xc] sm:$0xf]
    %v963 = vld [vmem:[%s958 + $0x10] sm:$0xf]
    %v964 = vld [vmem:[%s958 + $0x14] sm:$0xf]
    %v965 = vld [vmem:[%s958 + $0x18] sm:$0xf]
    %v966 = vld [vmem:[%s958 + $0x1c] sm:$0xf]
    %v967 = vld [vmem:[%s958 + $0x20] sm:$0xf]
    %v968 = vld [vmem:[%s958 + $0x24] sm:$0xf]
    %v969 = vld [vmem:[%s958 + $0x28] sm:$0xf]
    %v970 = vld [vmem:[%s958 + $0x2c] sm:$0xf]
    %v971 = vld [vmem:[%s958 + $0x30] sm:$0xf]
    %v972 = vld [vmem:[%s958 + $0x34] sm:$0xf]
    %v973 = vld [vmem:[%s958 + $0x38] sm:$0xf]
    %v974 = vld [vmem:[%s958 + $0x3c] sm:$0xf]
    %v991 = vunpack.c.l.b16 %v959
    %v992 = vunpack.c.l.b16 %v960
    %v993 = vunpack.c.l.b16 %v961
    %v994 = vunpack.c.l.b16 %v962
    %v995 = vunpack.c.l.b16 %v963
    %v996 = vunpack.c.l.b16 %v964
    %v997 = vunpack.c.l.b16 %v965
    %v998 = vunpack.c.l.b16 %v966
    %v999 = vunpack.c.l.b16 %v967
    %v1000 = vunpack.c.l.b16 %v968
    %v1001 = vunpack.c.l.b16 %v969
    %v1002 = vunpack.c.l.b16 %v970
    %v1003 = vunpack.c.l.b16 %v971
    %v1004 = vunpack.c.l.b16 %v972
    %v1005 = vunpack.c.l.b16 %v973
    %v1006 = vunpack.c.l.b16 %v974
    %v1007 = vpack.c.b16 %v992, %v991
    %v1008 = vpack.c.b16 %v994, %v993
    %v1009 = vpack.c.b16 %v996, %v995
    %v1010 = vpack.c.b16 %v998, %v997
    %v1011 = vpack.c.b16 %v1000, %v999
    %v1012 = vpack.c.b16 %v1002, %v1001
    %v1013 = vpack.c.b16 %v1004, %v1003
    %v1014 = vpack.c.b16 %v1006, %v1005
    %1023 = vmatpush.bf16.msra.mxu0 %v1014
    %1024 = vmatpush.bf16.msra.mxu0 %v1013
    %1025 = vmatpush.bf16.msra.mxu0 %v1012
    %1026 = vmatpush.bf16.msra.mxu0 %v1011
    %1027 = vmatpush.bf16.msra.mxu0 %v1010
    %1028 = vmatpush.bf16.msra.mxu0 %v1009
    %1029 = vmatpush.bf16.msra.mxu0 %v1008
    %1030 = vmatpush.bf16.msra.mxu0 %v1007
    %1031 = vmatmul.bf16.gmra.mxu0 %v950
    %v1032 = vpop.f32.mrf.mxu0
    %v1033 = vadd.f32 0.0, %v1032
    %v1034 = vpop.f32.mrf.mxu0
    %v1035 = vadd.f32 0.0, %v1034
    %1036 = vmatmul.bf16.gmra.mxu0 %v951
    %v1037 = vpop.f32.mrf.mxu0
    %v1038 = vadd.f32 0.0, %v1037
    %v1039 = vpop.f32.mrf.mxu0
    %v1040 = vadd.f32 0.0, %v1039
    %1041 = vmatmul.bf16.gmra.mxu0 %v952
    %v1042 = vpop.f32.mrf.mxu0
    %v1043 = vadd.f32 0.0, %v1042
    %v1044 = vpop.f32.mrf.mxu0
    %v1045 = vadd.f32 0.0, %v1044
    %1046 = vmatmul.bf16.gmra.mxu0 %v953
    %v1047 = vpop.f32.mrf.mxu0
    %v1048 = vadd.f32 0.0, %v1047
    %v1049 = vpop.f32.mrf.mxu0
    %v1050 = vadd.f32 0.0, %v1049
    %1051 = vmatmul.bf16.gmra.mxu0 %v954
    %v1052 = vpop.f32.mrf.mxu0
    %v1053 = vadd.f32 0.0, %v1052
    %v1054 = vpop.f32.mrf.mxu0
    %v1055 = vadd.f32 0.0, %v1054
    %1056 = vmatmul.bf16.gmra.mxu0 %v955
    %v1057 = vpop.f32.mrf.mxu0
    %v1058 = vadd.f32 0.0, %v1057
    %v1059 = vpop.f32.mrf.mxu0
    %v1060 = vadd.f32 0.0, %v1059
    %1061 = vmatmul.bf16.gmra.mxu0 %v956
    %v1062 = vpop.f32.mrf.mxu0
    %v1063 = vadd.f32 0.0, %v1062
    %v1064 = vpop.f32.mrf.mxu0
    %v1065 = vadd.f32 0.0, %v1064
    %1066 = vmatmul.bf16.gmra.mxu0 %v957
    %v1067 = vpop.f32.mrf.mxu0
    %v1068 = vadd.f32 0.0, %v1067
    %v1069 = vpop.f32.mrf.mxu0
    %v1070 = vadd.f32 0.0, %v1069
    %1071 = vdwg.mxu0
    %v1072 = vadd.f32 %v917, %v1033
    %v1073 = vadd.f32 %v918, %v1035
    %v1074 = vadd.f32 %v919, %v1038
    %v1075 = vadd.f32 %v920, %v1040
    %v1076 = vadd.f32 %v921, %v1043
    %v1077 = vadd.f32 %v922, %v1045
    %v1078 = vadd.f32 %v923, %v1048
    %v1079 = vadd.f32 %v924, %v1050
    %v1080 = vadd.f32 %v925, %v1053
    %v1081 = vadd.f32 %v926, %v1055
    %v1082 = vadd.f32 %v927, %v1058
    %v1083 = vadd.f32 %v928, %v1060
    %v1084 = vadd.f32 %v929, %v1063
    %v1085 = vadd.f32 %v930, %v1065
    %v1086 = vadd.f32 %v931, %v1068
    %v1087 = vadd.f32 %v932, %v1070
    %s1088 = scalar_lea.vmem %s0, 304
    %v1089 = vld [vmem:[%s1088] sm:$0xff]
    %v1090 = vld [vmem:[%s1088 + $0x10] sm:$0xff]
    %v1091 = vld [vmem:[%s1088 + $0x20] sm:$0xff]
    %v1092 = vld [vmem:[%s1088 + $0x30] sm:$0xff]
    %v1093 = vld [vmem:[%s1088 + $0x40] sm:$0xff]
    %v1094 = vld [vmem:[%s1088 + $0x50] sm:$0xff]
    %v1095 = vld [vmem:[%s1088 + $0x60] sm:$0xff]
    %v1096 = vld [vmem:[%s1088 + $0x70] sm:$0xff]
    %v1097 = vld [vmem:[%s1088 + $0x90] sm:$0xff]
    %v1098 = vld [vmem:[%s1088 + $0xa0] sm:$0xff]
    %v1099 = vld [vmem:[%s1088 + $0xb0] sm:$0xff]
    %v1100 = vld [vmem:[%s1088 + $0xc0] sm:$0xff]
    %v1101 = vld [vmem:[%s1088 + $0xd0] sm:$0xff]
    %v1102 = vld [vmem:[%s1088 + $0xe0] sm:$0xff]
    %v1103 = vld [vmem:[%s1088 + $0xf0] sm:$0xff]
    %v1104 = vld [vmem:[%s1088 + $0x100] sm:$0xff]
    %v1105 = vpack.c.bf16 %v1090, %v1089
    %v1106 = vpack.c.bf16 %v1092, %v1091
    %v1107 = vpack.c.bf16 %v1094, %v1093
    %v1108 = vpack.c.bf16 %v1096, %v1095
    %v1109 = vpack.c.bf16 %v1098, %v1097
    %v1110 = vpack.c.bf16 %v1100, %v1099
    %v1111 = vpack.c.bf16 %v1102, %v1101
    %v1112 = vpack.c.bf16 %v1104, %v1103
    %s1113 = scalar_lea.vmem %s2, 448
    %v1114 = vld [vmem:[%s1113] sm:$0xf]
    %v1115 = vld [vmem:[%s1113 + $0x4] sm:$0xf]
    %v1116 = vld [vmem:[%s1113 + $0x8] sm:$0xf]
    %v1117 = vld [vmem:[%s1113 + $0xc] sm:$0xf]
    %v1118 = vld [vmem:[%s1113 + $0x10] sm:$0xf]
    %v1119 = vld [vmem:[%s1113 + $0x14] sm:$0xf]
    %v1120 = vld [vmem:[%s1113 + $0x18] sm:$0xf]
    %v1121 = vld [vmem:[%s1113 + $0x1c] sm:$0xf]
    %v1122 = vld [vmem:[%s1113 + $0x20] sm:$0xf]
    %v1123 = vld [vmem:[%s1113 + $0x24] sm:$0xf]
    %v1124 = vld [vmem:[%s1113 + $0x28] sm:$0xf]
    %v1125 = vld [vmem:[%s1113 + $0x2c] sm:$0xf]
    %v1126 = vld [vmem:[%s1113 + $0x30] sm:$0xf]
    %v1127 = vld [vmem:[%s1113 + $0x34] sm:$0xf]
    %v1128 = vld [vmem:[%s1113 + $0x38] sm:$0xf]
    %v1129 = vld [vmem:[%s1113 + $0x3c] sm:$0xf]
    %v1146 = vunpack.c.l.b16 %v1114
    %v1147 = vunpack.c.l.b16 %v1115
    %v1148 = vunpack.c.l.b16 %v1116
    %v1149 = vunpack.c.l.b16 %v1117
    %v1150 = vunpack.c.l.b16 %v1118
    %v1151 = vunpack.c.l.b16 %v1119
    %v1152 = vunpack.c.l.b16 %v1120
    %v1153 = vunpack.c.l.b16 %v1121
    %v1154 = vunpack.c.l.b16 %v1122
    %v1155 = vunpack.c.l.b16 %v1123
    %v1156 = vunpack.c.l.b16 %v1124
    %v1157 = vunpack.c.l.b16 %v1125
    %v1158 = vunpack.c.l.b16 %v1126
    %v1159 = vunpack.c.l.b16 %v1127
    %v1160 = vunpack.c.l.b16 %v1128
    %v1161 = vunpack.c.l.b16 %v1129
    %v1162 = vpack.c.b16 %v1147, %v1146
    %v1163 = vpack.c.b16 %v1149, %v1148
    %v1164 = vpack.c.b16 %v1151, %v1150
    %v1165 = vpack.c.b16 %v1153, %v1152
    %v1166 = vpack.c.b16 %v1155, %v1154
    %v1167 = vpack.c.b16 %v1157, %v1156
    %v1168 = vpack.c.b16 %v1159, %v1158
    %v1169 = vpack.c.b16 %v1161, %v1160
    %1178 = vmatpush.bf16.msra.mxu0 %v1169
    %1179 = vmatpush.bf16.msra.mxu0 %v1168
    %1180 = vmatpush.bf16.msra.mxu0 %v1167
    %1181 = vmatpush.bf16.msra.mxu0 %v1166
    %1182 = vmatpush.bf16.msra.mxu0 %v1165
    %1183 = vmatpush.bf16.msra.mxu0 %v1164
    %1184 = vmatpush.bf16.msra.mxu0 %v1163
    %1185 = vmatpush.bf16.msra.mxu0 %v1162
    %1186 = vmatmul.bf16.gmra.mxu0 %v1105
    %v1187 = vpop.f32.mrf.mxu0
    %v1188 = vadd.f32 0.0, %v1187
    %v1189 = vpop.f32.mrf.mxu0
    %v1190 = vadd.f32 0.0, %v1189
    %1191 = vmatmul.bf16.gmra.mxu0 %v1106
    %v1192 = vpop.f32.mrf.mxu0
    %v1193 = vadd.f32 0.0, %v1192
    %v1194 = vpop.f32.mrf.mxu0
    %v1195 = vadd.f32 0.0, %v1194
    %1196 = vmatmul.bf16.gmra.mxu0 %v1107
    %v1197 = vpop.f32.mrf.mxu0
    %v1198 = vadd.f32 0.0, %v1197
    %v1199 = vpop.f32.mrf.mxu0
    %v1200 = vadd.f32 0.0, %v1199
    %1201 = vmatmul.bf16.gmra.mxu0 %v1108
    %v1202 = vpop.f32.mrf.mxu0
    %v1203 = vadd.f32 0.0, %v1202
    %v1204 = vpop.f32.mrf.mxu0
    %v1205 = vadd.f32 0.0, %v1204
    %1206 = vmatmul.bf16.gmra.mxu0 %v1109
    %v1207 = vpop.f32.mrf.mxu0
    %v1208 = vadd.f32 0.0, %v1207
    %v1209 = vpop.f32.mrf.mxu0
    %v1210 = vadd.f32 0.0, %v1209
    %1211 = vmatmul.bf16.gmra.mxu0 %v1110
    %v1212 = vpop.f32.mrf.mxu0
    %v1213 = vadd.f32 0.0, %v1212
    %v1214 = vpop.f32.mrf.mxu0
    %v1215 = vadd.f32 0.0, %v1214
    %1216 = vmatmul.bf16.gmra.mxu0 %v1111
    %v1217 = vpop.f32.mrf.mxu0
    %v1218 = vadd.f32 0.0, %v1217
    %v1219 = vpop.f32.mrf.mxu0
    %v1220 = vadd.f32 0.0, %v1219
    %1221 = vmatmul.bf16.gmra.mxu0 %v1112
    %v1222 = vpop.f32.mrf.mxu0
    %v1223 = vadd.f32 0.0, %v1222
    %v1224 = vpop.f32.mrf.mxu0
    %v1225 = vadd.f32 0.0, %v1224
    %1226 = vdwg.mxu0
    %v1227 = vadd.f32 %v1072, %v1188
    %v1228 = vadd.f32 %v1073, %v1190
    %v1229 = vadd.f32 %v1074, %v1193
    %v1230 = vadd.f32 %v1075, %v1195
    %v1231 = vadd.f32 %v1076, %v1198
    %v1232 = vadd.f32 %v1077, %v1200
    %v1233 = vadd.f32 %v1078, %v1203
    %v1234 = vadd.f32 %v1079, %v1205
    %v1235 = vadd.f32 %v1080, %v1208
    %v1236 = vadd.f32 %v1081, %v1210
    %v1237 = vadd.f32 %v1082, %v1213
    %v1238 = vadd.f32 %v1083, %v1215
    %v1239 = vadd.f32 %v1084, %v1218
    %v1240 = vadd.f32 %v1085, %v1220
    %v1241 = vadd.f32 %v1086, %v1223
    %v1242 = vadd.f32 %v1087, %v1225
    %v1243 = vld [vmem:[%s933 + $0x1] sm:$0xff]
    %v1244 = vld [vmem:[%s933 + $0x11] sm:$0xff]
    %v1245 = vld [vmem:[%s933 + $0x21] sm:$0xff]
    %v1246 = vld [vmem:[%s933 + $0x31] sm:$0xff]
    %v1247 = vld [vmem:[%s933 + $0x41] sm:$0xff]
    %v1248 = vld [vmem:[%s933 + $0x51] sm:$0xff]
    %v1249 = vld [vmem:[%s933 + $0x61] sm:$0xff]
    %v1250 = vld [vmem:[%s933 + $0x71] sm:$0xff]
    %v1251 = vld [vmem:[%s933 + $0x91] sm:$0xff]
    %v1252 = vld [vmem:[%s933 + $0xa1] sm:$0xff]
    %v1253 = vld [vmem:[%s933 + $0xb1] sm:$0xff]
    %v1254 = vld [vmem:[%s933 + $0xc1] sm:$0xff]
    %v1255 = vld [vmem:[%s933 + $0xd1] sm:$0xff]
    %v1256 = vld [vmem:[%s933 + $0xe1] sm:$0xff]
    %v1257 = vld [vmem:[%s933 + $0xf1] sm:$0xff]
    %v1258 = vld [vmem:[%s933 + $0x101] sm:$0xff]
    %v1259 = vpack.c.bf16 %v1244, %v1243
    %v1260 = vpack.c.bf16 %v1246, %v1245
    %v1261 = vpack.c.bf16 %v1248, %v1247
    %v1262 = vpack.c.bf16 %v1250, %v1249
    %v1263 = vpack.c.bf16 %v1252, %v1251
    %v1264 = vpack.c.bf16 %v1254, %v1253
    %v1265 = vpack.c.bf16 %v1256, %v1255
    %v1266 = vpack.c.bf16 %v1258, %v1257
    %s1267 = scalar_lea.vmem %s2, 512
    %v1268 = vld [vmem:[%s1267] sm:$0xf]
    %v1269 = vld [vmem:[%s1267 + $0x4] sm:$0xf]
    %v1270 = vld [vmem:[%s1267 + $0x8] sm:$0xf]
    %v1271 = vld [vmem:[%s1267 + $0xc] sm:$0xf]
    %v1272 = vld [vmem:[%s1267 + $0x10] sm:$0xf]
    %v1273 = vld [vmem:[%s1267 + $0x14] sm:$0xf]
    %v1274 = vld [vmem:[%s1267 + $0x18] sm:$0xf]
    %v1275 = vld [vmem:[%s1267 + $0x1c] sm:$0xf]
    %v1276 = vld [vmem:[%s1267 + $0x20] sm:$0xf]
    %v1277 = vld [vmem:[%s1267 + $0x24] sm:$0xf]
    %v1278 = vld [vmem:[%s1267 + $0x28] sm:$0xf]
    %v1279 = vld [vmem:[%s1267 + $0x2c] sm:$0xf]
    %v1280 = vld [vmem:[%s1267 + $0x30] sm:$0xf]
    %v1281 = vld [vmem:[%s1267 + $0x34] sm:$0xf]
    %v1282 = vld [vmem:[%s1267 + $0x38] sm:$0xf]
    %v1283 = vld [vmem:[%s1267 + $0x3c] sm:$0xf]
    %v1300 = vunpack.c.l.b16 %v1268
    %v1301 = vunpack.c.l.b16 %v1269
    %v1302 = vunpack.c.l.b16 %v1270
    %v1303 = vunpack.c.l.b16 %v1271
    %v1304 = vunpack.c.l.b16 %v1272
    %v1305 = vunpack.c.l.b16 %v1273
    %v1306 = vunpack.c.l.b16 %v1274
    %v1307 = vunpack.c.l.b16 %v1275
    %v1308 = vunpack.c.l.b16 %v1276
    %v1309 = vunpack.c.l.b16 %v1277
    %v1310 = vunpack.c.l.b16 %v1278
    %v1311 = vunpack.c.l.b16 %v1279
    %v1312 = vunpack.c.l.b16 %v1280
    %v1313 = vunpack.c.l.b16 %v1281
    %v1314 = vunpack.c.l.b16 %v1282
    %v1315 = vunpack.c.l.b16 %v1283
    %v1316 = vpack.c.b16 %v1301, %v1300
    %v1317 = vpack.c.b16 %v1303, %v1302
    %v1318 = vpack.c.b16 %v1305, %v1304
    %v1319 = vpack.c.b16 %v1307, %v1306
    %v1320 = vpack.c.b16 %v1309, %v1308
    %v1321 = vpack.c.b16 %v1311, %v1310
    %v1322 = vpack.c.b16 %v1313, %v1312
    %v1323 = vpack.c.b16 %v1315, %v1314
    %1332 = vmatpush.bf16.msra.mxu0 %v1323
    %1333 = vmatpush.bf16.msra.mxu0 %v1322
    %1334 = vmatpush.bf16.msra.mxu0 %v1321
    %1335 = vmatpush.bf16.msra.mxu0 %v1320
    %1336 = vmatpush.bf16.msra.mxu0 %v1319
    %1337 = vmatpush.bf16.msra.mxu0 %v1318
    %1338 = vmatpush.bf16.msra.mxu0 %v1317
    %1339 = vmatpush.bf16.msra.mxu0 %v1316
    %1340 = vmatmul.bf16.gmra.mxu0 %v1259
    %v1341 = vpop.f32.mrf.mxu0
    %v1342 = vadd.f32 0.0, %v1341
    %v1343 = vpop.f32.mrf.mxu0
    %v1344 = vadd.f32 0.0, %v1343
    %1345 = vmatmul.bf16.gmra.mxu0 %v1260
    %v1346 = vpop.f32.mrf.mxu0
    %v1347 = vadd.f32 0.0, %v1346
    %v1348 = vpop.f32.mrf.mxu0
    %v1349 = vadd.f32 0.0, %v1348
    %1350 = vmatmul.bf16.gmra.mxu0 %v1261
    %v1351 = vpop.f32.mrf.mxu0
    %v1352 = vadd.f32 0.0, %v1351
    %v1353 = vpop.f32.mrf.mxu0
    %v1354 = vadd.f32 0.0, %v1353
    %1355 = vmatmul.bf16.gmra.mxu0 %v1262
    %v1356 = vpop.f32.mrf.mxu0
    %v1357 = vadd.f32 0.0, %v1356
    %v1358 = vpop.f32.mrf.mxu0
    %v1359 = vadd.f32 0.0, %v1358
    %1360 = vmatmul.bf16.gmra.mxu0 %v1263
    %v1361 = vpop.f32.mrf.mxu0
    %v1362 = vadd.f32 0.0, %v1361
    %v1363 = vpop.f32.mrf.mxu0
    %v1364 = vadd.f32 0.0, %v1363
    %1365 = vmatmul.bf16.gmra.mxu0 %v1264
    %v1366 = vpop.f32.mrf.mxu0
    %v1367 = vadd.f32 0.0, %v1366
    %v1368 = vpop.f32.mrf.mxu0
    %v1369 = vadd.f32 0.0, %v1368
    %1370 = vmatmul.bf16.gmra.mxu0 %v1265
    %v1371 = vpop.f32.mrf.mxu0
    %v1372 = vadd.f32 0.0, %v1371
    %v1373 = vpop.f32.mrf.mxu0
    %v1374 = vadd.f32 0.0, %v1373
    %1375 = vmatmul.bf16.gmra.mxu0 %v1266
    %v1376 = vpop.f32.mrf.mxu0
    %v1377 = vadd.f32 0.0, %v1376
    %v1378 = vpop.f32.mrf.mxu0
    %v1379 = vadd.f32 0.0, %v1378
    %1380 = vdwg.mxu0
    %v1381 = vadd.f32 %v1227, %v1342
    %v1382 = vadd.f32 %v1228, %v1344
    %v1383 = vadd.f32 %v1229, %v1347
    %v1384 = vadd.f32 %v1230, %v1349
    %v1385 = vadd.f32 %v1231, %v1352
    %v1386 = vadd.f32 %v1232, %v1354
    %v1387 = vadd.f32 %v1233, %v1357
    %v1388 = vadd.f32 %v1234, %v1359
    %v1389 = vadd.f32 %v1235, %v1362
    %v1390 = vadd.f32 %v1236, %v1364
    %v1391 = vadd.f32 %v1237, %v1367
    %v1392 = vadd.f32 %v1238, %v1369
    %v1393 = vadd.f32 %v1239, %v1372
    %v1394 = vadd.f32 %v1240, %v1374
    %v1395 = vadd.f32 %v1241, %v1377
    %v1396 = vadd.f32 %v1242, %v1379
    %v1397 = vld [vmem:[%s3] sm:$0x1]
    %v1398 = vld [vmem:[%s4] sm:$0x1]
    %v1399 = vadd.f32 %v1381, %v1382
    %v1400 = vadd.f32 %v1399, %v1383
    %v1401 = vadd.f32 %v1400, %v1384
    %v1402 = vadd.f32 %v1401, %v1385
    %v1403 = vadd.f32 %v1402, %v1386
    %v1404 = vadd.f32 %v1403, %v1387
    %v1405 = vadd.f32 %v1404, %v1388
    %v1406 = vadd.f32 %v1405, %v1389
    %v1407 = vadd.f32 %v1406, %v1390
    %v1408 = vadd.f32 %v1407, %v1391
    %v1409 = vadd.f32 %v1408, %v1392
    %v1410 = vadd.f32 %v1409, %v1393
    %v1411 = vadd.f32 %v1410, %v1394
    %v1412 = vadd.f32 %v1411, %v1395
    %v1413 = vadd.f32 %v1412, %v1396
    %v1414 = vrot.slane %v1413, 4
    %v1415 = vadd.f32 %v1413, %v1414
    %v1416 = vrot.slane %v1415, 2
    %v1417 = vadd.f32 %v1415, %v1416
    %v1418 = vrot.slane %v1417, 1
    %v1419 = vadd.f32 %v1417, %v1418
    %v1420 = vrcp.pop 128.0
    %v1421 = vmul.f32 128.0, %v1420
    %v1422 = vsub.f32 1.0, %v1421
    %v1423 = vmul.f32 %v1420, %v1422
    %v1424 = vadd.f32 %v1420, %v1423
    %vm1425 = vweird.f32 %v1420
    %v1426 = vsel %vm1425, %v1420, %v1424
    %v1427 = vmul.f32 %v1419, %v1426
    %v1428 = vmul.f32 %v1381, %v1381
    %v1429 = vmul.f32 %v1382, %v1382
    %v1430 = vmul.f32 %v1383, %v1383
    %v1431 = vmul.f32 %v1384, %v1384
    %v1432 = vmul.f32 %v1385, %v1385
    %v1433 = vmul.f32 %v1386, %v1386
    %v1434 = vmul.f32 %v1387, %v1387
    %v1435 = vmul.f32 %v1388, %v1388
    %v1436 = vmul.f32 %v1389, %v1389
    %v1437 = vmul.f32 %v1390, %v1390
    %v1438 = vmul.f32 %v1391, %v1391
    %v1439 = vmul.f32 %v1392, %v1392
    %v1440 = vmul.f32 %v1393, %v1393
    %v1441 = vmul.f32 %v1394, %v1394
    %v1442 = vmul.f32 %v1395, %v1395
    %v1443 = vmul.f32 %v1396, %v1396
    %v1444 = vadd.f32 %v1428, %v1429
    %v1445 = vadd.f32 %v1444, %v1430
    %v1446 = vadd.f32 %v1445, %v1431
    %v1447 = vadd.f32 %v1446, %v1432
    %v1448 = vadd.f32 %v1447, %v1433
    %v1449 = vadd.f32 %v1448, %v1434
    %v1450 = vadd.f32 %v1449, %v1435
    %v1451 = vadd.f32 %v1450, %v1436
    %v1452 = vadd.f32 %v1451, %v1437
    %v1453 = vadd.f32 %v1452, %v1438
    %v1454 = vadd.f32 %v1453, %v1439
    %v1455 = vadd.f32 %v1454, %v1440
    %v1456 = vadd.f32 %v1455, %v1441
    %v1457 = vadd.f32 %v1456, %v1442
    %v1458 = vadd.f32 %v1457, %v1443
    %v1459 = vrot.slane %v1458, 4
    %v1460 = vadd.f32 %v1458, %v1459
    %v1461 = vrot.slane %v1460, 2
    %v1462 = vadd.f32 %v1460, %v1461
    %v1463 = vrot.slane %v1462, 1
    %v1464 = vadd.f32 %v1462, %v1463
    %v1465 = vmul.f32 %v1464, %v1426
    %v1466 = vmul.f32 %v1427, %v1427
    %v1467 = vsub.f32 %v1465, %v1466
    %v1468 = vmax.f32 %v1467, 0.0
    %v1469 = vsub.f32 %v1381, %v1427
    %v1470 = vsub.f32 %v1382, %v1427
    %v1471 = vsub.f32 %v1383, %v1427
    %v1472 = vsub.f32 %v1384, %v1427
    %v1473 = vsub.f32 %v1385, %v1427
    %v1474 = vsub.f32 %v1386, %v1427
    %v1475 = vsub.f32 %v1387, %v1427
    %v1476 = vsub.f32 %v1388, %v1427
    %v1477 = vsub.f32 %v1389, %v1427
    %v1478 = vsub.f32 %v1390, %v1427
    %v1479 = vsub.f32 %v1391, %v1427
    %v1480 = vsub.f32 %v1392, %v1427
    %v1481 = vsub.f32 %v1393, %v1427
    %v1482 = vsub.f32 %v1394, %v1427
    %v1483 = vsub.f32 %v1395, %v1427
    %v1484 = vsub.f32 %v1396, %v1427
    %v1485 = vadd.f32 %v1468, 1e-05
    %v1486 = vrsqrt.pop %v1485
    %v1487 = vmul.f32 %v1486, %v1485
    %v1488 = vmul.f32 %v1487, %v1486
    %v1489 = vmul.f32 0.5, %v1488
    %v1490 = vsub.f32 1.5, %v1489
    %v1491 = vmul.f32 %v1486, %v1490
    %vm1492 = vweird.f32 %v1485
    %vm1493 = vweird.f32 %v1486
    %vm1494 = vmor %vm1492, %vm1493
    %v1495 = vsel %vm1494, %v1486, %v1491
    %v1496 = vmul.f32 %v1397, %v1495
    %v1498 = vperm.slane %v1496, 0
    %v1500 = vmul.f32 %v1469, %v1498
    %v1501 = vmul.f32 %v1470, %v1498
    %v1502 = vmul.f32 %v1471, %v1498
    %v1503 = vmul.f32 %v1472, %v1498
    %v1504 = vmul.f32 %v1473, %v1498
    %v1505 = vmul.f32 %v1474, %v1498
    %v1506 = vmul.f32 %v1475, %v1498
    %v1507 = vmul.f32 %v1476, %v1498
    %v1508 = vmul.f32 %v1477, %v1498
    %v1509 = vmul.f32 %v1478, %v1498
    %v1510 = vmul.f32 %v1479, %v1498
    %v1511 = vmul.f32 %v1480, %v1498
    %v1512 = vmul.f32 %v1481, %v1498
    %v1513 = vmul.f32 %v1482, %v1498
    %v1514 = vmul.f32 %v1483, %v1498
    %v1515 = vmul.f32 %v1484, %v1498
    %v1517 = vperm.slane %v1398, 0
    %v1519 = vadd.f32 %v1500, %v1517
    %v1520 = vadd.f32 %v1501, %v1517
    %v1521 = vadd.f32 %v1502, %v1517
    %v1522 = vadd.f32 %v1503, %v1517
    %v1523 = vadd.f32 %v1504, %v1517
    %v1524 = vadd.f32 %v1505, %v1517
    %v1525 = vadd.f32 %v1506, %v1517
    %v1526 = vadd.f32 %v1507, %v1517
    %v1527 = vadd.f32 %v1508, %v1517
    %v1528 = vadd.f32 %v1509, %v1517
    %v1529 = vadd.f32 %v1510, %v1517
    %v1530 = vadd.f32 %v1511, %v1517
    %v1531 = vadd.f32 %v1512, %v1517
    %v1532 = vadd.f32 %v1513, %v1517
    %v1533 = vadd.f32 %v1514, %v1517
    %v1534 = vadd.f32 %v1515, %v1517
    %v1535 = vmax.f32 %v1519, 0.0
    %v1536 = vmax.f32 %v1520, 0.0
    %v1537 = vmax.f32 %v1521, 0.0
    %v1538 = vmax.f32 %v1522, 0.0
    %v1539 = vmax.f32 %v1523, 0.0
    %v1540 = vmax.f32 %v1524, 0.0
    %v1541 = vmax.f32 %v1525, 0.0
    %v1542 = vmax.f32 %v1526, 0.0
    %v1543 = vmax.f32 %v1527, 0.0
    %v1544 = vmax.f32 %v1528, 0.0
    %v1545 = vmax.f32 %v1529, 0.0
    %v1546 = vmax.f32 %v1530, 0.0
    %v1547 = vmax.f32 %v1531, 0.0
    %v1548 = vmax.f32 %v1532, 0.0
    %v1549 = vmax.f32 %v1533, 0.0
    %v1550 = vmax.f32 %v1534, 0.0
    %1551 = vst [vmem:[#allocation2] sm:$0xff] 0.0
    %1552 = vst [vmem:[#allocation2 + $0x8] sm:$0x3] 0.0
    %1553 = vst [vmem:[#allocation2 + $0x10] sm:$0xff] 0.0
    %1554 = vst [vmem:[#allocation2 + $0x18] sm:$0x3] 0.0
    %1555 = vst [vmem:[#allocation2 + $0x20] sm:$0xff] 0.0
    %1556 = vst [vmem:[#allocation2 + $0x28] sm:$0x3] 0.0
    %1557 = vst [vmem:[#allocation2 + $0x30] sm:$0xff] 0.0
    %1558 = vst [vmem:[#allocation2 + $0x38] sm:$0x3] 0.0
    %1559 = vst [vmem:[#allocation2 + $0x40] sm:$0xff] 0.0
    %1560 = vst [vmem:[#allocation2 + $0x48] sm:$0x3] 0.0
    %1561 = vst [vmem:[#allocation2 + $0x50] sm:$0xff] 0.0
    %1562 = vst [vmem:[#allocation2 + $0x58] sm:$0x3] 0.0
    %1563 = vst [vmem:[#allocation2 + $0x60] sm:$0xff] 0.0
    %1564 = vst [vmem:[#allocation2 + $0x68] sm:$0x3] 0.0
    %1565 = vst [vmem:[#allocation2 + $0x70] sm:$0xff] 0.0
    %1566 = vst [vmem:[#allocation2 + $0x78] sm:$0x3] 0.0
    %1567 = vst [vmem:[#allocation2 + $0x80] sm:$0xff] 0.0
    %1568 = vst [vmem:[#allocation2 + $0x88] sm:$0x3] 0.0
    %1569 = vst [vmem:[#allocation2 + $0x90] sm:$0xff] 0.0
    %1570 = vst [vmem:[#allocation2 + $0x98] sm:$0x3] 0.0
    %1571 = vst [vmem:[#allocation2 + $0xa0] sm:$0xff] 0.0
    %1572 = vst [vmem:[#allocation2 + $0xa8] sm:$0x3] 0.0
    %1573 = vst [vmem:[#allocation2 + $0xb0] sm:$0xff] 0.0
    %1574 = vst [vmem:[#allocation2 + $0xb8] sm:$0x3] 0.0
    %1575 = vst [vmem:[#allocation2 + $0xc0] sm:$0xff] 0.0
    %1576 = vst [vmem:[#allocation2 + $0xc8] sm:$0x3] 0.0
    %1577 = vst [vmem:[#allocation2 + $0xd0] sm:$0xff] 0.0
    %1578 = vst [vmem:[#allocation2 + $0xd8] sm:$0x3] 0.0
    %1579 = vst [vmem:[#allocation2 + $0xe0] sm:$0xff] 0.0
    %1580 = vst [vmem:[#allocation2 + $0xe8] sm:$0x3] 0.0
    %1581 = vst [vmem:[#allocation2 + $0xf0] sm:$0xff] 0.0
    %1582 = vst [vmem:[#allocation2 + $0xf8] sm:$0x3] 0.0
    %1583 = vst [vmem:[#allocation2 + $0x100] sm:$0xff] 0.0
    %1584 = vst [vmem:[#allocation2 + $0x108] sm:$0x3] 0.0
    %1585 = vst [vmem:[#allocation2 + $0x110] sm:$0xff] 0.0
    %1586 = vst [vmem:[#allocation2 + $0x118] sm:$0x3] 0.0
    %1587 = vst [vmem:[#allocation2 + $0x120] sm:$0xff] 0.0
    %1588 = vst [vmem:[#allocation2 + $0x128] sm:$0x3] 0.0
    %1589 = vst [vmem:[#allocation2 + $0x130] sm:$0xff] 0.0
    %1590 = vst [vmem:[#allocation2 + $0x138] sm:$0x3] 0.0
    %s1591 = scalar_lea.vmem [#allocation2], 16
    %1592 = vst [vmem:[%s1591 + $0x1] sm:$0xff] %v1535
    %1593 = vst [vmem:[%s1591 + $0x11] sm:$0xff] %v1536
    %1594 = vst [vmem:[%s1591 + $0x21] sm:$0xff] %v1537
    %1595 = vst [vmem:[%s1591 + $0x31] sm:$0xff] %v1538
    %1596 = vst [vmem:[%s1591 + $0x41] sm:$0xff] %v1539
    %1597 = vst [vmem:[%s1591 + $0x51] sm:$0xff] %v1540
    %1598 = vst [vmem:[%s1591 + $0x61] sm:$0xff] %v1541
    %1599 = vst [vmem:[%s1591 + $0x71] sm:$0xff] %v1542
    %1600 = vst [vmem:[%s1591 + $0xa1] sm:$0xff] %v1543
    %1601 = vst [vmem:[%s1591 + $0xb1] sm:$0xff] %v1544
    %1602 = vst [vmem:[%s1591 + $0xc1] sm:$0xff] %v1545
    %1603 = vst [vmem:[%s1591 + $0xd1] sm:$0xff] %v1546
    %1604 = vst [vmem:[%s1591 + $0xe1] sm:$0xff] %v1547
    %1605 = vst [vmem:[%s1591 + $0xf1] sm:$0xff] %v1548
    %1606 = vst [vmem:[%s1591 + $0x101] sm:$0xff] %v1549
    %1607 = vst [vmem:[%s1591 + $0x111] sm:$0xff] %v1550
    %v1608 = vld [vmem:[#allocation2] sm:$0xff]
    %v1609 = vld [vmem:[#allocation2 + $0x10] sm:$0xff]
    %v1610 = vld [vmem:[#allocation2 + $0x20] sm:$0xff]
    %v1611 = vld [vmem:[#allocation2 + $0x30] sm:$0xff]
    %v1612 = vld [vmem:[#allocation2 + $0x40] sm:$0xff]
    %v1613 = vld [vmem:[#allocation2 + $0x50] sm:$0xff]
    %v1614 = vld [vmem:[#allocation2 + $0x60] sm:$0xff]
    %v1615 = vld [vmem:[#allocation2 + $0x70] sm:$0xff]
    %v1616 = vld [vmem:[#allocation2 + $0xa0] sm:$0xff]
    %v1617 = vld [vmem:[#allocation2 + $0xb0] sm:$0xff]
    %v1618 = vld [vmem:[#allocation2 + $0xc0] sm:$0xff]
    %v1619 = vld [vmem:[#allocation2 + $0xd0] sm:$0xff]
    %v1620 = vld [vmem:[#allocation2 + $0xe0] sm:$0xff]
    %v1621 = vld [vmem:[#allocation2 + $0xf0] sm:$0xff]
    %v1622 = vld [vmem:[#allocation2 + $0x100] sm:$0xff]
    %v1623 = vld [vmem:[#allocation2 + $0x110] sm:$0xff]
    %v1624 = vpack.c.bf16 %v1609, %v1608
    %v1625 = vpack.c.bf16 %v1611, %v1610
    %v1626 = vpack.c.bf16 %v1613, %v1612
    %v1627 = vpack.c.bf16 %v1615, %v1614
    %v1628 = vpack.c.bf16 %v1617, %v1616
    %v1629 = vpack.c.bf16 %v1619, %v1618
    %v1630 = vpack.c.bf16 %v1621, %v1620
    %v1631 = vpack.c.bf16 %v1623, %v1622
    %v1632 = vld [vmem:[%s5] sm:$0xf]
    %v1633 = vld [vmem:[%s5 + $0x4] sm:$0xf]
    %v1634 = vld [vmem:[%s5 + $0x8] sm:$0xf]
    %v1635 = vld [vmem:[%s5 + $0xc] sm:$0xf]
    %v1636 = vld [vmem:[%s5 + $0x10] sm:$0xf]
    %v1637 = vld [vmem:[%s5 + $0x14] sm:$0xf]
    %v1638 = vld [vmem:[%s5 + $0x18] sm:$0xf]
    %v1639 = vld [vmem:[%s5 + $0x1c] sm:$0xf]
    %v1640 = vld [vmem:[%s5 + $0x20] sm:$0xf]
    %v1641 = vld [vmem:[%s5 + $0x24] sm:$0xf]
    %v1642 = vld [vmem:[%s5 + $0x28] sm:$0xf]
    %v1643 = vld [vmem:[%s5 + $0x2c] sm:$0xf]
    %v1644 = vld [vmem:[%s5 + $0x30] sm:$0xf]
    %v1645 = vld [vmem:[%s5 + $0x34] sm:$0xf]
    %v1646 = vld [vmem:[%s5 + $0x38] sm:$0xf]
    %v1647 = vld [vmem:[%s5 + $0x3c] sm:$0xf]
    %v1648 = vld [vmem:[#allocation2 + $0x1] sm:$0xff]
    %v1649 = vld [vmem:[#allocation2 + $0x11] sm:$0xff]
    %v1650 = vld [vmem:[#allocation2 + $0x21] sm:$0xff]
    %v1651 = vld [vmem:[#allocation2 + $0x31] sm:$0xff]
    %v1652 = vld [vmem:[#allocation2 + $0x41] sm:$0xff]
    %v1653 = vld [vmem:[#allocation2 + $0x51] sm:$0xff]
    %v1654 = vld [vmem:[#allocation2 + $0x61] sm:$0xff]
    %v1655 = vld [vmem:[#allocation2 + $0x71] sm:$0xff]
    %v1656 = vld [vmem:[#allocation2 + $0xa1] sm:$0xff]
    %v1657 = vld [vmem:[#allocation2 + $0xb1] sm:$0xff]
    %v1658 = vld [vmem:[#allocation2 + $0xc1] sm:$0xff]
    %v1659 = vld [vmem:[#allocation2 + $0xd1] sm:$0xff]
    %v1660 = vld [vmem:[#allocation2 + $0xe1] sm:$0xff]
    %v1661 = vld [vmem:[#allocation2 + $0xf1] sm:$0xff]
    %v1662 = vld [vmem:[#allocation2 + $0x101] sm:$0xff]
    %v1663 = vld [vmem:[#allocation2 + $0x111] sm:$0xff]
    %v1664 = vpack.c.bf16 %v1649, %v1648
    %v1665 = vpack.c.bf16 %v1651, %v1650
    %v1666 = vpack.c.bf16 %v1653, %v1652
    %v1667 = vpack.c.bf16 %v1655, %v1654
    %v1668 = vpack.c.bf16 %v1657, %v1656
    %v1669 = vpack.c.bf16 %v1659, %v1658
    %v1670 = vpack.c.bf16 %v1661, %v1660
    %v1671 = vpack.c.bf16 %v1663, %v1662
    %s1672 = scalar_lea.vmem %s5, 64
    %v1673 = vld [vmem:[%s1672] sm:$0xf]
    %v1674 = vld [vmem:[%s1672 + $0x4] sm:$0xf]
    %v1675 = vld [vmem:[%s1672 + $0x8] sm:$0xf]
    %v1676 = vld [vmem:[%s1672 + $0xc] sm:$0xf]
    %v1677 = vld [vmem:[%s1672 + $0x10] sm:$0xf]
    %v1678 = vld [vmem:[%s1672 + $0x14] sm:$0xf]
    %v1679 = vld [vmem:[%s1672 + $0x18] sm:$0xf]
    %v1680 = vld [vmem:[%s1672 + $0x1c] sm:$0xf]
    %v1681 = vld [vmem:[%s1672 + $0x20] sm:$0xf]
    %v1682 = vld [vmem:[%s1672 + $0x24] sm:$0xf]
    %v1683 = vld [vmem:[%s1672 + $0x28] sm:$0xf]
    %v1684 = vld [vmem:[%s1672 + $0x2c] sm:$0xf]
    %v1685 = vld [vmem:[%s1672 + $0x30] sm:$0xf]
    %v1686 = vld [vmem:[%s1672 + $0x34] sm:$0xf]
    %v1687 = vld [vmem:[%s1672 + $0x38] sm:$0xf]
    %v1688 = vld [vmem:[%s1672 + $0x3c] sm:$0xf]
    %v1705 = vunpack.c.l.b16 %v1673
    %v1706 = vunpack.c.l.b16 %v1674
    %v1707 = vunpack.c.l.b16 %v1675
    %v1708 = vunpack.c.l.b16 %v1676
    %v1709 = vunpack.c.l.b16 %v1677
    %v1710 = vunpack.c.l.b16 %v1678
    %v1711 = vunpack.c.l.b16 %v1679
    %v1712 = vunpack.c.l.b16 %v1680
    %v1713 = vunpack.c.l.b16 %v1681
    %v1714 = vunpack.c.l.b16 %v1682
    %v1715 = vunpack.c.l.b16 %v1683
    %v1716 = vunpack.c.l.b16 %v1684
    %v1717 = vunpack.c.l.b16 %v1685
    %v1718 = vunpack.c.l.b16 %v1686
    %v1719 = vunpack.c.l.b16 %v1687
    %v1720 = vunpack.c.l.b16 %v1688
    %v1721 = vpack.c.b16 %v1706, %v1705
    %v1722 = vpack.c.b16 %v1708, %v1707
    %v1723 = vpack.c.b16 %v1710, %v1709
    %v1724 = vpack.c.b16 %v1712, %v1711
    %v1725 = vpack.c.b16 %v1714, %v1713
    %v1726 = vpack.c.b16 %v1716, %v1715
    %v1727 = vpack.c.b16 %v1718, %v1717
    %v1728 = vpack.c.b16 %v1720, %v1719
    %1737 = vmatpush.bf16.msra.mxu0 %v1728
    %1738 = vmatpush.bf16.msra.mxu0 %v1727
    %1739 = vmatpush.bf16.msra.mxu0 %v1726
    %1740 = vmatpush.bf16.msra.mxu0 %v1725
    %1741 = vmatpush.bf16.msra.mxu0 %v1724
    %1742 = vmatpush.bf16.msra.mxu0 %v1723
    %1743 = vmatpush.bf16.msra.mxu0 %v1722
    %1744 = vmatpush.bf16.msra.mxu0 %v1721
    %1745 = vmatmul.bf16.gmra.mxu0 %v1664
    %v1746 = vpop.f32.mrf.mxu0
    %v1747 = vadd.f32 0.0, %v1746
    %v1748 = vpop.f32.mrf.mxu0
    %v1749 = vadd.f32 0.0, %v1748
    %1750 = vmatmul.bf16.gmra.mxu0 %v1665
    %v1751 = vpop.f32.mrf.mxu0
    %v1752 = vadd.f32 0.0, %v1751
    %v1753 = vpop.f32.mrf.mxu0
    %v1754 = vadd.f32 0.0, %v1753
    %1755 = vmatmul.bf16.gmra.mxu0 %v1666
    %v1756 = vpop.f32.mrf.mxu0
    %v1757 = vadd.f32 0.0, %v1756
    %v1758 = vpop.f32.mrf.mxu0
    %v1759 = vadd.f32 0.0, %v1758
    %1760 = vmatmul.bf16.gmra.mxu0 %v1667
    %v1761 = vpop.f32.mrf.mxu0
    %v1762 = vadd.f32 0.0, %v1761
    %v1763 = vpop.f32.mrf.mxu0
    %v1764 = vadd.f32 0.0, %v1763
    %1765 = vmatmul.bf16.gmra.mxu0 %v1668
    %v1766 = vpop.f32.mrf.mxu0
    %v1767 = vadd.f32 0.0, %v1766
    %v1768 = vpop.f32.mrf.mxu0
    %v1769 = vadd.f32 0.0, %v1768
    %1770 = vmatmul.bf16.gmra.mxu0 %v1669
    %v1771 = vpop.f32.mrf.mxu0
    %v1772 = vadd.f32 0.0, %v1771
    %v1773 = vpop.f32.mrf.mxu0
    %v1774 = vadd.f32 0.0, %v1773
    %1775 = vmatmul.bf16.gmra.mxu0 %v1670
    %v1776 = vpop.f32.mrf.mxu0
    %v1777 = vadd.f32 0.0, %v1776
    %v1778 = vpop.f32.mrf.mxu0
    %v1779 = vadd.f32 0.0, %v1778
    %1780 = vmatmul.bf16.gmra.mxu0 %v1671
    %v1781 = vpop.f32.mrf.mxu0
    %v1782 = vadd.f32 0.0, %v1781
    %v1783 = vpop.f32.mrf.mxu0
    %v1784 = vadd.f32 0.0, %v1783
    %1785 = vdwg.mxu0
    %v1802 = vunpack.c.l.b16 %v1632
    %v1803 = vunpack.c.l.b16 %v1633
    %v1804 = vunpack.c.l.b16 %v1634
    %v1805 = vunpack.c.l.b16 %v1635
    %v1806 = vunpack.c.l.b16 %v1636
    %v1807 = vunpack.c.l.b16 %v1637
    %v1808 = vunpack.c.l.b16 %v1638
    %v1809 = vunpack.c.l.b16 %v1639
    %v1810 = vunpack.c.l.b16 %v1640
    %v1811 = vunpack.c.l.b16 %v1641
    %v1812 = vunpack.c.l.b16 %v1642
    %v1813 = vunpack.c.l.b16 %v1643
    %v1814 = vunpack.c.l.b16 %v1644
    %v1815 = vunpack.c.l.b16 %v1645
    %v1816 = vunpack.c.l.b16 %v1646
    %v1817 = vunpack.c.l.b16 %v1647
    %v1818 = vpack.c.b16 %v1803, %v1802
    %v1819 = vpack.c.b16 %v1805, %v1804
    %v1820 = vpack.c.b16 %v1807, %v1806
    %v1821 = vpack.c.b16 %v1809, %v1808
    %v1822 = vpack.c.b16 %v1811, %v1810
    %v1823 = vpack.c.b16 %v1813, %v1812
    %v1824 = vpack.c.b16 %v1815, %v1814
    %v1825 = vpack.c.b16 %v1817, %v1816
    %1834 = vmatpush.bf16.msra.mxu0 %v1825
    %1835 = vmatpush.bf16.msra.mxu0 %v1824
    %1836 = vmatpush.bf16.msra.mxu0 %v1823
    %1837 = vmatpush.bf16.msra.mxu0 %v1822
    %1838 = vmatpush.bf16.msra.mxu0 %v1821
    %1839 = vmatpush.bf16.msra.mxu0 %v1820
    %1840 = vmatpush.bf16.msra.mxu0 %v1819
    %1841 = vmatpush.bf16.msra.mxu0 %v1818
    %1842 = vmatmul.bf16.gmra.mxu0 %v1624
    %v1843 = vpop.f32.mrf.mxu0
    %v1844 = vadd.f32 %v1747, %v1843
    %v1845 = vpop.f32.mrf.mxu0
    %v1846 = vadd.f32 %v1749, %v1845
    %1847 = vmatmul.bf16.gmra.mxu0 %v1625
    %v1848 = vpop.f32.mrf.mxu0
    %v1849 = vadd.f32 %v1752, %v1848
    %v1850 = vpop.f32.mrf.mxu0
    %v1851 = vadd.f32 %v1754, %v1850
    %1852 = vmatmul.bf16.gmra.mxu0 %v1626
    %v1853 = vpop.f32.mrf.mxu0
    %v1854 = vadd.f32 %v1757, %v1853
    %v1855 = vpop.f32.mrf.mxu0
    %v1856 = vadd.f32 %v1759, %v1855
    %1857 = vmatmul.bf16.gmra.mxu0 %v1627
    %v1858 = vpop.f32.mrf.mxu0
    %v1859 = vadd.f32 %v1762, %v1858
    %v1860 = vpop.f32.mrf.mxu0
    %v1861 = vadd.f32 %v1764, %v1860
    %1862 = vmatmul.bf16.gmra.mxu0 %v1628
    %v1863 = vpop.f32.mrf.mxu0
    %v1864 = vadd.f32 %v1767, %v1863
    %v1865 = vpop.f32.mrf.mxu0
    %v1866 = vadd.f32 %v1769, %v1865
    %1867 = vmatmul.bf16.gmra.mxu0 %v1629
    %v1868 = vpop.f32.mrf.mxu0
    %v1869 = vadd.f32 %v1772, %v1868
    %v1870 = vpop.f32.mrf.mxu0
    %v1871 = vadd.f32 %v1774, %v1870
    %1872 = vmatmul.bf16.gmra.mxu0 %v1630
    %v1873 = vpop.f32.mrf.mxu0
    %v1874 = vadd.f32 %v1777, %v1873
    %v1875 = vpop.f32.mrf.mxu0
    %v1876 = vadd.f32 %v1779, %v1875
    %1877 = vmatmul.bf16.gmra.mxu0 %v1631
    %v1878 = vpop.f32.mrf.mxu0
    %v1879 = vadd.f32 %v1782, %v1878
    %v1880 = vpop.f32.mrf.mxu0
    %v1881 = vadd.f32 %v1784, %v1880
    %1882 = vdwg.mxu0
    %v1883 = vld [vmem:[#allocation2 + $0x2] sm:$0xff]
    %v1884 = vld [vmem:[#allocation2 + $0x12] sm:$0xff]
    %v1885 = vld [vmem:[#allocation2 + $0x22] sm:$0xff]
    %v1886 = vld [vmem:[#allocation2 + $0x32] sm:$0xff]
    %v1887 = vld [vmem:[#allocation2 + $0x42] sm:$0xff]
    %v1888 = vld [vmem:[#allocation2 + $0x52] sm:$0xff]
    %v1889 = vld [vmem:[#allocation2 + $0x62] sm:$0xff]
    %v1890 = vld [vmem:[#allocation2 + $0x72] sm:$0xff]
    %v1891 = vld [vmem:[#allocation2 + $0xa2] sm:$0xff]
    %v1892 = vld [vmem:[#allocation2 + $0xb2] sm:$0xff]
    %v1893 = vld [vmem:[#allocation2 + $0xc2] sm:$0xff]
    %v1894 = vld [vmem:[#allocation2 + $0xd2] sm:$0xff]
    %v1895 = vld [vmem:[#allocation2 + $0xe2] sm:$0xff]
    %v1896 = vld [vmem:[#allocation2 + $0xf2] sm:$0xff]
    %v1897 = vld [vmem:[#allocation2 + $0x102] sm:$0xff]
    %v1898 = vld [vmem:[#allocation2 + $0x112] sm:$0xff]
    %v1899 = vpack.c.bf16 %v1884, %v1883
    %v1900 = vpack.c.bf16 %v1886, %v1885
    %v1901 = vpack.c.bf16 %v1888, %v1887
    %v1902 = vpack.c.bf16 %v1890, %v1889
    %v1903 = vpack.c.bf16 %v1892, %v1891
    %v1904 = vpack.c.bf16 %v1894, %v1893
    %v1905 = vpack.c.bf16 %v1896, %v1895
    %v1906 = vpack.c.bf16 %v1898, %v1897
    %s1907 = scalar_lea.vmem %s5, 128
    %v1908 = vld [vmem:[%s1907] sm:$0xf]
    %v1909 = vld [vmem:[%s1907 + $0x4] sm:$0xf]
    %v1910 = vld [vmem:[%s1907 + $0x8] sm:$0xf]
    %v1911 = vld [vmem:[%s1907 + $0xc] sm:$0xf]
    %v1912 = vld [vmem:[%s1907 + $0x10] sm:$0xf]
    %v1913 = vld [vmem:[%s1907 + $0x14] sm:$0xf]
    %v1914 = vld [vmem:[%s1907 + $0x18] sm:$0xf]
    %v1915 = vld [vmem:[%s1907 + $0x1c] sm:$0xf]
    %v1916 = vld [vmem:[%s1907 + $0x20] sm:$0xf]
    %v1917 = vld [vmem:[%s1907 + $0x24] sm:$0xf]
    %v1918 = vld [vmem:[%s1907 + $0x28] sm:$0xf]
    %v1919 = vld [vmem:[%s1907 + $0x2c] sm:$0xf]
    %v1920 = vld [vmem:[%s1907 + $0x30] sm:$0xf]
    %v1921 = vld [vmem:[%s1907 + $0x34] sm:$0xf]
    %v1922 = vld [vmem:[%s1907 + $0x38] sm:$0xf]
    %v1923 = vld [vmem:[%s1907 + $0x3c] sm:$0xf]
    %v1940 = vunpack.c.l.b16 %v1908
    %v1941 = vunpack.c.l.b16 %v1909
    %v1942 = vunpack.c.l.b16 %v1910
    %v1943 = vunpack.c.l.b16 %v1911
    %v1944 = vunpack.c.l.b16 %v1912
    %v1945 = vunpack.c.l.b16 %v1913
    %v1946 = vunpack.c.l.b16 %v1914
    %v1947 = vunpack.c.l.b16 %v1915
    %v1948 = vunpack.c.l.b16 %v1916
    %v1949 = vunpack.c.l.b16 %v1917
    %v1950 = vunpack.c.l.b16 %v1918
    %v1951 = vunpack.c.l.b16 %v1919
    %v1952 = vunpack.c.l.b16 %v1920
    %v1953 = vunpack.c.l.b16 %v1921
    %v1954 = vunpack.c.l.b16 %v1922
    %v1955 = vunpack.c.l.b16 %v1923
    %v1956 = vpack.c.b16 %v1941, %v1940
    %v1957 = vpack.c.b16 %v1943, %v1942
    %v1958 = vpack.c.b16 %v1945, %v1944
    %v1959 = vpack.c.b16 %v1947, %v1946
    %v1960 = vpack.c.b16 %v1949, %v1948
    %v1961 = vpack.c.b16 %v1951, %v1950
    %v1962 = vpack.c.b16 %v1953, %v1952
    %v1963 = vpack.c.b16 %v1955, %v1954
    %1972 = vmatpush.bf16.msra.mxu0 %v1963
    %1973 = vmatpush.bf16.msra.mxu0 %v1962
    %1974 = vmatpush.bf16.msra.mxu0 %v1961
    %1975 = vmatpush.bf16.msra.mxu0 %v1960
    %1976 = vmatpush.bf16.msra.mxu0 %v1959
    %1977 = vmatpush.bf16.msra.mxu0 %v1958
    %1978 = vmatpush.bf16.msra.mxu0 %v1957
    %1979 = vmatpush.bf16.msra.mxu0 %v1956
    %1980 = vmatmul.bf16.gmra.mxu0 %v1899
    %v1981 = vpop.f32.mrf.mxu0
    %v1982 = vadd.f32 0.0, %v1981
    %v1983 = vpop.f32.mrf.mxu0
    %v1984 = vadd.f32 0.0, %v1983
    %1985 = vmatmul.bf16.gmra.mxu0 %v1900
    %v1986 = vpop.f32.mrf.mxu0
    %v1987 = vadd.f32 0.0, %v1986
    %v1988 = vpop.f32.mrf.mxu0
    %v1989 = vadd.f32 0.0, %v1988
    %1990 = vmatmul.bf16.gmra.mxu0 %v1901
    %v1991 = vpop.f32.mrf.mxu0
    %v1992 = vadd.f32 0.0, %v1991
    %v1993 = vpop.f32.mrf.mxu0
    %v1994 = vadd.f32 0.0, %v1993
    %1995 = vmatmul.bf16.gmra.mxu0 %v1902
    %v1996 = vpop.f32.mrf.mxu0
    %v1997 = vadd.f32 0.0, %v1996
    %v1998 = vpop.f32.mrf.mxu0
    %v1999 = vadd.f32 0.0, %v1998
    %2000 = vmatmul.bf16.gmra.mxu0 %v1903
    %v2001 = vpop.f32.mrf.mxu0
    %v2002 = vadd.f32 0.0, %v2001
    %v2003 = vpop.f32.mrf.mxu0
    %v2004 = vadd.f32 0.0, %v2003
    %2005 = vmatmul.bf16.gmra.mxu0 %v1904
    %v2006 = vpop.f32.mrf.mxu0
    %v2007 = vadd.f32 0.0, %v2006
    %v2008 = vpop.f32.mrf.mxu0
    %v2009 = vadd.f32 0.0, %v2008
    %2010 = vmatmul.bf16.gmra.mxu0 %v1905
    %v2011 = vpop.f32.mrf.mxu0
    %v2012 = vadd.f32 0.0, %v2011
    %v2013 = vpop.f32.mrf.mxu0
    %v2014 = vadd.f32 0.0, %v2013
    %2015 = vmatmul.bf16.gmra.mxu0 %v1906
    %v2016 = vpop.f32.mrf.mxu0
    %v2017 = vadd.f32 0.0, %v2016
    %v2018 = vpop.f32.mrf.mxu0
    %v2019 = vadd.f32 0.0, %v2018
    %2020 = vdwg.mxu0
    %v2021 = vadd.f32 %v1844, %v1982
    %v2022 = vadd.f32 %v1846, %v1984
    %v2023 = vadd.f32 %v1849, %v1987
    %v2024 = vadd.f32 %v1851, %v1989
    %v2025 = vadd.f32 %v1854, %v1992
    %v2026 = vadd.f32 %v1856, %v1994
    %v2027 = vadd.f32 %v1859, %v1997
    %v2028 = vadd.f32 %v1861, %v1999
    %v2029 = vadd.f32 %v1864, %v2002
    %v2030 = vadd.f32 %v1866, %v2004
    %v2031 = vadd.f32 %v1869, %v2007
    %v2032 = vadd.f32 %v1871, %v2009
    %v2033 = vadd.f32 %v1874, %v2012
    %v2034 = vadd.f32 %v1876, %v2014
    %v2035 = vadd.f32 %v1879, %v2017
    %v2036 = vadd.f32 %v1881, %v2019
    %v2037 = vld [vmem:[%s1591] sm:$0xff]
    %v2038 = vld [vmem:[%s1591 + $0x10] sm:$0xff]
    %v2039 = vld [vmem:[%s1591 + $0x20] sm:$0xff]
    %v2040 = vld [vmem:[%s1591 + $0x30] sm:$0xff]
    %v2041 = vld [vmem:[%s1591 + $0x40] sm:$0xff]
    %v2042 = vld [vmem:[%s1591 + $0x50] sm:$0xff]
    %v2043 = vld [vmem:[%s1591 + $0x60] sm:$0xff]
    %v2044 = vld [vmem:[%s1591 + $0x70] sm:$0xff]
    %v2045 = vld [vmem:[%s1591 + $0xa0] sm:$0xff]
    %v2046 = vld [vmem:[%s1591 + $0xb0] sm:$0xff]
    %v2047 = vld [vmem:[%s1591 + $0xc0] sm:$0xff]
    %v2048 = vld [vmem:[%s1591 + $0xd0] sm:$0xff]
    %v2049 = vld [vmem:[%s1591 + $0xe0] sm:$0xff]
    %v2050 = vld [vmem:[%s1591 + $0xf0] sm:$0xff]
    %v2051 = vld [vmem:[%s1591 + $0x100] sm:$0xff]
    %v2052 = vld [vmem:[%s1591 + $0x110] sm:$0xff]
    %v2053 = vpack.c.bf16 %v2038, %v2037
    %v2054 = vpack.c.bf16 %v2040, %v2039
    %v2055 = vpack.c.bf16 %v2042, %v2041
    %v2056 = vpack.c.bf16 %v2044, %v2043
    %v2057 = vpack.c.bf16 %v2046, %v2045
    %v2058 = vpack.c.bf16 %v2048, %v2047
    %v2059 = vpack.c.bf16 %v2050, %v2049
    %v2060 = vpack.c.bf16 %v2052, %v2051
    %s2061 = scalar_lea.vmem %s5, 192
    %v2062 = vld [vmem:[%s2061] sm:$0xf]
    %v2063 = vld [vmem:[%s2061 + $0x4] sm:$0xf]
    %v2064 = vld [vmem:[%s2061 + $0x8] sm:$0xf]
    %v2065 = vld [vmem:[%s2061 + $0xc] sm:$0xf]
    %v2066 = vld [vmem:[%s2061 + $0x10] sm:$0xf]
    %v2067 = vld [vmem:[%s2061 + $0x14] sm:$0xf]
    %v2068 = vld [vmem:[%s2061 + $0x18] sm:$0xf]
    %v2069 = vld [vmem:[%s2061 + $0x1c] sm:$0xf]
    %v2070 = vld [vmem:[%s2061 + $0x20] sm:$0xf]
    %v2071 = vld [vmem:[%s2061 + $0x24] sm:$0xf]
    %v2072 = vld [vmem:[%s2061 + $0x28] sm:$0xf]
    %v2073 = vld [vmem:[%s2061 + $0x2c] sm:$0xf]
    %v2074 = vld [vmem:[%s2061 + $0x30] sm:$0xf]
    %v2075 = vld [vmem:[%s2061 + $0x34] sm:$0xf]
    %v2076 = vld [vmem:[%s2061 + $0x38] sm:$0xf]
    %v2077 = vld [vmem:[%s2061 + $0x3c] sm:$0xf]
    %v2094 = vunpack.c.l.b16 %v2062
    %v2095 = vunpack.c.l.b16 %v2063
    %v2096 = vunpack.c.l.b16 %v2064
    %v2097 = vunpack.c.l.b16 %v2065
    %v2098 = vunpack.c.l.b16 %v2066
    %v2099 = vunpack.c.l.b16 %v2067
    %v2100 = vunpack.c.l.b16 %v2068
    %v2101 = vunpack.c.l.b16 %v2069
    %v2102 = vunpack.c.l.b16 %v2070
    %v2103 = vunpack.c.l.b16 %v2071
    %v2104 = vunpack.c.l.b16 %v2072
    %v2105 = vunpack.c.l.b16 %v2073
    %v2106 = vunpack.c.l.b16 %v2074
    %v2107 = vunpack.c.l.b16 %v2075
    %v2108 = vunpack.c.l.b16 %v2076
    %v2109 = vunpack.c.l.b16 %v2077
    %v2110 = vpack.c.b16 %v2095, %v2094
    %v2111 = vpack.c.b16 %v2097, %v2096
    %v2112 = vpack.c.b16 %v2099, %v2098
    %v2113 = vpack.c.b16 %v2101, %v2100
    %v2114 = vpack.c.b16 %v2103, %v2102
    %v2115 = vpack.c.b16 %v2105, %v2104
    %v2116 = vpack.c.b16 %v2107, %v2106
    %v2117 = vpack.c.b16 %v2109, %v2108
    %2126 = vmatpush.bf16.msra.mxu0 %v2117
    %2127 = vmatpush.bf16.msra.mxu0 %v2116
    %2128 = vmatpush.bf16.msra.mxu0 %v2115
    %2129 = vmatpush.bf16.msra.mxu0 %v2114
    %2130 = vmatpush.bf16.msra.mxu0 %v2113
    %2131 = vmatpush.bf16.msra.mxu0 %v2112
    %2132 = vmatpush.bf16.msra.mxu0 %v2111
    %2133 = vmatpush.bf16.msra.mxu0 %v2110
    %2134 = vmatmul.bf16.gmra.mxu0 %v2053
    %v2135 = vpop.f32.mrf.mxu0
    %v2136 = vadd.f32 0.0, %v2135
    %v2137 = vpop.f32.mrf.mxu0
    %v2138 = vadd.f32 0.0, %v2137
    %2139 = vmatmul.bf16.gmra.mxu0 %v2054
    %v2140 = vpop.f32.mrf.mxu0
    %v2141 = vadd.f32 0.0, %v2140
    %v2142 = vpop.f32.mrf.mxu0
    %v2143 = vadd.f32 0.0, %v2142
    %2144 = vmatmul.bf16.gmra.mxu0 %v2055
    %v2145 = vpop.f32.mrf.mxu0
    %v2146 = vadd.f32 0.0, %v2145
    %v2147 = vpop.f32.mrf.mxu0
    %v2148 = vadd.f32 0.0, %v2147
    %2149 = vmatmul.bf16.gmra.mxu0 %v2056
    %v2150 = vpop.f32.mrf.mxu0
    %v2151 = vadd.f32 0.0, %v2150
    %v2152 = vpop.f32.mrf.mxu0
    %v2153 = vadd.f32 0.0, %v2152
    %2154 = vmatmul.bf16.gmra.mxu0 %v2057
    %v2155 = vpop.f32.mrf.mxu0
    %v2156 = vadd.f32 0.0, %v2155
    %v2157 = vpop.f32.mrf.mxu0
    %v2158 = vadd.f32 0.0, %v2157
    %2159 = vmatmul.bf16.gmra.mxu0 %v2058
    %v2160 = vpop.f32.mrf.mxu0
    %v2161 = vadd.f32 0.0, %v2160
    %v2162 = vpop.f32.mrf.mxu0
    %v2163 = vadd.f32 0.0, %v2162
    %2164 = vmatmul.bf16.gmra.mxu0 %v2059
    %v2165 = vpop.f32.mrf.mxu0
    %v2166 = vadd.f32 0.0, %v2165
    %v2167 = vpop.f32.mrf.mxu0
    %v2168 = vadd.f32 0.0, %v2167
    %2169 = vmatmul.bf16.gmra.mxu0 %v2060
    %v2170 = vpop.f32.mrf.mxu0
    %v2171 = vadd.f32 0.0, %v2170
    %v2172 = vpop.f32.mrf.mxu0
    %v2173 = vadd.f32 0.0, %v2172
    %2174 = vdwg.mxu0
    %v2175 = vadd.f32 %v2021, %v2136
    %v2176 = vadd.f32 %v2022, %v2138
    %v2177 = vadd.f32 %v2023, %v2141
    %v2178 = vadd.f32 %v2024, %v2143
    %v2179 = vadd.f32 %v2025, %v2146
    %v2180 = vadd.f32 %v2026, %v2148
    %v2181 = vadd.f32 %v2027, %v2151
    %v2182 = vadd.f32 %v2028, %v2153
    %v2183 = vadd.f32 %v2029, %v2156
    %v2184 = vadd.f32 %v2030, %v2158
    %v2185 = vadd.f32 %v2031, %v2161
    %v2186 = vadd.f32 %v2032, %v2163
    %v2187 = vadd.f32 %v2033, %v2166
    %v2188 = vadd.f32 %v2034, %v2168
    %v2189 = vadd.f32 %v2035, %v2171
    %v2190 = vadd.f32 %v2036, %v2173
    %v2191 = vld [vmem:[%s1591 + $0x1] sm:$0xff]
    %v2192 = vld [vmem:[%s1591 + $0x11] sm:$0xff]
    %v2193 = vld [vmem:[%s1591 + $0x21] sm:$0xff]
    %v2194 = vld [vmem:[%s1591 + $0x31] sm:$0xff]
    %v2195 = vld [vmem:[%s1591 + $0x41] sm:$0xff]
    %v2196 = vld [vmem:[%s1591 + $0x51] sm:$0xff]
    %v2197 = vld [vmem:[%s1591 + $0x61] sm:$0xff]
    %v2198 = vld [vmem:[%s1591 + $0x71] sm:$0xff]
    %v2199 = vld [vmem:[%s1591 + $0xa1] sm:$0xff]
    %v2200 = vld [vmem:[%s1591 + $0xb1] sm:$0xff]
    %v2201 = vld [vmem:[%s1591 + $0xc1] sm:$0xff]
    %v2202 = vld [vmem:[%s1591 + $0xd1] sm:$0xff]
    %v2203 = vld [vmem:[%s1591 + $0xe1] sm:$0xff]
    %v2204 = vld [vmem:[%s1591 + $0xf1] sm:$0xff]
    %v2205 = vld [vmem:[%s1591 + $0x101] sm:$0xff]
    %v2206 = vld [vmem:[%s1591 + $0x111] sm:$0xff]
    %v2207 = vpack.c.bf16 %v2192, %v2191
    %v2208 = vpack.c.bf16 %v2194, %v2193
    %v2209 = vpack.c.bf16 %v2196, %v2195
    %v2210 = vpack.c.bf16 %v2198, %v2197
    %v2211 = vpack.c.bf16 %v2200, %v2199
    %v2212 = vpack.c.bf16 %v2202, %v2201
    %v2213 = vpack.c.bf16 %v2204, %v2203
    %v2214 = vpack.c.bf16 %v2206, %v2205
    %s2215 = scalar_lea.vmem %s5, 256
    %v2216 = vld [vmem:[%s2215] sm:$0xf]
    %v2217 = vld [vmem:[%s2215 + $0x4] sm:$0xf]
    %v2218 = vld [vmem:[%s2215 + $0x8] sm:$0xf]
    %v2219 = vld [vmem:[%s2215 + $0xc] sm:$0xf]
    %v2220 = vld [vmem:[%s2215 + $0x10] sm:$0xf]
    %v2221 = vld [vmem:[%s2215 + $0x14] sm:$0xf]
    %v2222 = vld [vmem:[%s2215 + $0x18] sm:$0xf]
    %v2223 = vld [vmem:[%s2215 + $0x1c] sm:$0xf]
    %v2224 = vld [vmem:[%s2215 + $0x20] sm:$0xf]
    %v2225 = vld [vmem:[%s2215 + $0x24] sm:$0xf]
    %v2226 = vld [vmem:[%s2215 + $0x28] sm:$0xf]
    %v2227 = vld [vmem:[%s2215 + $0x2c] sm:$0xf]
    %v2228 = vld [vmem:[%s2215 + $0x30] sm:$0xf]
    %v2229 = vld [vmem:[%s2215 + $0x34] sm:$0xf]
    %v2230 = vld [vmem:[%s2215 + $0x38] sm:$0xf]
    %v2231 = vld [vmem:[%s2215 + $0x3c] sm:$0xf]
    %v2248 = vunpack.c.l.b16 %v2216
    %v2249 = vunpack.c.l.b16 %v2217
    %v2250 = vunpack.c.l.b16 %v2218
    %v2251 = vunpack.c.l.b16 %v2219
    %v2252 = vunpack.c.l.b16 %v2220
    %v2253 = vunpack.c.l.b16 %v2221
    %v2254 = vunpack.c.l.b16 %v2222
    %v2255 = vunpack.c.l.b16 %v2223
    %v2256 = vunpack.c.l.b16 %v2224
    %v2257 = vunpack.c.l.b16 %v2225
    %v2258 = vunpack.c.l.b16 %v2226
    %v2259 = vunpack.c.l.b16 %v2227
    %v2260 = vunpack.c.l.b16 %v2228
    %v2261 = vunpack.c.l.b16 %v2229
    %v2262 = vunpack.c.l.b16 %v2230
    %v2263 = vunpack.c.l.b16 %v2231
    %v2264 = vpack.c.b16 %v2249, %v2248
    %v2265 = vpack.c.b16 %v2251, %v2250
    %v2266 = vpack.c.b16 %v2253, %v2252
    %v2267 = vpack.c.b16 %v2255, %v2254
    %v2268 = vpack.c.b16 %v2257, %v2256
    %v2269 = vpack.c.b16 %v2259, %v2258
    %v2270 = vpack.c.b16 %v2261, %v2260
    %v2271 = vpack.c.b16 %v2263, %v2262
    %2280 = vmatpush.bf16.msra.mxu0 %v2271
    %2281 = vmatpush.bf16.msra.mxu0 %v2270
    %2282 = vmatpush.bf16.msra.mxu0 %v2269
    %2283 = vmatpush.bf16.msra.mxu0 %v2268
    %2284 = vmatpush.bf16.msra.mxu0 %v2267
    %2285 = vmatpush.bf16.msra.mxu0 %v2266
    %2286 = vmatpush.bf16.msra.mxu0 %v2265
    %2287 = vmatpush.bf16.msra.mxu0 %v2264
    %2288 = vmatmul.bf16.gmra.mxu0 %v2207
    %v2289 = vpop.f32.mrf.mxu0
    %v2290 = vadd.f32 0.0, %v2289
    %v2291 = vpop.f32.mrf.mxu0
    %v2292 = vadd.f32 0.0, %v2291
    %2293 = vmatmul.bf16.gmra.mxu0 %v2208
    %v2294 = vpop.f32.mrf.mxu0
    %v2295 = vadd.f32 0.0, %v2294
    %v2296 = vpop.f32.mrf.mxu0
    %v2297 = vadd.f32 0.0, %v2296
    %2298 = vmatmul.bf16.gmra.mxu0 %v2209
    %v2299 = vpop.f32.mrf.mxu0
    %v2300 = vadd.f32 0.0, %v2299
    %v2301 = vpop.f32.mrf.mxu0
    %v2302 = vadd.f32 0.0, %v2301
    %2303 = vmatmul.bf16.gmra.mxu0 %v2210
    %v2304 = vpop.f32.mrf.mxu0
    %v2305 = vadd.f32 0.0, %v2304
    %v2306 = vpop.f32.mrf.mxu0
    %v2307 = vadd.f32 0.0, %v2306
    %2308 = vmatmul.bf16.gmra.mxu0 %v2211
    %v2309 = vpop.f32.mrf.mxu0
    %v2310 = vadd.f32 0.0, %v2309
    %v2311 = vpop.f32.mrf.mxu0
    %v2312 = vadd.f32 0.0, %v2311
    %2313 = vmatmul.bf16.gmra.mxu0 %v2212
    %v2314 = vpop.f32.mrf.mxu0
    %v2315 = vadd.f32 0.0, %v2314
    %v2316 = vpop.f32.mrf.mxu0
    %v2317 = vadd.f32 0.0, %v2316
    %2318 = vmatmul.bf16.gmra.mxu0 %v2213
    %v2319 = vpop.f32.mrf.mxu0
    %v2320 = vadd.f32 0.0, %v2319
    %v2321 = vpop.f32.mrf.mxu0
    %v2322 = vadd.f32 0.0, %v2321
    %2323 = vmatmul.bf16.gmra.mxu0 %v2214
    %v2324 = vpop.f32.mrf.mxu0
    %v2325 = vadd.f32 0.0, %v2324
    %v2326 = vpop.f32.mrf.mxu0
    %v2327 = vadd.f32 0.0, %v2326
    %2328 = vdwg.mxu0
    %v2329 = vadd.f32 %v2175, %v2290
    %v2330 = vadd.f32 %v2176, %v2292
    %v2331 = vadd.f32 %v2177, %v2295
    %v2332 = vadd.f32 %v2178, %v2297
    %v2333 = vadd.f32 %v2179, %v2300
    %v2334 = vadd.f32 %v2180, %v2302
    %v2335 = vadd.f32 %v2181, %v2305
    %v2336 = vadd.f32 %v2182, %v2307
    %v2337 = vadd.f32 %v2183, %v2310
    %v2338 = vadd.f32 %v2184, %v2312
    %v2339 = vadd.f32 %v2185, %v2315
    %v2340 = vadd.f32 %v2186, %v2317
    %v2341 = vadd.f32 %v2187, %v2320
    %v2342 = vadd.f32 %v2188, %v2322
    %v2343 = vadd.f32 %v2189, %v2325
    %v2344 = vadd.f32 %v2190, %v2327
    %v2345 = vld [vmem:[%s1591 + $0x2] sm:$0xff]
    %v2346 = vld [vmem:[%s1591 + $0x12] sm:$0xff]
    %v2347 = vld [vmem:[%s1591 + $0x22] sm:$0xff]
    %v2348 = vld [vmem:[%s1591 + $0x32] sm:$0xff]
    %v2349 = vld [vmem:[%s1591 + $0x42] sm:$0xff]
    %v2350 = vld [vmem:[%s1591 + $0x52] sm:$0xff]
    %v2351 = vld [vmem:[%s1591 + $0x62] sm:$0xff]
    %v2352 = vld [vmem:[%s1591 + $0x72] sm:$0xff]
    %v2353 = vld [vmem:[%s1591 + $0xa2] sm:$0xff]
    %v2354 = vld [vmem:[%s1591 + $0xb2] sm:$0xff]
    %v2355 = vld [vmem:[%s1591 + $0xc2] sm:$0xff]
    %v2356 = vld [vmem:[%s1591 + $0xd2] sm:$0xff]
    %v2357 = vld [vmem:[%s1591 + $0xe2] sm:$0xff]
    %v2358 = vld [vmem:[%s1591 + $0xf2] sm:$0xff]
    %v2359 = vld [vmem:[%s1591 + $0x102] sm:$0xff]
    %v2360 = vld [vmem:[%s1591 + $0x112] sm:$0xff]
    %v2361 = vpack.c.bf16 %v2346, %v2345
    %v2362 = vpack.c.bf16 %v2348, %v2347
    %v2363 = vpack.c.bf16 %v2350, %v2349
    %v2364 = vpack.c.bf16 %v2352, %v2351
    %v2365 = vpack.c.bf16 %v2354, %v2353
    %v2366 = vpack.c.bf16 %v2356, %v2355
    %v2367 = vpack.c.bf16 %v2358, %v2357
    %v2368 = vpack.c.bf16 %v2360, %v2359
    %s2369 = scalar_lea.vmem %s5, 320
    %v2370 = vld [vmem:[%s2369] sm:$0xf]
    %v2371 = vld [vmem:[%s2369 + $0x4] sm:$0xf]
    %v2372 = vld [vmem:[%s2369 + $0x8] sm:$0xf]
    %v2373 = vld [vmem:[%s2369 + $0xc] sm:$0xf]
    %v2374 = vld [vmem:[%s2369 + $0x10] sm:$0xf]
    %v2375 = vld [vmem:[%s2369 + $0x14] sm:$0xf]
    %v2376 = vld [vmem:[%s2369 + $0x18] sm:$0xf]
    %v2377 = vld [vmem:[%s2369 + $0x1c] sm:$0xf]
    %v2378 = vld [vmem:[%s2369 + $0x20] sm:$0xf]
    %v2379 = vld [vmem:[%s2369 + $0x24] sm:$0xf]
    %v2380 = vld [vmem:[%s2369 + $0x28] sm:$0xf]
    %v2381 = vld [vmem:[%s2369 + $0x2c] sm:$0xf]
    %v2382 = vld [vmem:[%s2369 + $0x30] sm:$0xf]
    %v2383 = vld [vmem:[%s2369 + $0x34] sm:$0xf]
    %v2384 = vld [vmem:[%s2369 + $0x38] sm:$0xf]
    %v2385 = vld [vmem:[%s2369 + $0x3c] sm:$0xf]
    %v2402 = vunpack.c.l.b16 %v2370
    %v2403 = vunpack.c.l.b16 %v2371
    %v2404 = vunpack.c.l.b16 %v2372
    %v2405 = vunpack.c.l.b16 %v2373
    %v2406 = vunpack.c.l.b16 %v2374
    %v2407 = vunpack.c.l.b16 %v2375
    %v2408 = vunpack.c.l.b16 %v2376
    %v2409 = vunpack.c.l.b16 %v2377
    %v2410 = vunpack.c.l.b16 %v2378
    %v2411 = vunpack.c.l.b16 %v2379
    %v2412 = vunpack.c.l.b16 %v2380
    %v2413 = vunpack.c.l.b16 %v2381
    %v2414 = vunpack.c.l.b16 %v2382
    %v2415 = vunpack.c.l.b16 %v2383
    %v2416 = vunpack.c.l.b16 %v2384
    %v2417 = vunpack.c.l.b16 %v2385
    %v2418 = vpack.c.b16 %v2403, %v2402
    %v2419 = vpack.c.b16 %v2405, %v2404
    %v2420 = vpack.c.b16 %v2407, %v2406
    %v2421 = vpack.c.b16 %v2409, %v2408
    %v2422 = vpack.c.b16 %v2411, %v2410
    %v2423 = vpack.c.b16 %v2413, %v2412
    %v2424 = vpack.c.b16 %v2415, %v2414
    %v2425 = vpack.c.b16 %v2417, %v2416
    %2434 = vmatpush.bf16.msra.mxu0 %v2425
    %2435 = vmatpush.bf16.msra.mxu0 %v2424
    %2436 = vmatpush.bf16.msra.mxu0 %v2423
    %2437 = vmatpush.bf16.msra.mxu0 %v2422
    %2438 = vmatpush.bf16.msra.mxu0 %v2421
    %2439 = vmatpush.bf16.msra.mxu0 %v2420
    %2440 = vmatpush.bf16.msra.mxu0 %v2419
    %2441 = vmatpush.bf16.msra.mxu0 %v2418
    %2442 = vmatmul.bf16.gmra.mxu0 %v2361
    %v2443 = vpop.f32.mrf.mxu0
    %v2444 = vadd.f32 0.0, %v2443
    %v2445 = vpop.f32.mrf.mxu0
    %v2446 = vadd.f32 0.0, %v2445
    %2447 = vmatmul.bf16.gmra.mxu0 %v2362
    %v2448 = vpop.f32.mrf.mxu0
    %v2449 = vadd.f32 0.0, %v2448
    %v2450 = vpop.f32.mrf.mxu0
    %v2451 = vadd.f32 0.0, %v2450
    %2452 = vmatmul.bf16.gmra.mxu0 %v2363
    %v2453 = vpop.f32.mrf.mxu0
    %v2454 = vadd.f32 0.0, %v2453
    %v2455 = vpop.f32.mrf.mxu0
    %v2456 = vadd.f32 0.0, %v2455
    %2457 = vmatmul.bf16.gmra.mxu0 %v2364
    %v2458 = vpop.f32.mrf.mxu0
    %v2459 = vadd.f32 0.0, %v2458
    %v2460 = vpop.f32.mrf.mxu0
    %v2461 = vadd.f32 0.0, %v2460
    %2462 = vmatmul.bf16.gmra.mxu0 %v2365
    %v2463 = vpop.f32.mrf.mxu0
    %v2464 = vadd.f32 0.0, %v2463
    %v2465 = vpop.f32.mrf.mxu0
    %v2466 = vadd.f32 0.0, %v2465
    %2467 = vmatmul.bf16.gmra.mxu0 %v2366
    %v2468 = vpop.f32.mrf.mxu0
    %v2469 = vadd.f32 0.0, %v2468
    %v2470 = vpop.f32.mrf.mxu0
    %v2471 = vadd.f32 0.0, %v2470
    %2472 = vmatmul.bf16.gmra.mxu0 %v2367
    %v2473 = vpop.f32.mrf.mxu0
    %v2474 = vadd.f32 0.0, %v2473
    %v2475 = vpop.f32.mrf.mxu0
    %v2476 = vadd.f32 0.0, %v2475
    %2477 = vmatmul.bf16.gmra.mxu0 %v2368
    %v2478 = vpop.f32.mrf.mxu0
    %v2479 = vadd.f32 0.0, %v2478
    %v2480 = vpop.f32.mrf.mxu0
    %v2481 = vadd.f32 0.0, %v2480
    %2482 = vdwg.mxu0
    %v2483 = vadd.f32 %v2329, %v2444
    %v2484 = vadd.f32 %v2330, %v2446
    %v2485 = vadd.f32 %v2331, %v2449
    %v2486 = vadd.f32 %v2332, %v2451
    %v2487 = vadd.f32 %v2333, %v2454
    %v2488 = vadd.f32 %v2334, %v2456
    %v2489 = vadd.f32 %v2335, %v2459
    %v2490 = vadd.f32 %v2336, %v2461
    %v2491 = vadd.f32 %v2337, %v2464
    %v2492 = vadd.f32 %v2338, %v2466
    %v2493 = vadd.f32 %v2339, %v2469
    %v2494 = vadd.f32 %v2340, %v2471
    %v2495 = vadd.f32 %v2341, %v2474
    %v2496 = vadd.f32 %v2342, %v2476
    %v2497 = vadd.f32 %v2343, %v2479
    %v2498 = vadd.f32 %v2344, %v2481
    %s2499 = scalar_lea.vmem [#allocation2], 32
    %v2500 = vld [vmem:[%s2499] sm:$0xff]
    %v2501 = vld [vmem:[%s2499 + $0x10] sm:$0xff]
    %v2502 = vld [vmem:[%s2499 + $0x20] sm:$0xff]
    %v2503 = vld [vmem:[%s2499 + $0x30] sm:$0xff]
    %v2504 = vld [vmem:[%s2499 + $0x40] sm:$0xff]
    %v2505 = vld [vmem:[%s2499 + $0x50] sm:$0xff]
    %v2506 = vld [vmem:[%s2499 + $0x60] sm:$0xff]
    %v2507 = vld [vmem:[%s2499 + $0x70] sm:$0xff]
    %v2508 = vld [vmem:[%s2499 + $0xa0] sm:$0xff]
    %v2509 = vld [vmem:[%s2499 + $0xb0] sm:$0xff]
    %v2510 = vld [vmem:[%s2499 + $0xc0] sm:$0xff]
    %v2511 = vld [vmem:[%s2499 + $0xd0] sm:$0xff]
    %v2512 = vld [vmem:[%s2499 + $0xe0] sm:$0xff]
    %v2513 = vld [vmem:[%s2499 + $0xf0] sm:$0xff]
    %v2514 = vld [vmem:[%s2499 + $0x100] sm:$0xff]
    %v2515 = vld [vmem:[%s2499 + $0x110] sm:$0xff]
    %v2516 = vpack.c.bf16 %v2501, %v2500
    %v2517 = vpack.c.bf16 %v2503, %v2502
    %v2518 = vpack.c.bf16 %v2505, %v2504
    %v2519 = vpack.c.bf16 %v2507, %v2506
    %v2520 = vpack.c.bf16 %v2509, %v2508
    %v2521 = vpack.c.bf16 %v2511, %v2510
    %v2522 = vpack.c.bf16 %v2513, %v2512
    %v2523 = vpack.c.bf16 %v2515, %v2514
    %s2524 = scalar_lea.vmem %s5, 384
    %v2525 = vld [vmem:[%s2524] sm:$0xf]
    %v2526 = vld [vmem:[%s2524 + $0x4] sm:$0xf]
    %v2527 = vld [vmem:[%s2524 + $0x8] sm:$0xf]
    %v2528 = vld [vmem:[%s2524 + $0xc] sm:$0xf]
    %v2529 = vld [vmem:[%s2524 + $0x10] sm:$0xf]
    %v2530 = vld [vmem:[%s2524 + $0x14] sm:$0xf]
    %v2531 = vld [vmem:[%s2524 + $0x18] sm:$0xf]
    %v2532 = vld [vmem:[%s2524 + $0x1c] sm:$0xf]
    %v2533 = vld [vmem:[%s2524 + $0x20] sm:$0xf]
    %v2534 = vld [vmem:[%s2524 + $0x24] sm:$0xf]
    %v2535 = vld [vmem:[%s2524 + $0x28] sm:$0xf]
    %v2536 = vld [vmem:[%s2524 + $0x2c] sm:$0xf]
    %v2537 = vld [vmem:[%s2524 + $0x30] sm:$0xf]
    %v2538 = vld [vmem:[%s2524 + $0x34] sm:$0xf]
    %v2539 = vld [vmem:[%s2524 + $0x38] sm:$0xf]
    %v2540 = vld [vmem:[%s2524 + $0x3c] sm:$0xf]
    %v2557 = vunpack.c.l.b16 %v2525
    %v2558 = vunpack.c.l.b16 %v2526
    %v2559 = vunpack.c.l.b16 %v2527
    %v2560 = vunpack.c.l.b16 %v2528
    %v2561 = vunpack.c.l.b16 %v2529
    %v2562 = vunpack.c.l.b16 %v2530
    %v2563 = vunpack.c.l.b16 %v2531
    %v2564 = vunpack.c.l.b16 %v2532
    %v2565 = vunpack.c.l.b16 %v2533
    %v2566 = vunpack.c.l.b16 %v2534
    %v2567 = vunpack.c.l.b16 %v2535
    %v2568 = vunpack.c.l.b16 %v2536
    %v2569 = vunpack.c.l.b16 %v2537
    %v2570 = vunpack.c.l.b16 %v2538
    %v2571 = vunpack.c.l.b16 %v2539
    %v2572 = vunpack.c.l.b16 %v2540
    %v2573 = vpack.c.b16 %v2558, %v2557
    %v2574 = vpack.c.b16 %v2560, %v2559
    %v2575 = vpack.c.b16 %v2562, %v2561
    %v2576 = vpack.c.b16 %v2564, %v2563
    %v2577 = vpack.c.b16 %v2566, %v2565
    %v2578 = vpack.c.b16 %v2568, %v2567
    %v2579 = vpack.c.b16 %v2570, %v2569
    %v2580 = vpack.c.b16 %v2572, %v2571
    %2589 = vmatpush.bf16.msra.mxu0 %v2580
    %2590 = vmatpush.bf16.msra.mxu0 %v2579
    %2591 = vmatpush.bf16.msra.mxu0 %v2578
    %2592 = vmatpush.bf16.msra.mxu0 %v2577
    %2593 = vmatpush.bf16.msra.mxu0 %v2576
    %2594 = vmatpush.bf16.msra.mxu0 %v2575
    %2595 = vmatpush.bf16.msra.mxu0 %v2574
    %2596 = vmatpush.bf16.msra.mxu0 %v2573
    %2597 = vmatmul.bf16.gmra.mxu0 %v2516
    %v2598 = vpop.f32.mrf.mxu0
    %v2599 = vadd.f32 0.0, %v2598
    %v2600 = vpop.f32.mrf.mxu0
    %v2601 = vadd.f32 0.0, %v2600
    %2602 = vmatmul.bf16.gmra.mxu0 %v2517
    %v2603 = vpop.f32.mrf.mxu0
    %v2604 = vadd.f32 0.0, %v2603
    %v2605 = vpop.f32.mrf.mxu0
    %v2606 = vadd.f32 0.0, %v2605
    %2607 = vmatmul.bf16.gmra.mxu0 %v2518
    %v2608 = vpop.f32.mrf.mxu0
    %v2609 = vadd.f32 0.0, %v2608
    %v2610 = vpop.f32.mrf.mxu0
    %v2611 = vadd.f32 0.0, %v2610
    %2612 = vmatmul.bf16.gmra.mxu0 %v2519
    %v2613 = vpop.f32.mrf.mxu0
    %v2614 = vadd.f32 0.0, %v2613
    %v2615 = vpop.f32.mrf.mxu0
    %v2616 = vadd.f32 0.0, %v2615
    %2617 = vmatmul.bf16.gmra.mxu0 %v2520
    %v2618 = vpop.f32.mrf.mxu0
    %v2619 = vadd.f32 0.0, %v2618
    %v2620 = vpop.f32.mrf.mxu0
    %v2621 = vadd.f32 0.0, %v2620
    %2622 = vmatmul.bf16.gmra.mxu0 %v2521
    %v2623 = vpop.f32.mrf.mxu0
    %v2624 = vadd.f32 0.0, %v2623
    %v2625 = vpop.f32.mrf.mxu0
    %v2626 = vadd.f32 0.0, %v2625
    %2627 = vmatmul.bf16.gmra.mxu0 %v2522
    %v2628 = vpop.f32.mrf.mxu0
    %v2629 = vadd.f32 0.0, %v2628
    %v2630 = vpop.f32.mrf.mxu0
    %v2631 = vadd.f32 0.0, %v2630
    %2632 = vmatmul.bf16.gmra.mxu0 %v2523
    %v2633 = vpop.f32.mrf.mxu0
    %v2634 = vadd.f32 0.0, %v2633
    %v2635 = vpop.f32.mrf.mxu0
    %v2636 = vadd.f32 0.0, %v2635
    %2637 = vdwg.mxu0
    %v2638 = vadd.f32 %v2483, %v2599
    %v2639 = vadd.f32 %v2484, %v2601
    %v2640 = vadd.f32 %v2485, %v2604
    %v2641 = vadd.f32 %v2486, %v2606
    %v2642 = vadd.f32 %v2487, %v2609
    %v2643 = vadd.f32 %v2488, %v2611
    %v2644 = vadd.f32 %v2489, %v2614
    %v2645 = vadd.f32 %v2490, %v2616
    %v2646 = vadd.f32 %v2491, %v2619
    %v2647 = vadd.f32 %v2492, %v2621
    %v2648 = vadd.f32 %v2493, %v2624
    %v2649 = vadd.f32 %v2494, %v2626
    %v2650 = vadd.f32 %v2495, %v2629
    %v2651 = vadd.f32 %v2496, %v2631
    %v2652 = vadd.f32 %v2497, %v2634
    %v2653 = vadd.f32 %v2498, %v2636
    %v2654 = vld [vmem:[%s2499 + $0x1] sm:$0xff]
    %v2655 = vld [vmem:[%s2499 + $0x11] sm:$0xff]
    %v2656 = vld [vmem:[%s2499 + $0x21] sm:$0xff]
    %v2657 = vld [vmem:[%s2499 + $0x31] sm:$0xff]
    %v2658 = vld [vmem:[%s2499 + $0x41] sm:$0xff]
    %v2659 = vld [vmem:[%s2499 + $0x51] sm:$0xff]
    %v2660 = vld [vmem:[%s2499 + $0x61] sm:$0xff]
    %v2661 = vld [vmem:[%s2499 + $0x71] sm:$0xff]
    %v2662 = vld [vmem:[%s2499 + $0xa1] sm:$0xff]
    %v2663 = vld [vmem:[%s2499 + $0xb1] sm:$0xff]
    %v2664 = vld [vmem:[%s2499 + $0xc1] sm:$0xff]
    %v2665 = vld [vmem:[%s2499 + $0xd1] sm:$0xff]
    %v2666 = vld [vmem:[%s2499 + $0xe1] sm:$0xff]
    %v2667 = vld [vmem:[%s2499 + $0xf1] sm:$0xff]
    %v2668 = vld [vmem:[%s2499 + $0x101] sm:$0xff]
    %v2669 = vld [vmem:[%s2499 + $0x111] sm:$0xff]
    %v2670 = vpack.c.bf16 %v2655, %v2654
    %v2671 = vpack.c.bf16 %v2657, %v2656
    %v2672 = vpack.c.bf16 %v2659, %v2658
    %v2673 = vpack.c.bf16 %v2661, %v2660
    %v2674 = vpack.c.bf16 %v2663, %v2662
    %v2675 = vpack.c.bf16 %v2665, %v2664
    %v2676 = vpack.c.bf16 %v2667, %v2666
    %v2677 = vpack.c.bf16 %v2669, %v2668
    %s2678 = scalar_lea.vmem %s5, 448
    %v2679 = vld [vmem:[%s2678] sm:$0xf]
    %v2680 = vld [vmem:[%s2678 + $0x4] sm:$0xf]
    %v2681 = vld [vmem:[%s2678 + $0x8] sm:$0xf]
    %v2682 = vld [vmem:[%s2678 + $0xc] sm:$0xf]
    %v2683 = vld [vmem:[%s2678 + $0x10] sm:$0xf]
    %v2684 = vld [vmem:[%s2678 + $0x14] sm:$0xf]
    %v2685 = vld [vmem:[%s2678 + $0x18] sm:$0xf]
    %v2686 = vld [vmem:[%s2678 + $0x1c] sm:$0xf]
    %v2687 = vld [vmem:[%s2678 + $0x20] sm:$0xf]
    %v2688 = vld [vmem:[%s2678 + $0x24] sm:$0xf]
    %v2689 = vld [vmem:[%s2678 + $0x28] sm:$0xf]
    %v2690 = vld [vmem:[%s2678 + $0x2c] sm:$0xf]
    %v2691 = vld [vmem:[%s2678 + $0x30] sm:$0xf]
    %v2692 = vld [vmem:[%s2678 + $0x34] sm:$0xf]
    %v2693 = vld [vmem:[%s2678 + $0x38] sm:$0xf]
    %v2694 = vld [vmem:[%s2678 + $0x3c] sm:$0xf]
    %v2711 = vunpack.c.l.b16 %v2679
    %v2712 = vunpack.c.l.b16 %v2680
    %v2713 = vunpack.c.l.b16 %v2681
    %v2714 = vunpack.c.l.b16 %v2682
    %v2715 = vunpack.c.l.b16 %v2683
    %v2716 = vunpack.c.l.b16 %v2684
    %v2717 = vunpack.c.l.b16 %v2685
    %v2718 = vunpack.c.l.b16 %v2686
    %v2719 = vunpack.c.l.b16 %v2687
    %v2720 = vunpack.c.l.b16 %v2688
    %v2721 = vunpack.c.l.b16 %v2689
    %v2722 = vunpack.c.l.b16 %v2690
    %v2723 = vunpack.c.l.b16 %v2691
    %v2724 = vunpack.c.l.b16 %v2692
    %v2725 = vunpack.c.l.b16 %v2693
    %v2726 = vunpack.c.l.b16 %v2694
    %v2727 = vpack.c.b16 %v2712, %v2711
    %v2728 = vpack.c.b16 %v2714, %v2713
    %v2729 = vpack.c.b16 %v2716, %v2715
    %v2730 = vpack.c.b16 %v2718, %v2717
    %v2731 = vpack.c.b16 %v2720, %v2719
    %v2732 = vpack.c.b16 %v2722, %v2721
    %v2733 = vpack.c.b16 %v2724, %v2723
    %v2734 = vpack.c.b16 %v2726, %v2725
    %2743 = vmatpush.bf16.msra.mxu0 %v2734
    %2744 = vmatpush.bf16.msra.mxu0 %v2733
    %2745 = vmatpush.bf16.msra.mxu0 %v2732
    %2746 = vmatpush.bf16.msra.mxu0 %v2731
    %2747 = vmatpush.bf16.msra.mxu0 %v2730
    %2748 = vmatpush.bf16.msra.mxu0 %v2729
    %2749 = vmatpush.bf16.msra.mxu0 %v2728
    %2750 = vmatpush.bf16.msra.mxu0 %v2727
    %2751 = vmatmul.bf16.gmra.mxu0 %v2670
    %v2752 = vpop.f32.mrf.mxu0
    %v2753 = vadd.f32 0.0, %v2752
    %v2754 = vpop.f32.mrf.mxu0
    %v2755 = vadd.f32 0.0, %v2754
    %2756 = vmatmul.bf16.gmra.mxu0 %v2671
    %v2757 = vpop.f32.mrf.mxu0
    %v2758 = vadd.f32 0.0, %v2757
    %v2759 = vpop.f32.mrf.mxu0
    %v2760 = vadd.f32 0.0, %v2759
    %2761 = vmatmul.bf16.gmra.mxu0 %v2672
    %v2762 = vpop.f32.mrf.mxu0
    %v2763 = vadd.f32 0.0, %v2762
    %v2764 = vpop.f32.mrf.mxu0
    %v2765 = vadd.f32 0.0, %v2764
    %2766 = vmatmul.bf16.gmra.mxu0 %v2673
    %v2767 = vpop.f32.mrf.mxu0
    %v2768 = vadd.f32 0.0, %v2767
    %v2769 = vpop.f32.mrf.mxu0
    %v2770 = vadd.f32 0.0, %v2769
    %2771 = vmatmul.bf16.gmra.mxu0 %v2674
    %v2772 = vpop.f32.mrf.mxu0
    %v2773 = vadd.f32 0.0, %v2772
    %v2774 = vpop.f32.mrf.mxu0
    %v2775 = vadd.f32 0.0, %v2774
    %2776 = vmatmul.bf16.gmra.mxu0 %v2675
    %v2777 = vpop.f32.mrf.mxu0
    %v2778 = vadd.f32 0.0, %v2777
    %v2779 = vpop.f32.mrf.mxu0
    %v2780 = vadd.f32 0.0, %v2779
    %2781 = vmatmul.bf16.gmra.mxu0 %v2676
    %v2782 = vpop.f32.mrf.mxu0
    %v2783 = vadd.f32 0.0, %v2782
    %v2784 = vpop.f32.mrf.mxu0
    %v2785 = vadd.f32 0.0, %v2784
    %2786 = vmatmul.bf16.gmra.mxu0 %v2677
    %v2787 = vpop.f32.mrf.mxu0
    %v2788 = vadd.f32 0.0, %v2787
    %v2789 = vpop.f32.mrf.mxu0
    %v2790 = vadd.f32 0.0, %v2789
    %2791 = vdwg.mxu0
    %v2792 = vadd.f32 %v2638, %v2753
    %v2793 = vadd.f32 %v2639, %v2755
    %v2794 = vadd.f32 %v2640, %v2758
    %v2795 = vadd.f32 %v2641, %v2760
    %v2796 = vadd.f32 %v2642, %v2763
    %v2797 = vadd.f32 %v2643, %v2765
    %v2798 = vadd.f32 %v2644, %v2768
    %v2799 = vadd.f32 %v2645, %v2770
    %v2800 = vadd.f32 %v2646, %v2773
    %v2801 = vadd.f32 %v2647, %v2775
    %v2802 = vadd.f32 %v2648, %v2778
    %v2803 = vadd.f32 %v2649, %v2780
    %v2804 = vadd.f32 %v2650, %v2783
    %v2805 = vadd.f32 %v2651, %v2785
    %v2806 = vadd.f32 %v2652, %v2788
    %v2807 = vadd.f32 %v2653, %v2790
    %v2808 = vld [vmem:[%s2499 + $0x2] sm:$0xff]
    %v2809 = vld [vmem:[%s2499 + $0x12] sm:$0xff]
    %v2810 = vld [vmem:[%s2499 + $0x22] sm:$0xff]
    %v2811 = vld [vmem:[%s2499 + $0x32] sm:$0xff]
    %v2812 = vld [vmem:[%s2499 + $0x42] sm:$0xff]
    %v2813 = vld [vmem:[%s2499 + $0x52] sm:$0xff]
    %v2814 = vld [vmem:[%s2499 + $0x62] sm:$0xff]
    %v2815 = vld [vmem:[%s2499 + $0x72] sm:$0xff]
    %v2816 = vld [vmem:[%s2499 + $0xa2] sm:$0xff]
    %v2817 = vld [vmem:[%s2499 + $0xb2] sm:$0xff]
    %v2818 = vld [vmem:[%s2499 + $0xc2] sm:$0xff]
    %v2819 = vld [vmem:[%s2499 + $0xd2] sm:$0xff]
    %v2820 = vld [vmem:[%s2499 + $0xe2] sm:$0xff]
    %v2821 = vld [vmem:[%s2499 + $0xf2] sm:$0xff]
    %v2822 = vld [vmem:[%s2499 + $0x102] sm:$0xff]
    %v2823 = vld [vmem:[%s2499 + $0x112] sm:$0xff]
    %v2824 = vpack.c.bf16 %v2809, %v2808
    %v2825 = vpack.c.bf16 %v2811, %v2810
    %v2826 = vpack.c.bf16 %v2813, %v2812
    %v2827 = vpack.c.bf16 %v2815, %v2814
    %v2828 = vpack.c.bf16 %v2817, %v2816
    %v2829 = vpack.c.bf16 %v2819, %v2818
    %v2830 = vpack.c.bf16 %v2821, %v2820
    %v2831 = vpack.c.bf16 %v2823, %v2822
    %s2832 = scalar_lea.vmem %s5, 512
    %v2833 = vld [vmem:[%s2832] sm:$0xf]
    %v2834 = vld [vmem:[%s2832 + $0x4] sm:$0xf]
    %v2835 = vld [vmem:[%s2832 + $0x8] sm:$0xf]
    %v2836 = vld [vmem:[%s2832 + $0xc] sm:$0xf]
    %v2837 = vld [vmem:[%s2832 + $0x10] sm:$0xf]
    %v2838 = vld [vmem:[%s2832 + $0x14] sm:$0xf]
    %v2839 = vld [vmem:[%s2832 + $0x18] sm:$0xf]
    %v2840 = vld [vmem:[%s2832 + $0x1c] sm:$0xf]
    %v2841 = vld [vmem:[%s2832 + $0x20] sm:$0xf]
    %v2842 = vld [vmem:[%s2832 + $0x24] sm:$0xf]
    %v2843 = vld [vmem:[%s2832 + $0x28] sm:$0xf]
    %v2844 = vld [vmem:[%s2832 + $0x2c] sm:$0xf]
    %v2845 = vld [vmem:[%s2832 + $0x30] sm:$0xf]
    %v2846 = vld [vmem:[%s2832 + $0x34] sm:$0xf]
    %v2847 = vld [vmem:[%s2832 + $0x38] sm:$0xf]
    %v2848 = vld [vmem:[%s2832 + $0x3c] sm:$0xf]
    %v2865 = vunpack.c.l.b16 %v2833
    %v2866 = vunpack.c.l.b16 %v2834
    %v2867 = vunpack.c.l.b16 %v2835
    %v2868 = vunpack.c.l.b16 %v2836
    %v2869 = vunpack.c.l.b16 %v2837
    %v2870 = vunpack.c.l.b16 %v2838
    %v2871 = vunpack.c.l.b16 %v2839
    %v2872 = vunpack.c.l.b16 %v2840
    %v2873 = vunpack.c.l.b16 %v2841
    %v2874 = vunpack.c.l.b16 %v2842
    %v2875 = vunpack.c.l.b16 %v2843
    %v2876 = vunpack.c.l.b16 %v2844
    %v2877 = vunpack.c.l.b16 %v2845
    %v2878 = vunpack.c.l.b16 %v2846
    %v2879 = vunpack.c.l.b16 %v2847
    %v2880 = vunpack.c.l.b16 %v2848
    %v2881 = vpack.c.b16 %v2866, %v2865
    %v2882 = vpack.c.b16 %v2868, %v2867
    %v2883 = vpack.c.b16 %v2870, %v2869
    %v2884 = vpack.c.b16 %v2872, %v2871
    %v2885 = vpack.c.b16 %v2874, %v2873
    %v2886 = vpack.c.b16 %v2876, %v2875
    %v2887 = vpack.c.b16 %v2878, %v2877
    %v2888 = vpack.c.b16 %v2880, %v2879
    %2897 = vmatpush.bf16.msra.mxu0 %v2888
    %2898 = vmatpush.bf16.msra.mxu0 %v2887
    %2899 = vmatpush.bf16.msra.mxu0 %v2886
    %2900 = vmatpush.bf16.msra.mxu0 %v2885
    %2901 = vmatpush.bf16.msra.mxu0 %v2884
    %2902 = vmatpush.bf16.msra.mxu0 %v2883
    %2903 = vmatpush.bf16.msra.mxu0 %v2882
    %2904 = vmatpush.bf16.msra.mxu0 %v2881
    %2905 = vmatmul.bf16.gmra.mxu0 %v2824
    %v2906 = vpop.f32.mrf.mxu0
    %v2907 = vadd.f32 0.0, %v2906
    %v2908 = vpop.f32.mrf.mxu0
    %v2909 = vadd.f32 0.0, %v2908
    %2910 = vmatmul.bf16.gmra.mxu0 %v2825
    %v2911 = vpop.f32.mrf.mxu0
    %v2912 = vadd.f32 0.0, %v2911
    %v2913 = vpop.f32.mrf.mxu0
    %v2914 = vadd.f32 0.0, %v2913
    %2915 = vmatmul.bf16.gmra.mxu0 %v2826
    %v2916 = vpop.f32.mrf.mxu0
    %v2917 = vadd.f32 0.0, %v2916
    %v2918 = vpop.f32.mrf.mxu0
    %v2919 = vadd.f32 0.0, %v2918
    %2920 = vmatmul.bf16.gmra.mxu0 %v2827
    %v2921 = vpop.f32.mrf.mxu0
    %v2922 = vadd.f32 0.0, %v2921
    %v2923 = vpop.f32.mrf.mxu0
    %v2924 = vadd.f32 0.0, %v2923
    %2925 = vmatmul.bf16.gmra.mxu0 %v2828
    %v2926 = vpop.f32.mrf.mxu0
    %v2927 = vadd.f32 0.0, %v2926
    %v2928 = vpop.f32.mrf.mxu0
    %v2929 = vadd.f32 0.0, %v2928
    %2930 = vmatmul.bf16.gmra.mxu0 %v2829
    %v2931 = vpop.f32.mrf.mxu0
    %v2932 = vadd.f32 0.0, %v2931
    %v2933 = vpop.f32.mrf.mxu0
    %v2934 = vadd.f32 0.0, %v2933
    %2935 = vmatmul.bf16.gmra.mxu0 %v2830
    %v2936 = vpop.f32.mrf.mxu0
    %v2937 = vadd.f32 0.0, %v2936
    %v2938 = vpop.f32.mrf.mxu0
    %v2939 = vadd.f32 0.0, %v2938
    %2940 = vmatmul.bf16.gmra.mxu0 %v2831
    %v2941 = vpop.f32.mrf.mxu0
    %v2942 = vadd.f32 0.0, %v2941
    %v2943 = vpop.f32.mrf.mxu0
    %v2944 = vadd.f32 0.0, %v2943
    %2945 = vdwg.mxu0
    %v2946 = vadd.f32 %v2792, %v2907
    %v2947 = vadd.f32 %v2793, %v2909
    %v2948 = vadd.f32 %v2794, %v2912
    %v2949 = vadd.f32 %v2795, %v2914
    %v2950 = vadd.f32 %v2796, %v2917
    %v2951 = vadd.f32 %v2797, %v2919
    %v2952 = vadd.f32 %v2798, %v2922
    %v2953 = vadd.f32 %v2799, %v2924
    %v2954 = vadd.f32 %v2800, %v2927
    %v2955 = vadd.f32 %v2801, %v2929
    %v2956 = vadd.f32 %v2802, %v2932
    %v2957 = vadd.f32 %v2803, %v2934
    %v2958 = vadd.f32 %v2804, %v2937
    %v2959 = vadd.f32 %v2805, %v2939
    %v2960 = vadd.f32 %v2806, %v2942
    %v2961 = vadd.f32 %v2807, %v2944
    %v2962 = vld [vmem:[%s6] sm:$0x1]
    %v2963 = vld [vmem:[%s7] sm:$0x1]
    %v2964 = vadd.f32 %v2946, %v2947
    %v2965 = vadd.f32 %v2964, %v2948
    %v2966 = vadd.f32 %v2965, %v2949
    %v2967 = vadd.f32 %v2966, %v2950
    %v2968 = vadd.f32 %v2967, %v2951
    %v2969 = vadd.f32 %v2968, %v2952
    %v2970 = vadd.f32 %v2969, %v2953
    %v2971 = vadd.f32 %v2970, %v2954
    %v2972 = vadd.f32 %v2971, %v2955
    %v2973 = vadd.f32 %v2972, %v2956
    %v2974 = vadd.f32 %v2973, %v2957
    %v2975 = vadd.f32 %v2974, %v2958
    %v2976 = vadd.f32 %v2975, %v2959
    %v2977 = vadd.f32 %v2976, %v2960
    %v2978 = vadd.f32 %v2977, %v2961
    %v2979 = vrot.slane %v2978, 4
    %v2980 = vadd.f32 %v2978, %v2979
    %v2981 = vrot.slane %v2980, 2
    %v2982 = vadd.f32 %v2980, %v2981
    %v2983 = vrot.slane %v2982, 1
    %v2984 = vadd.f32 %v2982, %v2983
    %v2985 = vmul.f32 %v2984, %v1426
    %v2986 = vmul.f32 %v2946, %v2946
    %v2987 = vmul.f32 %v2947, %v2947
    %v2988 = vmul.f32 %v2948, %v2948
    %v2989 = vmul.f32 %v2949, %v2949
    %v2990 = vmul.f32 %v2950, %v2950
    %v2991 = vmul.f32 %v2951, %v2951
    %v2992 = vmul.f32 %v2952, %v2952
    %v2993 = vmul.f32 %v2953, %v2953
    %v2994 = vmul.f32 %v2954, %v2954
    %v2995 = vmul.f32 %v2955, %v2955
    %v2996 = vmul.f32 %v2956, %v2956
    %v2997 = vmul.f32 %v2957, %v2957
    %v2998 = vmul.f32 %v2958, %v2958
    %v2999 = vmul.f32 %v2959, %v2959
    %v3000 = vmul.f32 %v2960, %v2960
    %v3001 = vmul.f32 %v2961, %v2961
    %v3002 = vadd.f32 %v2986, %v2987
    %v3003 = vadd.f32 %v3002, %v2988
    %v3004 = vadd.f32 %v3003, %v2989
    %v3005 = vadd.f32 %v3004, %v2990
    %v3006 = vadd.f32 %v3005, %v2991
    %v3007 = vadd.f32 %v3006, %v2992
    %v3008 = vadd.f32 %v3007, %v2993
    %v3009 = vadd.f32 %v3008, %v2994
    %v3010 = vadd.f32 %v3009, %v2995
    %v3011 = vadd.f32 %v3010, %v2996
    %v3012 = vadd.f32 %v3011, %v2997
    %v3013 = vadd.f32 %v3012, %v2998
    %v3014 = vadd.f32 %v3013, %v2999
    %v3015 = vadd.f32 %v3014, %v3000
    %v3016 = vadd.f32 %v3015, %v3001
    %v3017 = vrot.slane %v3016, 4
    %v3018 = vadd.f32 %v3016, %v3017
    %v3019 = vrot.slane %v3018, 2
    %v3020 = vadd.f32 %v3018, %v3019
    %v3021 = vrot.slane %v3020, 1
    %v3022 = vadd.f32 %v3020, %v3021
    %v3023 = vmul.f32 %v3022, %v1426
    %v3024 = vmul.f32 %v2985, %v2985
    %v3025 = vsub.f32 %v3023, %v3024
    %v3026 = vmax.f32 %v3025, 0.0
    %v3027 = vsub.f32 %v2946, %v2985
    %v3028 = vsub.f32 %v2947, %v2985
    %v3029 = vsub.f32 %v2948, %v2985
    %v3030 = vsub.f32 %v2949, %v2985
    %v3031 = vsub.f32 %v2950, %v2985
    %v3032 = vsub.f32 %v2951, %v2985
    %v3033 = vsub.f32 %v2952, %v2985
    %v3034 = vsub.f32 %v2953, %v2985
    %v3035 = vsub.f32 %v2954, %v2985
    %v3036 = vsub.f32 %v2955, %v2985
    %v3037 = vsub.f32 %v2956, %v2985
    %v3038 = vsub.f32 %v2957, %v2985
    %v3039 = vsub.f32 %v2958, %v2985
    %v3040 = vsub.f32 %v2959, %v2985
    %v3041 = vsub.f32 %v2960, %v2985
    %v3042 = vsub.f32 %v2961, %v2985
    %v3043 = vadd.f32 %v3026, 1e-05
    %v3044 = vrsqrt.pop %v3043
    %v3045 = vmul.f32 %v3044, %v3043
    %v3046 = vmul.f32 %v3045, %v3044
    %v3047 = vmul.f32 0.5, %v3046
    %v3048 = vsub.f32 1.5, %v3047
    %v3049 = vmul.f32 %v3044, %v3048
    %vm3050 = vweird.f32 %v3043
    %vm3051 = vweird.f32 %v3044
    %vm3052 = vmor %vm3050, %vm3051
    %v3053 = vsel %vm3052, %v3044, %v3049
    %v3054 = vmul.f32 %v2962, %v3053
    %v3056 = vperm.slane %v3054, 0
    %v3058 = vmul.f32 %v3027, %v3056
    %v3059 = vmul.f32 %v3028, %v3056
    %v3060 = vmul.f32 %v3029, %v3056
    %v3061 = vmul.f32 %v3030, %v3056
    %v3062 = vmul.f32 %v3031, %v3056
    %v3063 = vmul.f32 %v3032, %v3056
    %v3064 = vmul.f32 %v3033, %v3056
    %v3065 = vmul.f32 %v3034, %v3056
    %v3066 = vmul.f32 %v3035, %v3056
    %v3067 = vmul.f32 %v3036, %v3056
    %v3068 = vmul.f32 %v3037, %v3056
    %v3069 = vmul.f32 %v3038, %v3056
    %v3070 = vmul.f32 %v3039, %v3056
    %v3071 = vmul.f32 %v3040, %v3056
    %v3072 = vmul.f32 %v3041, %v3056
    %v3073 = vmul.f32 %v3042, %v3056
    %v3075 = vperm.slane %v2963, 0
    %v3077 = vadd.f32 %v3058, %v3075
    %v3078 = vadd.f32 %v3059, %v3075
    %v3079 = vadd.f32 %v3060, %v3075
    %v3080 = vadd.f32 %v3061, %v3075
    %v3081 = vadd.f32 %v3062, %v3075
    %v3082 = vadd.f32 %v3063, %v3075
    %v3083 = vadd.f32 %v3064, %v3075
    %v3084 = vadd.f32 %v3065, %v3075
    %v3085 = vadd.f32 %v3066, %v3075
    %v3086 = vadd.f32 %v3067, %v3075
    %v3087 = vadd.f32 %v3068, %v3075
    %v3088 = vadd.f32 %v3069, %v3075
    %v3089 = vadd.f32 %v3070, %v3075
    %v3090 = vadd.f32 %v3071, %v3075
    %v3091 = vadd.f32 %v3072, %v3075
    %v3092 = vadd.f32 %v3073, %v3075
    %v3093 = vld [vmem:[%s1] sm:$0xff]
    %v3094 = vld [vmem:[%s1 + $0x8] sm:$0xff]
    %v3095 = vld [vmem:[%s1 + $0x10] sm:$0xff]
    %v3096 = vld [vmem:[%s1 + $0x18] sm:$0xff]
    %v3097 = vld [vmem:[%s1 + $0x20] sm:$0xff]
    %v3098 = vld [vmem:[%s1 + $0x28] sm:$0xff]
    %v3099 = vld [vmem:[%s1 + $0x30] sm:$0xff]
    %v3100 = vld [vmem:[%s1 + $0x38] sm:$0xff]
    %v3101 = vld [vmem:[%s1 + $0x40] sm:$0xff]
    %v3102 = vld [vmem:[%s1 + $0x48] sm:$0xff]
    %v3103 = vld [vmem:[%s1 + $0x50] sm:$0xff]
    %v3104 = vld [vmem:[%s1 + $0x58] sm:$0xff]
    %v3105 = vld [vmem:[%s1 + $0x60] sm:$0xff]
    %v3106 = vld [vmem:[%s1 + $0x68] sm:$0xff]
    %v3107 = vld [vmem:[%s1 + $0x70] sm:$0xff]
    %v3108 = vld [vmem:[%s1 + $0x78] sm:$0xff]
    %v3109 = vpack.c.bf16 %v3094, %v3093
    %v3110 = vpack.c.bf16 %v3096, %v3095
    %v3111 = vpack.c.bf16 %v3098, %v3097
    %v3112 = vpack.c.bf16 %v3100, %v3099
    %v3113 = vpack.c.bf16 %v3102, %v3101
    %v3114 = vpack.c.bf16 %v3104, %v3103
    %v3115 = vpack.c.bf16 %v3106, %v3105
    %v3116 = vpack.c.bf16 %v3108, %v3107
    %v3117 = vld [vmem:[%s8] sm:$0xf]
    %v3118 = vld [vmem:[%s8 + $0x4] sm:$0xf]
    %v3119 = vld [vmem:[%s8 + $0x8] sm:$0xf]
    %v3120 = vld [vmem:[%s8 + $0xc] sm:$0xf]
    %v3121 = vld [vmem:[%s8 + $0x10] sm:$0xf]
    %v3122 = vld [vmem:[%s8 + $0x14] sm:$0xf]
    %v3123 = vld [vmem:[%s8 + $0x18] sm:$0xf]
    %v3124 = vld [vmem:[%s8 + $0x1c] sm:$0xf]
    %v3125 = vld [vmem:[%s8 + $0x20] sm:$0xf]
    %v3126 = vld [vmem:[%s8 + $0x24] sm:$0xf]
    %v3127 = vld [vmem:[%s8 + $0x28] sm:$0xf]
    %v3128 = vld [vmem:[%s8 + $0x2c] sm:$0xf]
    %v3129 = vld [vmem:[%s8 + $0x30] sm:$0xf]
    %v3130 = vld [vmem:[%s8 + $0x34] sm:$0xf]
    %v3131 = vld [vmem:[%s8 + $0x38] sm:$0xf]
    %v3132 = vld [vmem:[%s8 + $0x3c] sm:$0xf]
    %v3149 = vunpack.c.l.b16 %v3117
    %v3150 = vunpack.c.l.b16 %v3118
    %v3151 = vunpack.c.l.b16 %v3119
    %v3152 = vunpack.c.l.b16 %v3120
    %v3153 = vunpack.c.l.b16 %v3121
    %v3154 = vunpack.c.l.b16 %v3122
    %v3155 = vunpack.c.l.b16 %v3123
    %v3156 = vunpack.c.l.b16 %v3124
    %v3157 = vunpack.c.l.b16 %v3125
    %v3158 = vunpack.c.l.b16 %v3126
    %v3159 = vunpack.c.l.b16 %v3127
    %v3160 = vunpack.c.l.b16 %v3128
    %v3161 = vunpack.c.l.b16 %v3129
    %v3162 = vunpack.c.l.b16 %v3130
    %v3163 = vunpack.c.l.b16 %v3131
    %v3164 = vunpack.c.l.b16 %v3132
    %v3165 = vpack.c.b16 %v3150, %v3149
    %v3166 = vpack.c.b16 %v3152, %v3151
    %v3167 = vpack.c.b16 %v3154, %v3153
    %v3168 = vpack.c.b16 %v3156, %v3155
    %v3169 = vpack.c.b16 %v3158, %v3157
    %v3170 = vpack.c.b16 %v3160, %v3159
    %v3171 = vpack.c.b16 %v3162, %v3161
    %v3172 = vpack.c.b16 %v3164, %v3163
    %3181 = vmatpush.bf16.msra.mxu0 %v3172
    %3182 = vmatpush.bf16.msra.mxu0 %v3171
    %3183 = vmatpush.bf16.msra.mxu0 %v3170
    %3184 = vmatpush.bf16.msra.mxu0 %v3169
    %3185 = vmatpush.bf16.msra.mxu0 %v3168
    %3186 = vmatpush.bf16.msra.mxu0 %v3167
    %3187 = vmatpush.bf16.msra.mxu0 %v3166
    %3188 = vmatpush.bf16.msra.mxu0 %v3165
    %3189 = vmatmul.bf16.gmra.mxu0 %v3109
    %v3190 = vpop.f32.mrf.mxu0
    %v3191 = vadd.f32 0.0, %v3190
    %v3192 = vpop.f32.mrf.mxu0
    %v3193 = vadd.f32 0.0, %v3192
    %3194 = vmatmul.bf16.gmra.mxu0 %v3110
    %v3195 = vpop.f32.mrf.mxu0
    %v3196 = vadd.f32 0.0, %v3195
    %v3197 = vpop.f32.mrf.mxu0
    %v3198 = vadd.f32 0.0, %v3197
    %3199 = vmatmul.bf16.gmra.mxu0 %v3111
    %v3200 = vpop.f32.mrf.mxu0
    %v3201 = vadd.f32 0.0, %v3200
    %v3202 = vpop.f32.mrf.mxu0
    %v3203 = vadd.f32 0.0, %v3202
    %3204 = vmatmul.bf16.gmra.mxu0 %v3112
    %v3205 = vpop.f32.mrf.mxu0
    %v3206 = vadd.f32 0.0, %v3205
    %v3207 = vpop.f32.mrf.mxu0
    %v3208 = vadd.f32 0.0, %v3207
    %3209 = vmatmul.bf16.gmra.mxu0 %v3113
    %v3210 = vpop.f32.mrf.mxu0
    %v3211 = vadd.f32 0.0, %v3210
    %v3212 = vpop.f32.mrf.mxu0
    %v3213 = vadd.f32 0.0, %v3212
    %3214 = vmatmul.bf16.gmra.mxu0 %v3114
    %v3215 = vpop.f32.mrf.mxu0
    %v3216 = vadd.f32 0.0, %v3215
    %v3217 = vpop.f32.mrf.mxu0
    %v3218 = vadd.f32 0.0, %v3217
    %3219 = vmatmul.bf16.gmra.mxu0 %v3115
    %v3220 = vpop.f32.mrf.mxu0
    %v3221 = vadd.f32 0.0, %v3220
    %v3222 = vpop.f32.mrf.mxu0
    %v3223 = vadd.f32 0.0, %v3222
    %3224 = vmatmul.bf16.gmra.mxu0 %v3116
    %v3225 = vpop.f32.mrf.mxu0
    %v3226 = vadd.f32 0.0, %v3225
    %v3227 = vpop.f32.mrf.mxu0
    %v3228 = vadd.f32 0.0, %v3227
    %3229 = vdwg.mxu0
    %v3230 = vld [vmem:[%s9] sm:$0x1]
    %v3231 = vld [vmem:[%s10] sm:$0x1]
    %v3232 = vadd.f32 %v3191, %v3193
    %v3233 = vadd.f32 %v3232, %v3196
    %v3234 = vadd.f32 %v3233, %v3198
    %v3235 = vadd.f32 %v3234, %v3201
    %v3236 = vadd.f32 %v3235, %v3203
    %v3237 = vadd.f32 %v3236, %v3206
    %v3238 = vadd.f32 %v3237, %v3208
    %v3239 = vadd.f32 %v3238, %v3211
    %v3240 = vadd.f32 %v3239, %v3213
    %v3241 = vadd.f32 %v3240, %v3216
    %v3242 = vadd.f32 %v3241, %v3218
    %v3243 = vadd.f32 %v3242, %v3221
    %v3244 = vadd.f32 %v3243, %v3223
    %v3245 = vadd.f32 %v3244, %v3226
    %v3246 = vadd.f32 %v3245, %v3228
    %v3247 = vrot.slane %v3246, 4
    %v3248 = vadd.f32 %v3246, %v3247
    %v3249 = vrot.slane %v3248, 2
    %v3250 = vadd.f32 %v3248, %v3249
    %v3251 = vrot.slane %v3250, 1
    %v3252 = vadd.f32 %v3250, %v3251
    %v3253 = vmul.f32 %v3252, %v1426
    %v3254 = vmul.f32 %v3191, %v3191
    %v3255 = vmul.f32 %v3193, %v3193
    %v3256 = vmul.f32 %v3196, %v3196
    %v3257 = vmul.f32 %v3198, %v3198
    %v3258 = vmul.f32 %v3201, %v3201
    %v3259 = vmul.f32 %v3203, %v3203
    %v3260 = vmul.f32 %v3206, %v3206
    %v3261 = vmul.f32 %v3208, %v3208
    %v3262 = vmul.f32 %v3211, %v3211
    %v3263 = vmul.f32 %v3213, %v3213
    %v3264 = vmul.f32 %v3216, %v3216
    %v3265 = vmul.f32 %v3218, %v3218
    %v3266 = vmul.f32 %v3221, %v3221
    %v3267 = vmul.f32 %v3223, %v3223
    %v3268 = vmul.f32 %v3226, %v3226
    %v3269 = vmul.f32 %v3228, %v3228
    %v3270 = vadd.f32 %v3254, %v3255
    %v3271 = vadd.f32 %v3270, %v3256
    %v3272 = vadd.f32 %v3271, %v3257
    %v3273 = vadd.f32 %v3272, %v3258
    %v3274 = vadd.f32 %v3273, %v3259
    %v3275 = vadd.f32 %v3274, %v3260
    %v3276 = vadd.f32 %v3275, %v3261
    %v3277 = vadd.f32 %v3276, %v3262
    %v3278 = vadd.f32 %v3277, %v3263
    %v3279 = vadd.f32 %v3278, %v3264
    %v3280 = vadd.f32 %v3279, %v3265
    %v3281 = vadd.f32 %v3280, %v3266
    %v3282 = vadd.f32 %v3281, %v3267
    %v3283 = vadd.f32 %v3282, %v3268
    %v3284 = vadd.f32 %v3283, %v3269
    %v3285 = vrot.slane %v3284, 4
    %v3286 = vadd.f32 %v3284, %v3285
    %v3287 = vrot.slane %v3286, 2
    %v3288 = vadd.f32 %v3286, %v3287
    %v3289 = vrot.slane %v3288, 1
    %v3290 = vadd.f32 %v3288, %v3289
    %v3291 = vmul.f32 %v3290, %v1426
    %v3292 = vmul.f32 %v3253, %v3253
    %v3293 = vsub.f32 %v3291, %v3292
    %v3294 = vmax.f32 %v3293, 0.0
    %v3295 = vsub.f32 %v3191, %v3253
    %v3296 = vsub.f32 %v3193, %v3253
    %v3297 = vsub.f32 %v3196, %v3253
    %v3298 = vsub.f32 %v3198, %v3253
    %v3299 = vsub.f32 %v3201, %v3253
    %v3300 = vsub.f32 %v3203, %v3253
    %v3301 = vsub.f32 %v3206, %v3253
    %v3302 = vsub.f32 %v3208, %v3253
    %v3303 = vsub.f32 %v3211, %v3253
    %v3304 = vsub.f32 %v3213, %v3253
    %v3305 = vsub.f32 %v3216, %v3253
    %v3306 = vsub.f32 %v3218, %v3253
    %v3307 = vsub.f32 %v3221, %v3253
    %v3308 = vsub.f32 %v3223, %v3253
    %v3309 = vsub.f32 %v3226, %v3253
    %v3310 = vsub.f32 %v3228, %v3253
    %v3311 = vadd.f32 %v3294, 1e-05
    %v3312 = vrsqrt.pop %v3311
    %v3313 = vmul.f32 %v3312, %v3311
    %v3314 = vmul.f32 %v3313, %v3312
    %v3315 = vmul.f32 0.5, %v3314
    %v3316 = vsub.f32 1.5, %v3315
    %v3317 = vmul.f32 %v3312, %v3316
    %vm3318 = vweird.f32 %v3311
    %vm3319 = vweird.f32 %v3312
    %vm3320 = vmor %vm3318, %vm3319
    %v3321 = vsel %vm3320, %v3312, %v3317
    %v3322 = vmul.f32 %v3230, %v3321
    %v3324 = vperm.slane %v3322, 0
    %v3326 = vmul.f32 %v3295, %v3324
    %v3327 = vmul.f32 %v3296, %v3324
    %v3328 = vmul.f32 %v3297, %v3324
    %v3329 = vmul.f32 %v3298, %v3324
    %v3330 = vmul.f32 %v3299, %v3324
    %v3331 = vmul.f32 %v3300, %v3324
    %v3332 = vmul.f32 %v3301, %v3324
    %v3333 = vmul.f32 %v3302, %v3324
    %v3334 = vmul.f32 %v3303, %v3324
    %v3335 = vmul.f32 %v3304, %v3324
    %v3336 = vmul.f32 %v3305, %v3324
    %v3337 = vmul.f32 %v3306, %v3324
    %v3338 = vmul.f32 %v3307, %v3324
    %v3339 = vmul.f32 %v3308, %v3324
    %v3340 = vmul.f32 %v3309, %v3324
    %v3341 = vmul.f32 %v3310, %v3324
    %v3343 = vperm.slane %v3231, 0
    %v3345 = vadd.f32 %v3326, %v3343
    %v3346 = vadd.f32 %v3327, %v3343
    %v3347 = vadd.f32 %v3328, %v3343
    %v3348 = vadd.f32 %v3329, %v3343
    %v3349 = vadd.f32 %v3330, %v3343
    %v3350 = vadd.f32 %v3331, %v3343
    %v3351 = vadd.f32 %v3332, %v3343
    %v3352 = vadd.f32 %v3333, %v3343
    %v3353 = vadd.f32 %v3334, %v3343
    %v3354 = vadd.f32 %v3335, %v3343
    %v3355 = vadd.f32 %v3336, %v3343
    %v3356 = vadd.f32 %v3337, %v3343
    %v3357 = vadd.f32 %v3338, %v3343
    %v3358 = vadd.f32 %v3339, %v3343
    %v3359 = vadd.f32 %v3340, %v3343
    %v3360 = vadd.f32 %v3341, %v3343
    %v3361 = vadd.f32 %v3077, %v3345
    %v3362 = vadd.f32 %v3078, %v3346
    %v3363 = vadd.f32 %v3079, %v3347
    %v3364 = vadd.f32 %v3080, %v3348
    %v3365 = vadd.f32 %v3081, %v3349
    %v3366 = vadd.f32 %v3082, %v3350
    %v3367 = vadd.f32 %v3083, %v3351
    %v3368 = vadd.f32 %v3084, %v3352
    %v3369 = vadd.f32 %v3085, %v3353
    %v3370 = vadd.f32 %v3086, %v3354
    %v3371 = vadd.f32 %v3087, %v3355
    %v3372 = vadd.f32 %v3088, %v3356
    %v3373 = vadd.f32 %v3089, %v3357
    %v3374 = vadd.f32 %v3090, %v3358
    %v3375 = vadd.f32 %v3091, %v3359
    %v3376 = vadd.f32 %v3092, %v3360
    %v3377 = vmax.f32 %v3361, 0.0
    %v3378 = vmax.f32 %v3362, 0.0
    %v3379 = vmax.f32 %v3363, 0.0
    %v3380 = vmax.f32 %v3364, 0.0
    %v3381 = vmax.f32 %v3365, 0.0
    %v3382 = vmax.f32 %v3366, 0.0
    %v3383 = vmax.f32 %v3367, 0.0
    %v3384 = vmax.f32 %v3368, 0.0
    %v3385 = vmax.f32 %v3369, 0.0
    %v3386 = vmax.f32 %v3370, 0.0
    %v3387 = vmax.f32 %v3371, 0.0
    %v3388 = vmax.f32 %v3372, 0.0
    %v3389 = vmax.f32 %v3373, 0.0
    %v3390 = vmax.f32 %v3374, 0.0
    %v3391 = vmax.f32 %v3375, 0.0
    %v3392 = vmax.f32 %v3376, 0.0
    %3393 = vst [vmem:[#allocation3] sm:$0xff] %v3377
    %3394 = vst [vmem:[#allocation3 + $0x8] sm:$0xff] %v3378
    %3395 = vst [vmem:[#allocation3 + $0x10] sm:$0xff] %v3379
    %3396 = vst [vmem:[#allocation3 + $0x18] sm:$0xff] %v3380
    %3397 = vst [vmem:[#allocation3 + $0x20] sm:$0xff] %v3381
    %3398 = vst [vmem:[#allocation3 + $0x28] sm:$0xff] %v3382
    %3399 = vst [vmem:[#allocation3 + $0x30] sm:$0xff] %v3383
    %3400 = vst [vmem:[#allocation3 + $0x38] sm:$0xff] %v3384
    %3401 = vst [vmem:[#allocation3 + $0x40] sm:$0xff] %v3385
    %3402 = vst [vmem:[#allocation3 + $0x48] sm:$0xff] %v3386
    %3403 = vst [vmem:[#allocation3 + $0x50] sm:$0xff] %v3387
    %3404 = vst [vmem:[#allocation3 + $0x58] sm:$0xff] %v3388
    %3405 = vst [vmem:[#allocation3 + $0x60] sm:$0xff] %v3389
    %3406 = vst [vmem:[#allocation3 + $0x68] sm:$0xff] %v3390
    %3407 = vst [vmem:[#allocation3 + $0x70] sm:$0xff] %v3391
    %3408 = vst [vmem:[#allocation3 + $0x78] sm:$0xff] %v3392
    // Predicated region
    $region46: #{tpu_custom_call.1} parent=1 // pred_check
      _
    $region47: #{tpu_custom_call.1} parent=1 // pred_check_branch
      %3410 = sbr.rel (0) target = $region49
    $region48: #{tpu_custom_call.1} parent=1 // pred_region
      %3412 = vsyncadd [#allocation4], 0
      %s3413 = sshll.u32 [#allocation3], 4
      %s3414 = int_to_ptr.vmem [resolvable:$true] %s3413
      %s3415 = sshll.u32 %s11, 4
      %s3416 = int_to_ptr.hbm [resolvable:$true] %s3415
      %3421 = dma.vmem_to_hbm [thread:$0]  %s3414, 2048, %s3416, [#allocation4], 128, 128, 8
    $region49: #{tpu_custom_call.1} parent=1 // pred_fallthru
      _
    // Predicated region
    $region50: #{tpu_custom_call.1} parent=1 // pred_check
      _
    $region51: #{tpu_custom_call.1} parent=1 // pred_check_branch
      %3423 = sbr.rel (0) target = $region53
    $region52: #{tpu_custom_call.1} parent=1 // pred_region
      %3425 = dma.done [#allocation4], 2048
    $region53: #{tpu_custom_call.1} parent=1 // pred_fallthru
      _
    %3426 = vsyncpa [#allocation4], 1

</llo_original>
